<compile_context>
chip_gen: v7x
topology: tpu7x:2x2x1
jax: 0.10.0
libtpu: 0.0.40
codegen_flags: <defaults>
</compile_context>

<pallas_src>
import functools

import jax
import jax.numpy as jnp
from jax.experimental import pallas as pl
from jax.experimental.pallas import tpu as pltpu

_EPS = 1e-5
_LANE = 128


def _round_up(v, m):
    return ((v + m - 1) // m) * m


# ----------------------------------------------------------------------------
# Fused Pallas kernel: full Block forward for one batch element
# ----------------------------------------------------------------------------
def _block_kernel(x_ref, wdw_ref, wpw_ref, bias_ref, wsk_ref, bsk_ref,
                  o_ref, xpad_ref, *, H, W, d, skip_is_conv):
    """Fused Xception Block forward.

    x_ref:    (1, H, W, Cp)         input tile (channels zero-padded to Cp)
    wdw_ref:  (R, 3, 3, Cp)  f32    depthwise weights per rep (padded)
    wpw_ref:  (R, Cp, Cp)    bf16   BN-folded pointwise weights per rep
    bias_ref: (R, 1, Cp)     f32    BN-folded pointwise bias per rep
    wsk_ref:  (Cp, Cp)       bf16   BN-folded skip 1x1 weights
    bsk_ref:  (1, Cp)        f32    BN-folded skip bias
    o_ref:    (1, H, W, Cp)
    xpad_ref: VMEM scratch (H+2d, W+2d, Cp) f32 -- halo-padded depthwise input
    """
    reps = wdw_ref.shape[0]
    cp = x_ref.shape[-1]

    # Zero the padded scratch once per grid step (megacore-safe); only the
    # interior is written below, so the halo ring stays zero for all reps.
    xpad_ref[...] = jnp.zeros_like(xpad_ref)

    x = x_ref[0].astype(jnp.float32)                        # (H, W, Cp)

    out = x
    for r in range(reps):
        # ReLU precedes every SeparableConv2d in this configuration
        # (start_with_relu=True, grow_first=True).
        xpad_ref[d:d + H, d:d + W, :] = jnp.maximum(out, 0.0)
        xp = xpad_ref[...]                                  # (H+2d, W+2d, Cp)
        wdw = wdw_ref[r].astype(jnp.float32)                # (3, 3, Cp)

        # Depthwise 3x3: 3 column-shifted slabs (sublane shifts), each reused
        # across the 3 row taps (row shifts are cheap leading-dim slices).
        acc = jnp.zeros((H, W, cp), jnp.float32)
        for kj in range(3):
            xs = xp[:, kj * d:kj * d + W, :]                # (H+2d, W, Cp)
            for ki in range(3):
                acc = acc + xs[ki * d:ki * d + H, :, :] * wdw[ki, kj, :]

        # Pointwise 1x1 with both BNs folded in: one MXU matmul + bias add.
        y = jnp.dot(acc.reshape(H * W, cp).astype(wpw_ref.dtype), wpw_ref[r],
                    preferred_element_type=jnp.float32)     # (H*W, Cp)
        out = (y + bias_ref[r]).reshape(H, W, cp)

    # Skip branch + residual add (fused; no extra HBM pass).
    out2 = out.reshape(H * W, cp)
    if skip_is_conv:
        sk = jnp.dot(x.reshape(H * W, cp).astype(wsk_ref.dtype), wsk_ref[...],
                     preferred_element_type=jnp.float32)
        out2 = out2 + sk + bsk_ref[...]
    else:
        out2 = out2 + x.reshape(H * W, cp)                  # identity skip

    o_ref[0] = out2.reshape(H, W, cp).astype(o_ref.dtype)


# ----------------------------------------------------------------------------
# Wrapper (pallas_call plumbing)
# ----------------------------------------------------------------------------
def block_forward_pallas(x_nchw, kparams, *, dilation, planes, skip_is_conv):
    """Full Block forward. Input/output are NCHW like the PyTorch module."""
    N, cin, H, W = x_nchw.shape
    reps, _, _, cp = kparams["wdw"].shape
    d = dilation

    x = jnp.transpose(x_nchw, (0, 2, 3, 1))                 # NCHW -> NHWC
    if cin < cp:                                            # lane-pad channels
        x = jnp.pad(x, ((0, 0), (0, 0), (0, 0), (0, cp - cin)))

    kern = functools.partial(_block_kernel, H=H, W=W, d=d,
                             skip_is_conv=skip_is_conv)
    out = pl.pallas_call(
        kern,
        out_shape=jax.ShapeDtypeStruct((N, H, W, cp), x_nchw.dtype),
        grid=(N,),
        in_specs=[
            pl.BlockSpec((1, H, W, cp), lambda n: (n, 0, 0, 0)),
            pl.BlockSpec((reps, 3, 3, cp), lambda n: (0, 0, 0, 0)),
            pl.BlockSpec((reps, cp, cp), lambda n: (0, 0, 0)),
            pl.BlockSpec((reps, 1, cp), lambda n: (0, 0, 0)),
            pl.BlockSpec((cp, cp), lambda n: (0, 0)),
            pl.BlockSpec((1, cp), lambda n: (0, 0)),
        ],
        out_specs=pl.BlockSpec((1, H, W, cp), lambda n: (n, 0, 0, 0)),
        scratch_shapes=[pltpu.VMEM((H + 2 * d, W + 2 * d, cp), jnp.float32)],
        compiler_params=pltpu.CompilerParams(dimension_semantics=("parallel",)),
    )(x, kparams["wdw"], kparams["wpw"], kparams["bias"],
      kparams["wsk"], kparams["bsk"])

    out = out[..., :planes]                                 # strip channel pad
    return jnp.transpose(out, (0, 3, 1, 2))                 # NHWC -> NCHW


# ----------------------------------------------------------------------------
# Parameter construction: raw params, BN folding, channel padding
# ----------------------------------------------------------------------------
def _make_bn(key, c):
    k1, k2, k3, k4 = jax.random.split(key, 4)
    gamma = 1.0 + 0.1 * jax.random.normal(k1, (c,), jnp.float32)
    beta = 0.1 * jax.random.normal(k2, (c,), jnp.float32)
    mean = 0.1 * jax.random.normal(k3, (c,), jnp.float32)
    var = 0.5 + 0.5 * jax.random.uniform(k4, (c,), jnp.float32)
    return (gamma, beta, mean, var)


def _fold_bn(bn):
    gamma, beta, mean, var = bn
    scale = gamma / jnp.sqrt(var + _EPS)
    return scale, beta - mean * scale


def build_block_params(key, inplanes, planes, reps, dilation):
    """Raw parameters matching Block(inplanes, planes, reps, ...) defaults."""
    keys = iter(jax.random.split(key, 4 * reps + 4))
    seps = []
    for i in range(reps):                                   # grow_first=True
        cin = inplanes if i == 0 else planes
        cout = planes
        wdw = 0.2 * jax.random.normal(next(keys), (3, 3, cin), jnp.float32)
        wpw = 0.2 * jax.random.normal(next(keys), (cin, cout), jnp.float32)
        seps.append(dict(wdw=wdw, wpw=wpw, bn_dw=_make_bn(next(keys), cin),
                         bn_pw=_make_bn(next(keys), cout), dilation=dilation))
    if planes != inplanes:                                  # stride==1 here
        wsk = 0.2 * jax.random.normal(next(keys), (inplanes, planes), jnp.float32)
        skip = dict(w=wsk, bn=_make_bn(next(keys), planes))
    else:
        skip = None                                         # identity skip
    return dict(seps=seps, skip=skip)


def prepare_block_params(raw, *, mxu_dtype=jnp.bfloat16):
    """Fold both BNs of every rep (and the skip BN) into the 1x1 weights and
    zero-pad all channel dims up to the lane width."""
    cmax = max(max(sp["wpw"].shape) for sp in raw["seps"])
    cp = _round_up(cmax, _LANE)

    wdw_l, wpw_l, bias_l = [], [], []
    for sp in raw["seps"]:
        cin, cout = sp["wpw"].shape
        s_dw, b_dw = _fold_bn(sp["bn_dw"])                  # (cin,)
        s_pw, b_pw = _fold_bn(sp["bn_pw"])                  # (cout,)
        # (dw*s_dw + b_dw) @ W * s_pw + b_pw  ==  dw @ W' + b'
        wpw_f = (s_dw[:, None] * sp["wpw"]) * s_pw[None, :]
        bias_f = (b_dw @ sp["wpw"]) * s_pw + b_pw
        wdw_l.append(jnp.pad(sp["wdw"], ((0, 0), (0, 0), (0, cp - cin))))
        wpw_l.append(jnp.pad(wpw_f, ((0, cp - cin), (0, cp - cout))))
        bias_l.append(jnp.pad(bias_f, (0, cp - cout)))

    kparams = dict(
        wdw=jnp.stack(wdw_l).astype(jnp.float32),           # (R, 3, 3, Cp)
        wpw=jnp.stack(wpw_l).astype(mxu_dtype),              # (R, Cp, Cp)
        bias=jnp.stack(bias_l)[:, None, :].astype(jnp.float32),  # (R, 1, Cp)
    )
    if raw["skip"] is not None:
        cin, cout = raw["skip"]["w"].shape
        ss, bs = _fold_bn(raw["skip"]["bn"])
        wsk_f = raw["skip"]["w"] * ss[None, :]
        kparams["wsk"] = jnp.pad(
            wsk_f, ((0, cp - cin), (0, cp - cout))).astype(mxu_dtype)
        kparams["bsk"] = jnp.pad(bs, (0, cp - cout))[None, :].astype(jnp.float32)
        skip_is_conv = True
    else:
        kparams["wsk"] = jnp.zeros((cp, cp), mxu_dtype)      # unused
        kparams["bsk"] = jnp.zeros((1, cp), jnp.float32)     # unused
        skip_is_conv = False
    return kparams, skip_is_conv


# ----------------------------------------------------------------------------
# Pure-JAX reference (lax convs), NHWC in / NHWC out
# ----------------------------------------------------------------------------
def ref_block(x_nhwc, raw):
    def bn(x, p):
        g, b, m, v = p
        return (x - m) / jnp.sqrt(v + _EPS) * g + b

    out = x_nhwc
    for sp in raw["seps"]:
        out = jnp.maximum(out, 0.0)
        d = sp["dilation"]
        out = jax.lax.conv_general_dilated(
            out, sp["wdw"].reshape(3, 3, 1, -1),
            window_strides=(1, 1), padding=((d, d), (d, d)),
            rhs_dilation=(d, d),
            dimension_numbers=("NHWC", "HWIO", "NHWC"),
            feature_group_count=out.shape[-1],
            precision=jax.lax.Precision.HIGHEST)
        out = bn(out, sp["bn_dw"])
        out = jnp.einsum("nhwc,cd->nhwd", out, sp["wpw"],
                         precision=jax.lax.Precision.HIGHEST)
        out = bn(out, sp["bn_pw"])
    if raw["skip"] is not None:
        skip = jnp.einsum("nhwc,cd->nhwd", x_nhwc, raw["skip"]["w"],
                          precision=jax.lax.Precision.HIGHEST)
        skip = bn(skip, raw["skip"]["bn"])
    else:
        skip = x_nhwc
    return out + skip


# ----------------------------------------------------------------------------
if __name__ == "__main__":
    N, INPLANES, PLANES, H, W = 2, 4, 8, 16, 16
    REPS, DILATION = 2, 1

    root = jax.random.PRNGKey(0)
    kx, kp = jax.random.split(root)
    x_nchw = jax.random.normal(kx, (N, INPLANES, H, W), jnp.float32)

    raw = build_block_params(kp, INPLANES, PLANES, REPS, DILATION)
    kparams, skip_is_conv = prepare_block_params(raw)

    fwd = jax.jit(functools.partial(block_forward_pallas, dilation=DILATION,
                                    planes=PLANES, skip_is_conv=skip_is_conv))
    out = jax.block_until_ready(fwd(x_nchw, kparams))
    assert out.shape == (N, PLANES, H, W), out.shape

    ref = jnp.transpose(
        ref_block(jnp.transpose(x_nchw, (0, 2, 3, 1)), raw), (0, 3, 1, 2))
    max_err = float(jnp.max(jnp.abs(out - ref)))
    # bf16 MXU operands (f32 accumulation) -> slightly looser tolerance than f32.
    if not jnp.allclose(out, ref, rtol=2e-2, atol=2e-2):
        raise AssertionError(
            f"Pallas output mismatch vs reference, max_err={max_err}")
    print("KERNEL_OK")
</pallas_src>

<mosaic_0001>
module attributes {stable_mosaic.version = 11 : i64} {
  func.func @_block_kernel(%arg0: i32, %arg1: memref<1x16x16x128xf32, #tpu.memory_space<vmem>>, %arg2: memref<2x3x3x128xf32, #tpu.memory_space<vmem>>, %arg3: memref<2x128x128xbf16, #tpu.memory_space<vmem>>, %arg4: memref<2x1x128xf32, #tpu.memory_space<vmem>>, %arg5: memref<128x128xbf16, #tpu.memory_space<vmem>>, %arg6: memref<1x128xf32, #tpu.memory_space<vmem>>, %arg7: memref<1x16x16x128xf32, #tpu.memory_space<vmem>>, %arg8: memref<18x18x128xf32, #tpu.memory_space<vmem>>) attributes {dimension_semantics = [#tpu.dimension_semantics<parallel>], iteration_bounds = array<i64: 2>, scalar_prefetch = 0 : i64, scratch_operands = 1 : i64, tpu.core_type = #tpu.core_type<tc>, window_params = [{transform_indices = @transform_0, window_bounds = array<i64: 1, 16, 16, 128>}, {pipeline_mode = #tpu.pipeline_mode<synchronous>, transform_indices = @transform_1, window_bounds = array<i64: 2, 3, 3, 128>}, {pipeline_mode = #tpu.pipeline_mode<synchronous>, transform_indices = @transform_2, window_bounds = array<i64: 2, 128, 128>}, {pipeline_mode = #tpu.pipeline_mode<synchronous>, transform_indices = @transform_3, window_bounds = array<i64: 2, 1, 128>}, {pipeline_mode = #tpu.pipeline_mode<synchronous>, transform_indices = @transform_4, window_bounds = array<i64: 128, 128>}, {pipeline_mode = #tpu.pipeline_mode<synchronous>, transform_indices = @transform_5, window_bounds = array<i64: 1, 128>}, {transform_indices = @transform_6, window_bounds = array<i64: 1, 16, 16, 128>}]} {
    %cst = arith.constant 0.000000e+00 : f32
    %0 = vector.broadcast %cst : f32 to vector<18x18x128xf32>
    %c0 = arith.constant 0 : index
    %c0_0 = arith.constant 0 : index
    %c0_1 = arith.constant 0 : index
    %1 = vector.load %arg8[%c0, %c0_0, %c0_1] : memref<18x18x128xf32, #tpu.memory_space<vmem>>, vector<18x18x128xf32>
    tpu.vector_store %arg8[%c0, %c0_0, %c0_1], %0 {strides = array<i32>} : memref<18x18x128xf32, #tpu.memory_space<vmem>>, vector<18x18x128xf32>,
    %c0_2 = arith.constant 0 : index
    %c0_3 = arith.constant 0 : index
    %c0_4 = arith.constant 0 : index
    %c0_5 = arith.constant 0 : index
    %2 = vector.load %arg1[%c0_2, %c0_3, %c0_4, %c0_5] : memref<1x16x16x128xf32, #tpu.memory_space<vmem>>, vector<1x16x16x128xf32>
    %3 = vector.shape_cast %2 : vector<1x16x16x128xf32> to vector<16x16x128xf32>
    %cst_6 = arith.constant 0.000000e+00 : f32
    %4 = vector.broadcast %cst_6 : f32 to vector<16x16x128xf32>
    %5 = arith.maximumf %3, %4 : vector<16x16x128xf32>
    %c1 = arith.constant 1 : index
    %c1_7 = arith.constant 1 : index
    %c0_8 = arith.constant 0 : index
    %6 = vector.load %arg8[%c1, %c1_7, %c0_8] : memref<18x18x128xf32, #tpu.memory_space<vmem>>, vector<16x16x128xf32>
    tpu.vector_store %arg8[%c1, %c1_7, %c0_8], %5 {strides = array<i32>} : memref<18x18x128xf32, #tpu.memory_space<vmem>>, vector<16x16x128xf32>,
    %c0_9 = arith.constant 0 : index
    %c0_10 = arith.constant 0 : index
    %c0_11 = arith.constant 0 : index
    %7 = vector.load %arg8[%c0_9, %c0_10, %c0_11] : memref<18x18x128xf32, #tpu.memory_space<vmem>>, vector<18x18x128xf32>
    %c0_12 = arith.constant 0 : index
    %c0_13 = arith.constant 0 : index
    %c0_14 = arith.constant 0 : index
    %c0_15 = arith.constant 0 : index
    %8 = vector.load %arg2[%c0_12, %c0_13, %c0_14, %c0_15] : memref<2x3x3x128xf32, #tpu.memory_space<vmem>>, vector<1x3x3x128xf32>
    %9 = vector.shape_cast %8 : vector<1x3x3x128xf32> to vector<3x3x128xf32>
    %cst_16 = arith.constant 0.000000e+00 : f32
    %10 = vector.broadcast %cst_16 : f32 to vector<16x16x128xf32>
    %11 = vector.extract_strided_slice %7 {offsets = [0, 0, 0], sizes = [18, 16, 128], strides = [1, 1, 1]} : vector<18x18x128xf32> to vector<18x16x128xf32>
    %12 = vector.extract_strided_slice %11 {offsets = [0, 0, 0], sizes = [16, 16, 128], strides = [1, 1, 1]} : vector<18x16x128xf32> to vector<16x16x128xf32>
    %13 = vector.extract_strided_slice %9 {offsets = [0, 0, 0], sizes = [1, 1, 128], strides = [1, 1, 1]} : vector<3x3x128xf32> to vector<1x1x128xf32>
    %14 = vector.shape_cast %13 : vector<1x1x128xf32> to vector<128xf32>
    %15 = vector.shape_cast %14 : vector<128xf32> to vector<1x1x128xf32>
    %16 = vector.broadcast %15 : vector<1x1x128xf32> to vector<16x16x128xf32>
    %17 = arith.mulf %12, %16 : vector<16x16x128xf32>
    %18 = arith.addf %10, %17 : vector<16x16x128xf32>
    %19 = vector.extract_strided_slice %11 {offsets = [1, 0, 0], sizes = [16, 16, 128], strides = [1, 1, 1]} : vector<18x16x128xf32> to vector<16x16x128xf32>
    %20 = vector.extract_strided_slice %9 {offsets = [1, 0, 0], sizes = [1, 1, 128], strides = [1, 1, 1]} : vector<3x3x128xf32> to vector<1x1x128xf32>
    %21 = vector.shape_cast %20 : vector<1x1x128xf32> to vector<128xf32>
    %22 = vector.shape_cast %21 : vector<128xf32> to vector<1x1x128xf32>
    %23 = vector.broadcast %22 : vector<1x1x128xf32> to vector<16x16x128xf32>
    %24 = arith.mulf %19, %23 : vector<16x16x128xf32>
    %25 = arith.addf %18, %24 : vector<16x16x128xf32>
    %26 = vector.extract_strided_slice %11 {offsets = [2, 0, 0], sizes = [16, 16, 128], strides = [1, 1, 1]} : vector<18x16x128xf32> to vector<16x16x128xf32>
    %27 = vector.extract_strided_slice %9 {offsets = [2, 0, 0], sizes = [1, 1, 128], strides = [1, 1, 1]} : vector<3x3x128xf32> to vector<1x1x128xf32>
    %28 = vector.shape_cast %27 : vector<1x1x128xf32> to vector<128xf32>
    %29 = vector.shape_cast %28 : vector<128xf32> to vector<1x1x128xf32>
    %30 = vector.broadcast %29 : vector<1x1x128xf32> to vector<16x16x128xf32>
    %31 = arith.mulf %26, %30 : vector<16x16x128xf32>
    %32 = arith.addf %25, %31 : vector<16x16x128xf32>
    %33 = vector.extract_strided_slice %7 {offsets = [0, 1, 0], sizes = [18, 16, 128], strides = [1, 1, 1]} : vector<18x18x128xf32> to vector<18x16x128xf32>
    %34 = vector.extract_strided_slice %33 {offsets = [0, 0, 0], sizes = [16, 16, 128], strides = [1, 1, 1]} : vector<18x16x128xf32> to vector<16x16x128xf32>
    %35 = vector.extract_strided_slice %9 {offsets = [0, 1, 0], sizes = [1, 1, 128], strides = [1, 1, 1]} : vector<3x3x128xf32> to vector<1x1x128xf32>
    %36 = vector.shape_cast %35 : vector<1x1x128xf32> to vector<128xf32>
    %37 = vector.shape_cast %36 : vector<128xf32> to vector<1x1x128xf32>
    %38 = vector.broadcast %37 : vector<1x1x128xf32> to vector<16x16x128xf32>
    %39 = arith.mulf %34, %38 : vector<16x16x128xf32>
    %40 = arith.addf %32, %39 : vector<16x16x128xf32>
    %41 = vector.extract_strided_slice %33 {offsets = [1, 0, 0], sizes = [16, 16, 128], strides = [1, 1, 1]} : vector<18x16x128xf32> to vector<16x16x128xf32>
    %42 = vector.extract_strided_slice %9 {offsets = [1, 1, 0], sizes = [1, 1, 128], strides = [1, 1, 1]} : vector<3x3x128xf32> to vector<1x1x128xf32>
    %43 = vector.shape_cast %42 : vector<1x1x128xf32> to vector<128xf32>
    %44 = vector.shape_cast %43 : vector<128xf32> to vector<1x1x128xf32>
    %45 = vector.broadcast %44 : vector<1x1x128xf32> to vector<16x16x128xf32>
    %46 = arith.mulf %41, %45 : vector<16x16x128xf32>
    %47 = arith.addf %40, %46 : vector<16x16x128xf32>
    %48 = vector.extract_strided_slice %33 {offsets = [2, 0, 0], sizes = [16, 16, 128], strides = [1, 1, 1]} : vector<18x16x128xf32> to vector<16x16x128xf32>
    %49 = vector.extract_strided_slice %9 {offsets = [2, 1, 0], sizes = [1, 1, 128], strides = [1, 1, 1]} : vector<3x3x128xf32> to vector<1x1x128xf32>
    %50 = vector.shape_cast %49 : vector<1x1x128xf32> to vector<128xf32>
    %51 = vector.shape_cast %50 : vector<128xf32> to vector<1x1x128xf32>
    %52 = vector.broadcast %51 : vector<1x1x128xf32> to vector<16x16x128xf32>
    %53 = arith.mulf %48, %52 : vector<16x16x128xf32>
    %54 = arith.addf %47, %53 : vector<16x16x128xf32>
    %55 = vector.extract_strided_slice %7 {offsets = [0, 2, 0], sizes = [18, 16, 128], strides = [1, 1, 1]} : vector<18x18x128xf32> to vector<18x16x128xf32>
    %56 = vector.extract_strided_slice %55 {offsets = [0, 0, 0], sizes = [16, 16, 128], strides = [1, 1, 1]} : vector<18x16x128xf32> to vector<16x16x128xf32>
    %57 = vector.extract_strided_slice %9 {offsets = [0, 2, 0], sizes = [1, 1, 128], strides = [1, 1, 1]} : vector<3x3x128xf32> to vector<1x1x128xf32>
    %58 = vector.shape_cast %57 : vector<1x1x128xf32> to vector<128xf32>
    %59 = vector.shape_cast %58 : vector<128xf32> to vector<1x1x128xf32>
    %60 = vector.broadcast %59 : vector<1x1x128xf32> to vector<16x16x128xf32>
    %61 = arith.mulf %56, %60 : vector<16x16x128xf32>
    %62 = arith.addf %54, %61 : vector<16x16x128xf32>
    %63 = vector.extract_strided_slice %55 {offsets = [1, 0, 0], sizes = [16, 16, 128], strides = [1, 1, 1]} : vector<18x16x128xf32> to vector<16x16x128xf32>
    %64 = vector.extract_strided_slice %9 {offsets = [1, 2, 0], sizes = [1, 1, 128], strides = [1, 1, 1]} : vector<3x3x128xf32> to vector<1x1x128xf32>
    %65 = vector.shape_cast %64 : vector<1x1x128xf32> to vector<128xf32>
    %66 = vector.shape_cast %65 : vector<128xf32> to vector<1x1x128xf32>
    %67 = vector.broadcast %66 : vector<1x1x128xf32> to vector<16x16x128xf32>
    %68 = arith.mulf %63, %67 : vector<16x16x128xf32>
    %69 = arith.addf %62, %68 : vector<16x16x128xf32>
    %70 = vector.extract_strided_slice %55 {offsets = [2, 0, 0], sizes = [16, 16, 128], strides = [1, 1, 1]} : vector<18x16x128xf32> to vector<16x16x128xf32>
    %71 = vector.extract_strided_slice %9 {offsets = [2, 2, 0], sizes = [1, 1, 128], strides = [1, 1, 1]} : vector<3x3x128xf32> to vector<1x1x128xf32>
    %72 = vector.shape_cast %71 : vector<1x1x128xf32> to vector<128xf32>
    %73 = vector.shape_cast %72 : vector<128xf32> to vector<1x1x128xf32>
    %74 = vector.broadcast %73 : vector<1x1x128xf32> to vector<16x16x128xf32>
    %75 = arith.mulf %70, %74 : vector<16x16x128xf32>
    %76 = arith.addf %69, %75 : vector<16x16x128xf32>
    %77 = vector.shape_cast %76 : vector<16x16x128xf32> to vector<256x128xf32>
    %78 = arith.truncf %77 : vector<256x128xf32> to vector<256x128xbf16>
    %c0_17 = arith.constant 0 : index
    %c0_18 = arith.constant 0 : index
    %c0_19 = arith.constant 0 : index
    %79 = vector.load %arg3[%c0_17, %c0_18, %c0_19] : memref<2x128x128xbf16, #tpu.memory_space<vmem>>, vector<1x128x128xbf16>
    %80 = vector.shape_cast %79 : vector<1x128x128xbf16> to vector<128x128xbf16>
    %cst_20 = arith.constant dense<0.000000e+00> : vector<256x128xf32>
    %81 = tpu.matmul %78, %80, %cst_20 {dimension_numbers = #tpu.dot_dimension_numbers<[1], [0], [0], [1], [0, 0, 1, 1], [], []>} : vector<256x128xbf16>, vector<128x128xbf16>, vector<256x128xf32> -> vector<256x128xf32>
    %c0_21 = arith.constant 0 : index
    %c0_22 = arith.constant 0 : index
    %c0_23 = arith.constant 0 : index
    %82 = vector.load %arg4[%c0_21, %c0_22, %c0_23] : memref<2x1x128xf32, #tpu.memory_space<vmem>>, vector<1x1x128xf32>
    %83 = vector.shape_cast %82 : vector<1x1x128xf32> to vector<1x128xf32>
    %84 = vector.broadcast %83 : vector<1x128xf32> to vector<256x128xf32>
    %85 = arith.addf %81, %84 : vector<256x128xf32>
    %86 = vector.shape_cast %85 : vector<256x128xf32> to vector<16x16x128xf32>
    %cst_24 = arith.constant 0.000000e+00 : f32
    %87 = vector.broadcast %cst_24 : f32 to vector<16x16x128xf32>
    %88 = arith.maximumf %86, %87 : vector<16x16x128xf32>
    %c1_25 = arith.constant 1 : index
    %c1_26 = arith.constant 1 : index
    %c0_27 = arith.constant 0 : index
    %89 = vector.load %arg8[%c1_25, %c1_26, %c0_27] : memref<18x18x128xf32, #tpu.memory_space<vmem>>, vector<16x16x128xf32>
    tpu.vector_store %arg8[%c1_25, %c1_26, %c0_27], %88 {strides = array<i32>} : memref<18x18x128xf32, #tpu.memory_space<vmem>>, vector<16x16x128xf32>,
    %c0_28 = arith.constant 0 : index
    %c0_29 = arith.constant 0 : index
    %c0_30 = arith.constant 0 : index
    %90 = vector.load %arg8[%c0_28, %c0_29, %c0_30] : memref<18x18x128xf32, #tpu.memory_space<vmem>>, vector<18x18x128xf32>
    %c1_31 = arith.constant 1 : index
    %c0_32 = arith.constant 0 : index
    %c0_33 = arith.constant 0 : index
    %c0_34 = arith.constant 0 : index
    %91 = vector.load %arg2[%c1_31, %c0_32, %c0_33, %c0_34] : memref<2x3x3x128xf32, #tpu.memory_space<vmem>>, vector<1x3x3x128xf32>
    %92 = vector.shape_cast %91 : vector<1x3x3x128xf32> to vector<3x3x128xf32>
    %cst_35 = arith.constant 0.000000e+00 : f32
    %93 = vector.broadcast %cst_35 : f32 to vector<16x16x128xf32>
    %94 = vector.extract_strided_slice %90 {offsets = [0, 0, 0], sizes = [18, 16, 128], strides = [1, 1, 1]} : vector<18x18x128xf32> to vector<18x16x128xf32>
    %95 = vector.extract_strided_slice %94 {offsets = [0, 0, 0], sizes = [16, 16, 128], strides = [1, 1, 1]} : vector<18x16x128xf32> to vector<16x16x128xf32>
    %96 = vector.extract_strided_slice %92 {offsets = [0, 0, 0], sizes = [1, 1, 128], strides = [1, 1, 1]} : vector<3x3x128xf32> to vector<1x1x128xf32>
    %97 = vector.shape_cast %96 : vector<1x1x128xf32> to vector<128xf32>
    %98 = vector.shape_cast %97 : vector<128xf32> to vector<1x1x128xf32>
    %99 = vector.broadcast %98 : vector<1x1x128xf32> to vector<16x16x128xf32>
    %100 = arith.mulf %95, %99 : vector<16x16x128xf32>
    %101 = arith.addf %93, %100 : vector<16x16x128xf32>
    %102 = vector.extract_strided_slice %94 {offsets = [1, 0, 0], sizes = [16, 16, 128], strides = [1, 1, 1]} : vector<18x16x128xf32> to vector<16x16x128xf32>
    %103 = vector.extract_strided_slice %92 {offsets = [1, 0, 0], sizes = [1, 1, 128], strides = [1, 1, 1]} : vector<3x3x128xf32> to vector<1x1x128xf32>
    %104 = vector.shape_cast %103 : vector<1x1x128xf32> to vector<128xf32>
    %105 = vector.shape_cast %104 : vector<128xf32> to vector<1x1x128xf32>
    %106 = vector.broadcast %105 : vector<1x1x128xf32> to vector<16x16x128xf32>
    %107 = arith.mulf %102, %106 : vector<16x16x128xf32>
    %108 = arith.addf %101, %107 : vector<16x16x128xf32>
    %109 = vector.extract_strided_slice %94 {offsets = [2, 0, 0], sizes = [16, 16, 128], strides = [1, 1, 1]} : vector<18x16x128xf32> to vector<16x16x128xf32>
    %110 = vector.extract_strided_slice %92 {offsets = [2, 0, 0], sizes = [1, 1, 128], strides = [1, 1, 1]} : vector<3x3x128xf32> to vector<1x1x128xf32>
    %111 = vector.shape_cast %110 : vector<1x1x128xf32> to vector<128xf32>
    %112 = vector.shape_cast %111 : vector<128xf32> to vector<1x1x128xf32>
    %113 = vector.broadcast %112 : vector<1x1x128xf32> to vector<16x16x128xf32>
    %114 = arith.mulf %109, %113 : vector<16x16x128xf32>
    %115 = arith.addf %108, %114 : vector<16x16x128xf32>
    %116 = vector.extract_strided_slice %90 {offsets = [0, 1, 0], sizes = [18, 16, 128], strides = [1, 1, 1]} : vector<18x18x128xf32> to vector<18x16x128xf32>
    %117 = vector.extract_strided_slice %116 {offsets = [0, 0, 0], sizes = [16, 16, 128], strides = [1, 1, 1]} : vector<18x16x128xf32> to vector<16x16x128xf32>
    %118 = vector.extract_strided_slice %92 {offsets = [0, 1, 0], sizes = [1, 1, 128], strides = [1, 1, 1]} : vector<3x3x128xf32> to vector<1x1x128xf32>
    %119 = vector.shape_cast %118 : vector<1x1x128xf32> to vector<128xf32>
    %120 = vector.shape_cast %119 : vector<128xf32> to vector<1x1x128xf32>
    %121 = vector.broadcast %120 : vector<1x1x128xf32> to vector<16x16x128xf32>
    %122 = arith.mulf %117, %121 : vector<16x16x128xf32>
    %123 = arith.addf %115, %122 : vector<16x16x128xf32>
    %124 = vector.extract_strided_slice %116 {offsets = [1, 0, 0], sizes = [16, 16, 128], strides = [1, 1, 1]} : vector<18x16x128xf32> to vector<16x16x128xf32>
    %125 = vector.extract_strided_slice %92 {offsets = [1, 1, 0], sizes = [1, 1, 128], strides = [1, 1, 1]} : vector<3x3x128xf32> to vector<1x1x128xf32>
    %126 = vector.shape_cast %125 : vector<1x1x128xf32> to vector<128xf32>
    %127 = vector.shape_cast %126 : vector<128xf32> to vector<1x1x128xf32>
    %128 = vector.broadcast %127 : vector<1x1x128xf32> to vector<16x16x128xf32>
    %129 = arith.mulf %124, %128 : vector<16x16x128xf32>
    %130 = arith.addf %123, %129 : vector<16x16x128xf32>
    %131 = vector.extract_strided_slice %116 {offsets = [2, 0, 0], sizes = [16, 16, 128], strides = [1, 1, 1]} : vector<18x16x128xf32> to vector<16x16x128xf32>
    %132 = vector.extract_strided_slice %92 {offsets = [2, 1, 0], sizes = [1, 1, 128], strides = [1, 1, 1]} : vector<3x3x128xf32> to vector<1x1x128xf32>
    %133 = vector.shape_cast %132 : vector<1x1x128xf32> to vector<128xf32>
    %134 = vector.shape_cast %133 : vector<128xf32> to vector<1x1x128xf32>
    %135 = vector.broadcast %134 : vector<1x1x128xf32> to vector<16x16x128xf32>
    %136 = arith.mulf %131, %135 : vector<16x16x128xf32>
    %137 = arith.addf %130, %136 : vector<16x16x128xf32>
    %138 = vector.extract_strided_slice %90 {offsets = [0, 2, 0], sizes = [18, 16, 128], strides = [1, 1, 1]} : vector<18x18x128xf32> to vector<18x16x128xf32>
    %139 = vector.extract_strided_slice %138 {offsets = [0, 0, 0], sizes = [16, 16, 128], strides = [1, 1, 1]} : vector<18x16x128xf32> to vector<16x16x128xf32>
    %140 = vector.extract_strided_slice %92 {offsets = [0, 2, 0], sizes = [1, 1, 128], strides = [1, 1, 1]} : vector<3x3x128xf32> to vector<1x1x128xf32>
    %141 = vector.shape_cast %140 : vector<1x1x128xf32> to vector<128xf32>
    %142 = vector.shape_cast %141 : vector<128xf32> to vector<1x1x128xf32>
    %143 = vector.broadcast %142 : vector<1x1x128xf32> to vector<16x16x128xf32>
    %144 = arith.mulf %139, %143 : vector<16x16x128xf32>
    %145 = arith.addf %137, %144 : vector<16x16x128xf32>
    %146 = vector.extract_strided_slice %138 {offsets = [1, 0, 0], sizes = [16, 16, 128], strides = [1, 1, 1]} : vector<18x16x128xf32> to vector<16x16x128xf32>
    %147 = vector.extract_strided_slice %92 {offsets = [1, 2, 0], sizes = [1, 1, 128], strides = [1, 1, 1]} : vector<3x3x128xf32> to vector<1x1x128xf32>
    %148 = vector.shape_cast %147 : vector<1x1x128xf32> to vector<128xf32>
    %149 = vector.shape_cast %148 : vector<128xf32> to vector<1x1x128xf32>
    %150 = vector.broadcast %149 : vector<1x1x128xf32> to vector<16x16x128xf32>
    %151 = arith.mulf %146, %150 : vector<16x16x128xf32>
    %152 = arith.addf %145, %151 : vector<16x16x128xf32>
    %153 = vector.extract_strided_slice %138 {offsets = [2, 0, 0], sizes = [16, 16, 128], strides = [1, 1, 1]} : vector<18x16x128xf32> to vector<16x16x128xf32>
    %154 = vector.extract_strided_slice %92 {offsets = [2, 2, 0], sizes = [1, 1, 128], strides = [1, 1, 1]} : vector<3x3x128xf32> to vector<1x1x128xf32>
    %155 = vector.shape_cast %154 : vector<1x1x128xf32> to vector<128xf32>
    %156 = vector.shape_cast %155 : vector<128xf32> to vector<1x1x128xf32>
    %157 = vector.broadcast %156 : vector<1x1x128xf32> to vector<16x16x128xf32>
    %158 = arith.mulf %153, %157 : vector<16x16x128xf32>
    %159 = arith.addf %152, %158 : vector<16x16x128xf32>
    %160 = vector.shape_cast %159 : vector<16x16x128xf32> to vector<256x128xf32>
    %161 = arith.truncf %160 : vector<256x128xf32> to vector<256x128xbf16>
    %c1_36 = arith.constant 1 : index
    %c0_37 = arith.constant 0 : index
    %c0_38 = arith.constant 0 : index
    %162 = vector.load %arg3[%c1_36, %c0_37, %c0_38] : memref<2x128x128xbf16, #tpu.memory_space<vmem>>, vector<1x128x128xbf16>
    %163 = vector.shape_cast %162 : vector<1x128x128xbf16> to vector<128x128xbf16>
    %cst_39 = arith.constant dense<0.000000e+00> : vector<256x128xf32>
    %164 = tpu.matmul %161, %163, %cst_39 {dimension_numbers = #tpu.dot_dimension_numbers<[1], [0], [0], [1], [0, 0, 1, 1], [], []>} : vector<256x128xbf16>, vector<128x128xbf16>, vector<256x128xf32> -> vector<256x128xf32>
    %c1_40 = arith.constant 1 : index
    %c0_41 = arith.constant 0 : index
    %c0_42 = arith.constant 0 : index
    %165 = vector.load %arg4[%c1_40, %c0_41, %c0_42] : memref<2x1x128xf32, #tpu.memory_space<vmem>>, vector<1x1x128xf32>
    %166 = vector.shape_cast %165 : vector<1x1x128xf32> to vector<1x128xf32>
    %167 = vector.broadcast %166 : vector<1x128xf32> to vector<256x128xf32>
    %168 = arith.addf %164, %167 : vector<256x128xf32>
    %169 = vector.shape_cast %168 : vector<256x128xf32> to vector<16x16x128xf32>
    %170 = vector.shape_cast %169 : vector<16x16x128xf32> to vector<256x128xf32>
    %171 = vector.shape_cast %3 : vector<16x16x128xf32> to vector<256x128xf32>
    %172 = arith.truncf %171 : vector<256x128xf32> to vector<256x128xbf16>
    %c0_43 = arith.constant 0 : index
    %c0_44 = arith.constant 0 : index
    %173 = vector.load %arg5[%c0_43, %c0_44] : memref<128x128xbf16, #tpu.memory_space<vmem>>, vector<128x128xbf16>
    %cst_45 = arith.constant dense<0.000000e+00> : vector<256x128xf32>
    %174 = tpu.matmul %172, %173, %cst_45 {dimension_numbers = #tpu.dot_dimension_numbers<[1], [0], [0], [1], [0, 0, 1, 1], [], []>} : vector<256x128xbf16>, vector<128x128xbf16>, vector<256x128xf32> -> vector<256x128xf32>
    %175 = arith.addf %170, %174 : vector<256x128xf32>
    %c0_46 = arith.constant 0 : index
    %c0_47 = arith.constant 0 : index
    %176 = vector.load %arg6[%c0_46, %c0_47] : memref<1x128xf32, #tpu.memory_space<vmem>>, vector<1x128xf32>
    %177 = vector.broadcast %176 : vector<1x128xf32> to vector<256x128xf32>
    %178 = arith.addf %175, %177 : vector<256x128xf32>
    %179 = vector.shape_cast %178 : vector<256x128xf32> to vector<16x16x128xf32>
    %c0_48 = arith.constant 0 : index
    %c0_49 = arith.constant 0 : index
    %c0_50 = arith.constant 0 : index
    %c0_51 = arith.constant 0 : index
    %180 = vector.load %arg7[%c0_48, %c0_49, %c0_50, %c0_51] : memref<1x16x16x128xf32, #tpu.memory_space<vmem>>, vector<1x16x16x128xf32>
    %181 = vector.shape_cast %180 : vector<1x16x16x128xf32> to vector<16x16x128xf32>
    %182 = vector.shape_cast %179 : vector<16x16x128xf32> to vector<1x16x16x128xf32>
    tpu.vector_store %arg7[%c0_48, %c0_49, %c0_50, %c0_51], %182 {strides = array<i32>} : memref<1x16x16x128xf32, #tpu.memory_space<vmem>>, vector<1x16x16x128xf32>,
    return
  }
  func.func @transform_0(%arg0: i32) -> (i32, i32, i32, i32) {
    %c0_i32 = arith.constant 0 : i32
    %c0_i32_0 = arith.constant 0 : i32
    %c0_i32_1 = arith.constant 0 : i32
    %c0_i32_2 = arith.constant 0 : i32
    return %arg0, %c0_i32, %c0_i32_0, %c0_i32_1 : i32, i32, i32, i32
  }
  func.func @transform_1(%arg0: i32) -> (i32, i32, i32, i32) {
    %c0_i32 = arith.constant 0 : i32
    %c0_i32_0 = arith.constant 0 : i32
    %c0_i32_1 = arith.constant 0 : i32
    %c0_i32_2 = arith.constant 0 : i32
    %c0_i32_3 = arith.constant 0 : i32
    return %c0_i32, %c0_i32_0, %c0_i32_1, %c0_i32_2 : i32, i32, i32, i32
  }
  func.func @transform_2(%arg0: i32) -> (i32, i32, i32) {
    %c0_i32 = arith.constant 0 : i32
    %c0_i32_0 = arith.constant 0 : i32
    %c0_i32_1 = arith.constant 0 : i32
    %c0_i32_2 = arith.constant 0 : i32
    return %c0_i32, %c0_i32_0, %c0_i32_1 : i32, i32, i32
  }
  func.func @transform_3(%arg0: i32) -> (i32, i32, i32) {
    %c0_i32 = arith.constant 0 : i32
    %c0_i32_0 = arith.constant 0 : i32
    %c0_i32_1 = arith.constant 0 : i32
    %c0_i32_2 = arith.constant 0 : i32
    return %c0_i32, %c0_i32_0, %c0_i32_1 : i32, i32, i32
  }
  func.func @transform_4(%arg0: i32) -> (i32, i32) {
    %c0_i32 = arith.constant 0 : i32
    %c0_i32_0 = arith.constant 0 : i32
    %c0_i32_1 = arith.constant 0 : i32
    return %c0_i32, %c0_i32_0 : i32, i32
  }
  func.func @transform_5(%arg0: i32) -> (i32, i32) {
    %c0_i32 = arith.constant 0 : i32
    %c0_i32_0 = arith.constant 0 : i32
    %c0_i32_1 = arith.constant 0 : i32
    return %c0_i32, %c0_i32_0 : i32, i32
  }
  func.func @transform_6(%arg0: i32) -> (i32, i32, i32, i32) {
    %c0_i32 = arith.constant 0 : i32
    %c0_i32_0 = arith.constant 0 : i32
    %c0_i32_1 = arith.constant 0 : i32
    %c0_i32_2 = arith.constant 0 : i32
    return %arg0, %c0_i32, %c0_i32_0, %c0_i32_1 : i32, i32, i32, i32
  }
}

</mosaic_0001>

<llo_original>
// kernel: block_forward_pallas.1
$region0: #{block_forward_pallas.1}
  #allocation0 [shape = 'u32[]', space=smem, size = 0x4, offset = 0x4, fixed_abs, tag = 'smem constant byte address 0x4 - core index']
  #allocation1 [shape = 'u32[144,128]{1,0:T(1,128)}', space=vmem, size = 0x12000, scoped, tag = 'internal scratch']
  #allocation2 [shape = 'f32[18,18,128]{2,1,0:T(8,128)}', space=vmem, size = 0x36000, scoped, tag = 'scratch operand']
  %s0 = inlined_call_operand.vmem [shape: f32[2,16,16,128], index: 0, kind: input, shape index: {}]
  %s1 = inlined_call_operand.vmem [shape: f32[2,3,3,128], index: 1, kind: input, shape index: {}]
  %s2 = inlined_call_operand.vmem [shape: bf16[2,128,128], index: 2, kind: input, shape index: {}]
  %s3 = inlined_call_operand.vmem [shape: f32[2,1,128], index: 3, kind: input, shape index: {}]
  %s4 = inlined_call_operand.vmem [shape: bf16[128,128], index: 4, kind: input, shape index: {}]
  %s5 = inlined_call_operand.vmem [shape: f32[1,128], index: 5, kind: input, shape index: {}]
  %s6 = inlined_call_operand.vmem [shape: f32[2,16,16,128], index: 6, kind: output, shape index: {}]
  %s7 = sld [smem:[#allocation0]]
  $region57: #{block_forward_pallas.1} parent=0
    _
  %s9 = ssub.s32 1, %s7
  %s10 = scalar_select 0, %s9, %s7
  loop: start=0, step=1, limit=4
  $region2: #{block_forward_pallas.1} parent=0 // loop_pre_header
    _
  $region3: #{block_forward_pallas.1} parent=0 // loop_header
    %s12 = sphi 0, %s16
    %p13 = scmp.ge.s32.totalorder %s12, 4
    %s22 = sphi 0, %s24
    %s25 = sphi 0, %s22
    %s26 = sphi 0, %s25
    %s42 = sphi 0, %s26
    %s46 = sphi 0, %s46
    %s48 = sphi 0, %s46
    %s49 = sphi 0, %s48
    %s63 = sphi 0, %s49
    %s67 = sphi 0, %s67
    %s69 = sphi 0, %s67
    %s70 = sphi 0, %s69
    %s84 = sphi 0, %s70
    %s88 = sphi 0, %s88
    %s90 = sphi 0, %s88
    %s91 = sphi 0, %s90
    %s105 = sphi 0, %s91
    %s109 = sphi 0, %s109
    %s111 = sphi 0, %s109
    %s112 = sphi 0, %s111
    %s126 = sphi 0, %s112
    %s130 = sphi 0, %s130
    %s132 = sphi 0, %s130
    %s133 = sphi 0, %s132
    %s147 = sphi 0, %s133
    %s153 = sphi 0, %s155
    %s156 = sphi 0, %s153
    %s157 = sphi 0, %s156
    %s173 = sphi 0, %s157
  $region4: #{block_forward_pallas.1} parent=0 // loop_header_branch
    %15 = sbr.rel (%p13) target = $region8
  $region5: #{block_forward_pallas.1} parent=0 // loop_body
    %s17 = ssub.s32 %s12, 1
    %s18 = ssub.s32 %s12, 2
    %s19 = sadd.s32 %s12, 1
    %s20 = ssub.s32 %s12, %s19
    %p21 = scmp.eq.s32.totalorder %s20, 0
    %s23 = sadd.s32 %s22, 1
    %s24 = scalar_select %p21, %s22, %s23
    %p27 = pneg %p21
    %p28 = scmp.eq.s32.totalorder %s12, 1
    %p29 = por %p27, %p28
    %p30 = scmp.ne.s32.totalorder %s22, %s25
    %p31 = scmp.eq.s32.totalorder %s12, 0
    %p32 = por %p30, %p31
    %p33 = scmp.ne.s32.totalorder %s22, %s25
    %p34 = scmp.eq.s32.totalorder %s17, 1
    %p35 = por %p33, %p34
    %p36 = scmp.ne.s32.totalorder %s25, %s26
    %p37 = scmp.eq.s32.totalorder %s17, 0
    %p38 = por %p36, %p37
    %p39 = scmp.ne.s32.totalorder %s25, %s26
    %p40 = scmp.eq.s32.totalorder %s18, 1
    %p41 = por %p39, %p40
    %p43 = scmp.ne.s32.totalorder %s26, %s42
    %p44 = scmp.eq.s32.totalorder %s18, 0
    %p45 = por %p43, %p44
    %s47 = sadd.s32 %s46, 1
    %p50 = scmp.eq.s32.totalorder %s12, 1
    %p51 = scmp.ne.s32.totalorder %s46, %s48
    %p52 = scmp.eq.s32.totalorder %s12, 0
    %p53 = por %p51, %p52
    %p54 = scmp.ne.s32.totalorder %s46, %s48
    %p55 = scmp.eq.s32.totalorder %s17, 1
    %p56 = por %p54, %p55
    %p57 = scmp.ne.s32.totalorder %s48, %s49
    %p58 = scmp.eq.s32.totalorder %s17, 0
    %p59 = por %p57, %p58
    %p60 = scmp.ne.s32.totalorder %s48, %s49
    %p61 = scmp.eq.s32.totalorder %s18, 1
    %p62 = por %p60, %p61
    %p64 = scmp.ne.s32.totalorder %s49, %s63
    %p65 = scmp.eq.s32.totalorder %s18, 0
    %p66 = por %p64, %p65
    %s68 = sadd.s32 %s67, 1
    %p71 = scmp.eq.s32.totalorder %s12, 1
    %p72 = scmp.ne.s32.totalorder %s67, %s69
    %p73 = scmp.eq.s32.totalorder %s12, 0
    %p74 = por %p72, %p73
    %p75 = scmp.ne.s32.totalorder %s67, %s69
    %p76 = scmp.eq.s32.totalorder %s17, 1
    %p77 = por %p75, %p76
    %p78 = scmp.ne.s32.totalorder %s69, %s70
    %p79 = scmp.eq.s32.totalorder %s17, 0
    %p80 = por %p78, %p79
    %p81 = scmp.ne.s32.totalorder %s69, %s70
    %p82 = scmp.eq.s32.totalorder %s18, 1
    %p83 = por %p81, %p82
    %p85 = scmp.ne.s32.totalorder %s70, %s84
    %p86 = scmp.eq.s32.totalorder %s18, 0
    %p87 = por %p85, %p86
    %s89 = sadd.s32 %s88, 1
    %p92 = scmp.eq.s32.totalorder %s12, 1
    %p93 = scmp.ne.s32.totalorder %s88, %s90
    %p94 = scmp.eq.s32.totalorder %s12, 0
    %p95 = por %p93, %p94
    %p96 = scmp.ne.s32.totalorder %s88, %s90
    %p97 = scmp.eq.s32.totalorder %s17, 1
    %p98 = por %p96, %p97
    %p99 = scmp.ne.s32.totalorder %s90, %s91
    %p100 = scmp.eq.s32.totalorder %s17, 0
    %p101 = por %p99, %p100
    %p102 = scmp.ne.s32.totalorder %s90, %s91
    %p103 = scmp.eq.s32.totalorder %s18, 1
    %p104 = por %p102, %p103
    %p106 = scmp.ne.s32.totalorder %s91, %s105
    %p107 = scmp.eq.s32.totalorder %s18, 0
    %p108 = por %p106, %p107
    %s110 = sadd.s32 %s109, 1
    %p113 = scmp.eq.s32.totalorder %s12, 1
    %p114 = scmp.ne.s32.totalorder %s109, %s111
    %p115 = scmp.eq.s32.totalorder %s12, 0
    %p116 = por %p114, %p115
    %p117 = scmp.ne.s32.totalorder %s109, %s111
    %p118 = scmp.eq.s32.totalorder %s17, 1
    %p119 = por %p117, %p118
    %p120 = scmp.ne.s32.totalorder %s111, %s112
    %p121 = scmp.eq.s32.totalorder %s17, 0
    %p122 = por %p120, %p121
    %p123 = scmp.ne.s32.totalorder %s111, %s112
    %p124 = scmp.eq.s32.totalorder %s18, 1
    %p125 = por %p123, %p124
    %p127 = scmp.ne.s32.totalorder %s112, %s126
    %p128 = scmp.eq.s32.totalorder %s18, 0
    %p129 = por %p127, %p128
    %s131 = sadd.s32 %s130, 1
    %p134 = scmp.eq.s32.totalorder %s12, 1
    %p135 = scmp.ne.s32.totalorder %s130, %s132
    %p136 = scmp.eq.s32.totalorder %s12, 0
    %p137 = por %p135, %p136
    %p138 = scmp.ne.s32.totalorder %s130, %s132
    %p139 = scmp.eq.s32.totalorder %s17, 1
    %p140 = por %p138, %p139
    %p141 = scmp.ne.s32.totalorder %s132, %s133
    %p142 = scmp.eq.s32.totalorder %s17, 0
    %p143 = por %p141, %p142
    %p144 = scmp.ne.s32.totalorder %s132, %s133
    %p145 = scmp.eq.s32.totalorder %s18, 1
    %p146 = por %p144, %p145
    %p148 = scmp.ne.s32.totalorder %s133, %s147
    %p149 = scmp.eq.s32.totalorder %s18, 0
    %p150 = por %p148, %p149
    %s151 = ssub.s32 %s12, %s19
    %p152 = scmp.eq.s32.totalorder %s151, 0
    %s154 = sadd.s32 %s153, 1
    %s155 = scalar_select %p152, %s153, %s154
    %p158 = pneg %p152
    %p159 = scmp.eq.s32.totalorder %s12, 1
    %p160 = por %p158, %p159
    %p161 = scmp.ne.s32.totalorder %s153, %s156
    %p162 = scmp.eq.s32.totalorder %s12, 0
    %p163 = por %p161, %p162
    %p164 = scmp.ne.s32.totalorder %s153, %s156
    %p165 = scmp.eq.s32.totalorder %s17, 1
    %p166 = por %p164, %p165
    %p167 = scmp.ne.s32.totalorder %s156, %s157
    %p168 = scmp.eq.s32.totalorder %s17, 0
    %p169 = por %p167, %p168
    %p170 = scmp.ne.s32.totalorder %s156, %s157
    %p171 = scmp.eq.s32.totalorder %s18, 1
    %p172 = por %p170, %p171
    %p174 = scmp.ne.s32.totalorder %s157, %s173
    %p175 = scmp.eq.s32.totalorder %s18, 0
    %p176 = por %p174, %p175
    %p177 = scmp.le.s32.totalorder 1, %s12
    %p178 = scmp.lt.s32.totalorder %s12, 3
    %p179 = pnand %p177, %p178
    %p180 = pneg %p179
    // Predicated region
    $region9: #{block_forward_pallas.1} parent=5 // pred_check
      _
    $region10: #{block_forward_pallas.1} parent=5 // pred_check_branch
      %182 = sbr.rel (%p179) target = $region12
    $region11: #{block_forward_pallas.1} parent=5 // pred_region
      %s183 = ssub.s32 %s12, 1
      // Predicated region
      $region13: #{block_forward_pallas.1} parent=11 // pred_check
        %p184 = pneg %p59
      $region14: #{block_forward_pallas.1} parent=11 // pred_check_branch
        %186 = sbr.rel (%p184) target = $region16
      $region15: #{block_forward_pallas.1} parent=11 // pred_region
        _
      $region16: #{block_forward_pallas.1} parent=11 // pred_fallthru
        _
      // Predicated region
      $region17: #{block_forward_pallas.1} parent=11 // pred_check
        %p187 = pneg %p80
      $region18: #{block_forward_pallas.1} parent=11 // pred_check_branch
        %189 = sbr.rel (%p187) target = $region20
      $region19: #{block_forward_pallas.1} parent=11 // pred_region
        _
      $region20: #{block_forward_pallas.1} parent=11 // pred_fallthru
        _
      // Predicated region
      $region21: #{block_forward_pallas.1} parent=11 // pred_check
        %p190 = pneg %p101
      $region22: #{block_forward_pallas.1} parent=11 // pred_check_branch
        %192 = sbr.rel (%p190) target = $region24
      $region23: #{block_forward_pallas.1} parent=11 // pred_region
        _
      $region24: #{block_forward_pallas.1} parent=11 // pred_fallthru
        _
      // Predicated region
      $region25: #{block_forward_pallas.1} parent=11 // pred_check
        %p193 = pneg %p122
      $region26: #{block_forward_pallas.1} parent=11 // pred_check_branch
        %195 = sbr.rel (%p193) target = $region28
      $region27: #{block_forward_pallas.1} parent=11 // pred_region
        _
      $region28: #{block_forward_pallas.1} parent=11 // pred_fallthru
        _
      // Predicated region
      $region29: #{block_forward_pallas.1} parent=11 // pred_check
        %p196 = pneg %p143
      $region30: #{block_forward_pallas.1} parent=11 // pred_check_branch
        %198 = sbr.rel (%p196) target = $region32
      $region31: #{block_forward_pallas.1} parent=11 // pred_region
        _
      $region32: #{block_forward_pallas.1} parent=11 // pred_fallthru
        _
    $region12: #{block_forward_pallas.1} parent=5 // pred_fallthru
      _
    %p199 = scmp.lt.s32.totalorder %s12, 2
    // Predicated region
    $region33: #{block_forward_pallas.1} parent=5 // pred_check
      %p200 = pneg %p199
    $region34: #{block_forward_pallas.1} parent=5 // pred_check_branch
      %202 = sbr.rel (%p200) target = $region36
    $region35: #{block_forward_pallas.1} parent=5 // pred_region
      // Predicated region
      $region37: #{block_forward_pallas.1} parent=35 // pred_check
        %p203 = pneg %p32
      $region38: #{block_forward_pallas.1} parent=35 // pred_check_branch
        %205 = sbr.rel (%p203) target = $region40
      $region39: #{block_forward_pallas.1} parent=35 // pred_region
        %p206 = scmp.lt.s32.totalorder %s12, 1
        %s207 = scalar_select %p206, %s12, 1
        %s208 = smul.addr %s207, 32
        %s209 = smul.addr %s208, 8
        %s210 = scalar_lea.vmem %s0, %s209
      $region40: #{block_forward_pallas.1} parent=35 // pred_fallthru
        _
    $region36: #{block_forward_pallas.1} parent=5 // pred_fallthru
      _
    %p211 = scmp.le.s32.totalorder 1, %s12
    %p212 = scmp.lt.s32.totalorder %s12, 3
    %p213 = pnand %p211, %p212
    %p214 = pneg %p213
    // Predicated region
    $region41: #{block_forward_pallas.1} parent=5 // pred_check
      _
    $region42: #{block_forward_pallas.1} parent=5 // pred_check_branch
      %216 = sbr.rel (%p213) target = $region44
    $region43: #{block_forward_pallas.1} parent=5 // pred_region
      %s217 = ssub.s32 %s12, 1
      %p218 = scmp.lt.s32.totalorder %s17, 1
      %s219 = scalar_select %p218, %s17, 1
      %s220 = smul.addr %s219, 32
      %s221 = smul.addr %s220, 8
      %s222 = scalar_lea.vmem %s0, %s221
      %p223 = pneg %p38
      %p224 = pneg %p35
      %p225 = pneg %p59
      %p226 = pneg %p56
      %p227 = pneg %p80
      %p228 = pneg %p77
      %p229 = pneg %p101
      %p230 = pneg %p98
      %p231 = pneg %p122
      %p232 = pneg %p119
      %p233 = pneg %p143
      %p234 = pneg %p140
      %p235 = pneg %p169
      %p236 = pneg %p166
      %p237 = scmp.lt.s32.totalorder %s17, 1
      %s238 = scalar_select %p237, %s17, 1
      %s239 = smul.addr %s238, 32
      %s240 = smul.addr %s239, 8
      %s241 = scalar_lea.vmem %s6, %s240
      %p242 = scmp.lt.s32.totalorder %s17, 1
      %s243 = scalar_select %p242, %s17, 1
      %s244 = smul.addr %s243, 32
      %s245 = smul.addr %s244, 8
      %s246 = scalar_lea.vmem %s0, %s245
      %p247 = scmp.lt.s32.totalorder %s17, 1
      %s248 = scalar_select %p247, %s17, 1
      %s249 = smul.addr %s248, 32
      %s250 = smul.addr %s249, 8
      %s251 = scalar_lea.vmem %s6, %s250
      %253 = vst [vmem:[#allocation2] sm:$0xff] 0.0
      %254 = vst [vmem:[#allocation2 + $0x8] sm:$0xff] 0.0
      %255 = vst [vmem:[#allocation2 + $0x10] sm:$0x3] 0.0
      %256 = vst [vmem:[#allocation2 + $0x18] sm:$0xff] 0.0
      %257 = vst [vmem:[#allocation2 + $0x20] sm:$0xff] 0.0
      %258 = vst [vmem:[#allocation2 + $0x28] sm:$0x3] 0.0
      %259 = vst [vmem:[#allocation2 + $0x30] sm:$0xff] 0.0
      %260 = vst [vmem:[#allocation2 + $0x38] sm:$0xff] 0.0
      %261 = vst [vmem:[#allocation2 + $0x40] sm:$0x3] 0.0
      %262 = vst [vmem:[#allocation2 + $0x48] sm:$0xff] 0.0
      %263 = vst [vmem:[#allocation2 + $0x50] sm:$0xff] 0.0
      %264 = vst [vmem:[#allocation2 + $0x58] sm:$0x3] 0.0
      %265 = vst [vmem:[#allocation2 + $0x60] sm:$0xff] 0.0
      %266 = vst [vmem:[#allocation2 + $0x68] sm:$0xff] 0.0
      %267 = vst [vmem:[#allocation2 + $0x70] sm:$0x3] 0.0
      %268 = vst [vmem:[#allocation2 + $0x78] sm:$0xff] 0.0
      %269 = vst [vmem:[#allocation2 + $0x80] sm:$0xff] 0.0
      %270 = vst [vmem:[#allocation2 + $0x88] sm:$0x3] 0.0
      %271 = vst [vmem:[#allocation2 + $0x90] sm:$0xff] 0.0
      %272 = vst [vmem:[#allocation2 + $0x98] sm:$0xff] 0.0
      %273 = vst [vmem:[#allocation2 + $0xa0] sm:$0x3] 0.0
      %274 = vst [vmem:[#allocation2 + $0xa8] sm:$0xff] 0.0
      %275 = vst [vmem:[#allocation2 + $0xb0] sm:$0xff] 0.0
      %276 = vst [vmem:[#allocation2 + $0xb8] sm:$0x3] 0.0
      %277 = vst [vmem:[#allocation2 + $0xc0] sm:$0xff] 0.0
      %278 = vst [vmem:[#allocation2 + $0xc8] sm:$0xff] 0.0
      %279 = vst [vmem:[#allocation2 + $0xd0] sm:$0x3] 0.0
      %280 = vst [vmem:[#allocation2 + $0xd8] sm:$0xff] 0.0
      %281 = vst [vmem:[#allocation2 + $0xe0] sm:$0xff] 0.0
      %282 = vst [vmem:[#allocation2 + $0xe8] sm:$0x3] 0.0
      %283 = vst [vmem:[#allocation2 + $0xf0] sm:$0xff] 0.0
      %284 = vst [vmem:[#allocation2 + $0xf8] sm:$0xff] 0.0
      %285 = vst [vmem:[#allocation2 + $0x100] sm:$0x3] 0.0
      %286 = vst [vmem:[#allocation2 + $0x108] sm:$0xff] 0.0
      %287 = vst [vmem:[#allocation2 + $0x110] sm:$0xff] 0.0
      %288 = vst [vmem:[#allocation2 + $0x118] sm:$0x3] 0.0
      %289 = vst [vmem:[#allocation2 + $0x120] sm:$0xff] 0.0
      %290 = vst [vmem:[#allocation2 + $0x128] sm:$0xff] 0.0
      %291 = vst [vmem:[#allocation2 + $0x130] sm:$0x3] 0.0
      %292 = vst [vmem:[#allocation2 + $0x138] sm:$0xff] 0.0
      %293 = vst [vmem:[#allocation2 + $0x140] sm:$0xff] 0.0
      %294 = vst [vmem:[#allocation2 + $0x148] sm:$0x3] 0.0
      %295 = vst [vmem:[#allocation2 + $0x150] sm:$0xff] 0.0
      %296 = vst [vmem:[#allocation2 + $0x158] sm:$0xff] 0.0
      %297 = vst [vmem:[#allocation2 + $0x160] sm:$0x3] 0.0
      %298 = vst [vmem:[#allocation2 + $0x168] sm:$0xff] 0.0
      %299 = vst [vmem:[#allocation2 + $0x170] sm:$0xff] 0.0
      %300 = vst [vmem:[#allocation2 + $0x178] sm:$0x3] 0.0
      %301 = vst [vmem:[#allocation2 + $0x180] sm:$0xff] 0.0
      %302 = vst [vmem:[#allocation2 + $0x188] sm:$0xff] 0.0
      %303 = vst [vmem:[#allocation2 + $0x190] sm:$0x3] 0.0
      %304 = vst [vmem:[#allocation2 + $0x198] sm:$0xff] 0.0
      %305 = vst [vmem:[#allocation2 + $0x1a0] sm:$0xff] 0.0
      %306 = vst [vmem:[#allocation2 + $0x1a8] sm:$0x3] 0.0
      %v307 = vld [vmem:[%s246] sm:$0xff]
      %v308 = vld [vmem:[%s246 + $0x8] sm:$0xff]
      %v309 = vld [vmem:[%s246 + $0x10] sm:$0xff]
      %v310 = vld [vmem:[%s246 + $0x18] sm:$0xff]
      %v311 = vld [vmem:[%s246 + $0x20] sm:$0xff]
      %v312 = vld [vmem:[%s246 + $0x28] sm:$0xff]
      %v313 = vld [vmem:[%s246 + $0x30] sm:$0xff]
      %v314 = vld [vmem:[%s246 + $0x38] sm:$0xff]
      %v315 = vld [vmem:[%s246 + $0x40] sm:$0xff]
      %v316 = vld [vmem:[%s246 + $0x48] sm:$0xff]
      %v317 = vld [vmem:[%s246 + $0x50] sm:$0xff]
      %v318 = vld [vmem:[%s246 + $0x58] sm:$0xff]
      %v319 = vld [vmem:[%s246 + $0x60] sm:$0xff]
      %v320 = vld [vmem:[%s246 + $0x68] sm:$0xff]
      %v321 = vld [vmem:[%s246 + $0x70] sm:$0xff]
      %v322 = vld [vmem:[%s246 + $0x78] sm:$0xff]
      %v323 = vld [vmem:[%s246 + $0x80] sm:$0xff]
      %v324 = vld [vmem:[%s246 + $0x88] sm:$0xff]
      %v325 = vld [vmem:[%s246 + $0x90] sm:$0xff]
      %v326 = vld [vmem:[%s246 + $0x98] sm:$0xff]
      %v327 = vld [vmem:[%s246 + $0xa0] sm:$0xff]
      %v328 = vld [vmem:[%s246 + $0xa8] sm:$0xff]
      %v329 = vld [vmem:[%s246 + $0xb0] sm:$0xff]
      %v330 = vld [vmem:[%s246 + $0xb8] sm:$0xff]
      %v331 = vld [vmem:[%s246 + $0xc0] sm:$0xff]
      %v332 = vld [vmem:[%s246 + $0xc8] sm:$0xff]
      %v333 = vld [vmem:[%s246 + $0xd0] sm:$0xff]
      %v334 = vld [vmem:[%s246 + $0xd8] sm:$0xff]
      %v335 = vld [vmem:[%s246 + $0xe0] sm:$0xff]
      %v336 = vld [vmem:[%s246 + $0xe8] sm:$0xff]
      %v337 = vld [vmem:[%s246 + $0xf0] sm:$0xff]
      %v338 = vld [vmem:[%s246 + $0xf8] sm:$0xff]
      %v339 = vmax.f32 %v307, 0.0
      %v340 = vmax.f32 %v308, 0.0
      %v341 = vmax.f32 %v309, 0.0
      %v342 = vmax.f32 %v310, 0.0
      %v343 = vmax.f32 %v311, 0.0
      %v344 = vmax.f32 %v312, 0.0
      %v345 = vmax.f32 %v313, 0.0
      %v346 = vmax.f32 %v314, 0.0
      %v347 = vmax.f32 %v315, 0.0
      %v348 = vmax.f32 %v316, 0.0
      %v349 = vmax.f32 %v317, 0.0
      %v350 = vmax.f32 %v318, 0.0
      %v351 = vmax.f32 %v319, 0.0
      %v352 = vmax.f32 %v320, 0.0
      %v353 = vmax.f32 %v321, 0.0
      %v354 = vmax.f32 %v322, 0.0
      %v355 = vmax.f32 %v323, 0.0
      %v356 = vmax.f32 %v324, 0.0
      %v357 = vmax.f32 %v325, 0.0
      %v358 = vmax.f32 %v326, 0.0
      %v359 = vmax.f32 %v327, 0.0
      %v360 = vmax.f32 %v328, 0.0
      %v361 = vmax.f32 %v329, 0.0
      %v362 = vmax.f32 %v330, 0.0
      %v363 = vmax.f32 %v331, 0.0
      %v364 = vmax.f32 %v332, 0.0
      %v365 = vmax.f32 %v333, 0.0
      %v366 = vmax.f32 %v334, 0.0
      %v367 = vmax.f32 %v335, 0.0
      %v368 = vmax.f32 %v336, 0.0
      %v369 = vmax.f32 %v337, 0.0
      %v370 = vmax.f32 %v338, 0.0
      %s371 = scalar_lea.vmem [#allocation2], 24
      %372 = vst [vmem:[%s371 + $0x1] sm:$0xff] %v339
      %373 = vst [vmem:[%s371 + $0x9] sm:$0xff] %v340
      %374 = vst [vmem:[%s371 + $0x19] sm:$0xff] %v341
      %375 = vst [vmem:[%s371 + $0x21] sm:$0xff] %v342
      %376 = vst [vmem:[%s371 + $0x31] sm:$0xff] %v343
      %377 = vst [vmem:[%s371 + $0x39] sm:$0xff] %v344
      %378 = vst [vmem:[%s371 + $0x49] sm:$0xff] %v345
      %379 = vst [vmem:[%s371 + $0x51] sm:$0xff] %v346
      %380 = vst [vmem:[%s371 + $0x61] sm:$0xff] %v347
      %381 = vst [vmem:[%s371 + $0x69] sm:$0xff] %v348
      %382 = vst [vmem:[%s371 + $0x79] sm:$0xff] %v349
      %383 = vst [vmem:[%s371 + $0x81] sm:$0xff] %v350
      %384 = vst [vmem:[%s371 + $0x91] sm:$0xff] %v351
      %385 = vst [vmem:[%s371 + $0x99] sm:$0xff] %v352
      %386 = vst [vmem:[%s371 + $0xa9] sm:$0xff] %v353
      %387 = vst [vmem:[%s371 + $0xb1] sm:$0xff] %v354
      %388 = vst [vmem:[%s371 + $0xc1] sm:$0xff] %v355
      %389 = vst [vmem:[%s371 + $0xc9] sm:$0xff] %v356
      %390 = vst [vmem:[%s371 + $0xd9] sm:$0xff] %v357
      %391 = vst [vmem:[%s371 + $0xe1] sm:$0xff] %v358
      %392 = vst [vmem:[%s371 + $0xf1] sm:$0xff] %v359
      %393 = vst [vmem:[%s371 + $0xf9] sm:$0xff] %v360
      %394 = vst [vmem:[%s371 + $0x109] sm:$0xff] %v361
      %395 = vst [vmem:[%s371 + $0x111] sm:$0xff] %v362
      %396 = vst [vmem:[%s371 + $0x121] sm:$0xff] %v363
      %397 = vst [vmem:[%s371 + $0x129] sm:$0xff] %v364
      %398 = vst [vmem:[%s371 + $0x139] sm:$0xff] %v365
      %399 = vst [vmem:[%s371 + $0x141] sm:$0xff] %v366
      %400 = vst [vmem:[%s371 + $0x151] sm:$0xff] %v367
      %401 = vst [vmem:[%s371 + $0x159] sm:$0xff] %v368
      %402 = vst [vmem:[%s371 + $0x169] sm:$0xff] %v369
      %403 = vst [vmem:[%s371 + $0x171] sm:$0xff] %v370
      %v404 = vld [vmem:[#allocation2] sm:$0xff]
      %v405 = vld [vmem:[#allocation2 + $0x8] sm:$0xff]
      %v406 = vld [vmem:[#allocation2 + $0x10] sm:$0x3]
      %v407 = vld [vmem:[#allocation2 + $0x18] sm:$0xff]
      %v408 = vld [vmem:[#allocation2 + $0x20] sm:$0xff]
      %v409 = vld [vmem:[#allocation2 + $0x28] sm:$0x3]
      %v410 = vld [vmem:[#allocation2 + $0x30] sm:$0xff]
      %v411 = vld [vmem:[#allocation2 + $0x38] sm:$0xff]
      %v412 = vld [vmem:[#allocation2 + $0x40] sm:$0x3]
      %v413 = vld [vmem:[#allocation2 + $0x48] sm:$0xff]
      %v414 = vld [vmem:[#allocation2 + $0x50] sm:$0xff]
      %v415 = vld [vmem:[#allocation2 + $0x58] sm:$0x3]
      %v416 = vld [vmem:[#allocation2 + $0x60] sm:$0xff]
      %v417 = vld [vmem:[#allocation2 + $0x68] sm:$0xff]
      %v418 = vld [vmem:[#allocation2 + $0x70] sm:$0x3]
      %v419 = vld [vmem:[#allocation2 + $0x78] sm:$0xff]
      %v420 = vld [vmem:[#allocation2 + $0x80] sm:$0xff]
      %v421 = vld [vmem:[#allocation2 + $0x88] sm:$0x3]
      %v422 = vld [vmem:[#allocation2 + $0x90] sm:$0xff]
      %v423 = vld [vmem:[#allocation2 + $0x98] sm:$0xff]
      %v424 = vld [vmem:[#allocation2 + $0xa0] sm:$0x3]
      %v425 = vld [vmem:[#allocation2 + $0xa8] sm:$0xff]
      %v426 = vld [vmem:[#allocation2 + $0xb0] sm:$0xff]
      %v427 = vld [vmem:[#allocation2 + $0xb8] sm:$0x3]
      %v428 = vld [vmem:[#allocation2 + $0xc0] sm:$0xff]
      %v429 = vld [vmem:[#allocation2 + $0xc8] sm:$0xff]
      %v430 = vld [vmem:[#allocation2 + $0xd0] sm:$0x3]
      %v431 = vld [vmem:[#allocation2 + $0xd8] sm:$0xff]
      %v432 = vld [vmem:[#allocation2 + $0xe0] sm:$0xff]
      %v433 = vld [vmem:[#allocation2 + $0xe8] sm:$0x3]
      %v434 = vld [vmem:[#allocation2 + $0xf0] sm:$0xff]
      %v435 = vld [vmem:[#allocation2 + $0xf8] sm:$0xff]
      %v436 = vld [vmem:[#allocation2 + $0x100] sm:$0x3]
      %v437 = vld [vmem:[#allocation2 + $0x108] sm:$0xff]
      %v438 = vld [vmem:[#allocation2 + $0x110] sm:$0xff]
      %v439 = vld [vmem:[#allocation2 + $0x118] sm:$0x3]
      %v440 = vld [vmem:[#allocation2 + $0x120] sm:$0xff]
      %v441 = vld [vmem:[#allocation2 + $0x128] sm:$0xff]
      %v442 = vld [vmem:[#allocation2 + $0x130] sm:$0x3]
      %v443 = vld [vmem:[#allocation2 + $0x138] sm:$0xff]
      %v444 = vld [vmem:[#allocation2 + $0x140] sm:$0xff]
      %v445 = vld [vmem:[#allocation2 + $0x148] sm:$0x3]
      %v446 = vld [vmem:[#allocation2 + $0x150] sm:$0xff]
      %v447 = vld [vmem:[#allocation2 + $0x158] sm:$0xff]
      %v448 = vld [vmem:[#allocation2 + $0x160] sm:$0x3]
      %v449 = vld [vmem:[#allocation2 + $0x168] sm:$0xff]
      %v450 = vld [vmem:[#allocation2 + $0x170] sm:$0xff]
      %v451 = vld [vmem:[#allocation2 + $0x178] sm:$0x3]
      %v452 = vld [vmem:[#allocation2 + $0x180] sm:$0xff]
      %v453 = vld [vmem:[#allocation2 + $0x188] sm:$0xff]
      %v454 = vld [vmem:[#allocation2 + $0x190] sm:$0x3]
      %v455 = vld [vmem:[#allocation2 + $0x198] sm:$0xff]
      %v456 = vld [vmem:[#allocation2 + $0x1a0] sm:$0xff]
      %v457 = vld [vmem:[#allocation2 + $0x1a8] sm:$0x3]
      %v458 = vld [vmem:[%s1] sm:$0x7]
      %v459 = vld [vmem:[%s1 + $0x4] sm:$0x7]
      %v460 = vld [vmem:[%s1 + $0x8] sm:$0x7]
      %v461 = vlaneseq
      %v462 = vshrl.u32 %v461, 7
      %v463 = vsub.s32 0, %v462
      %v464 = vrot.slane %v458, %v463
      %v465 = vmul.f32 %v404, %v464
      %v466 = vmul.f32 %v405, %v464
      %v467 = vmul.f32 %v407, %v464
      %v468 = vmul.f32 %v408, %v464
      %v469 = vmul.f32 %v410, %v464
      %v470 = vmul.f32 %v411, %v464
      %v471 = vmul.f32 %v413, %v464
      %v472 = vmul.f32 %v414, %v464
      %v473 = vmul.f32 %v416, %v464
      %v474 = vmul.f32 %v417, %v464
      %v475 = vmul.f32 %v419, %v464
      %v476 = vmul.f32 %v420, %v464
      %v477 = vmul.f32 %v422, %v464
      %v478 = vmul.f32 %v423, %v464
      %v479 = vmul.f32 %v425, %v464
      %v480 = vmul.f32 %v426, %v464
      %v481 = vmul.f32 %v428, %v464
      %v482 = vmul.f32 %v429, %v464
      %v483 = vmul.f32 %v431, %v464
      %v484 = vmul.f32 %v432, %v464
      %v485 = vmul.f32 %v434, %v464
      %v486 = vmul.f32 %v435, %v464
      %v487 = vmul.f32 %v437, %v464
      %v488 = vmul.f32 %v438, %v464
      %v489 = vmul.f32 %v440, %v464
      %v490 = vmul.f32 %v441, %v464
      %v491 = vmul.f32 %v443, %v464
      %v492 = vmul.f32 %v444, %v464
      %v493 = vmul.f32 %v446, %v464
      %v494 = vmul.f32 %v447, %v464
      %v495 = vmul.f32 %v449, %v464
      %v496 = vmul.f32 %v450, %v464
      %v497 = vadd.f32 %v465, 0.0
      %v498 = vadd.f32 %v466, 0.0
      %v499 = vadd.f32 %v467, 0.0
      %v500 = vadd.f32 %v468, 0.0
      %v501 = vadd.f32 %v469, 0.0
      %v502 = vadd.f32 %v470, 0.0
      %v503 = vadd.f32 %v471, 0.0
      %v504 = vadd.f32 %v472, 0.0
      %v505 = vadd.f32 %v473, 0.0
      %v506 = vadd.f32 %v474, 0.0
      %v507 = vadd.f32 %v475, 0.0
      %v508 = vadd.f32 %v476, 0.0
      %v509 = vadd.f32 %v477, 0.0
      %v510 = vadd.f32 %v478, 0.0
      %v511 = vadd.f32 %v479, 0.0
      %v512 = vadd.f32 %v480, 0.0
      %v513 = vadd.f32 %v481, 0.0
      %v514 = vadd.f32 %v482, 0.0
      %v515 = vadd.f32 %v483, 0.0
      %v516 = vadd.f32 %v484, 0.0
      %v517 = vadd.f32 %v485, 0.0
      %v518 = vadd.f32 %v486, 0.0
      %v519 = vadd.f32 %v487, 0.0
      %v520 = vadd.f32 %v488, 0.0
      %v521 = vadd.f32 %v489, 0.0
      %v522 = vadd.f32 %v490, 0.0
      %v523 = vadd.f32 %v491, 0.0
      %v524 = vadd.f32 %v492, 0.0
      %v525 = vadd.f32 %v493, 0.0
      %v526 = vadd.f32 %v494, 0.0
      %v527 = vadd.f32 %v495, 0.0
      %v528 = vadd.f32 %v496, 0.0
      %v529 = vlaneseq
      %v530 = vshrl.u32 %v529, 7
      %v531 = vsub.s32 0, %v530
      %v532 = vrot.slane %v459, %v531
      %v533 = vmul.f32 %v407, %v532
      %v534 = vmul.f32 %v408, %v532
      %v535 = vmul.f32 %v410, %v532
      %v536 = vmul.f32 %v411, %v532
      %v537 = vmul.f32 %v413, %v532
      %v538 = vmul.f32 %v414, %v532
      %v539 = vmul.f32 %v416, %v532
      %v540 = vmul.f32 %v417, %v532
      %v541 = vmul.f32 %v419, %v532
      %v542 = vmul.f32 %v420, %v532
      %v543 = vmul.f32 %v422, %v532
      %v544 = vmul.f32 %v423, %v532
      %v545 = vmul.f32 %v425, %v532
      %v546 = vmul.f32 %v426, %v532
      %v547 = vmul.f32 %v428, %v532
      %v548 = vmul.f32 %v429, %v532
      %v549 = vmul.f32 %v431, %v532
      %v550 = vmul.f32 %v432, %v532
      %v551 = vmul.f32 %v434, %v532
      %v552 = vmul.f32 %v435, %v532
      %v553 = vmul.f32 %v437, %v532
      %v554 = vmul.f32 %v438, %v532
      %v555 = vmul.f32 %v440, %v532
      %v556 = vmul.f32 %v441, %v532
      %v557 = vmul.f32 %v443, %v532
      %v558 = vmul.f32 %v444, %v532
      %v559 = vmul.f32 %v446, %v532
      %v560 = vmul.f32 %v447, %v532
      %v561 = vmul.f32 %v449, %v532
      %v562 = vmul.f32 %v450, %v532
      %v563 = vmul.f32 %v452, %v532
      %v564 = vmul.f32 %v453, %v532
      %v565 = vadd.f32 %v497, %v533
      %v566 = vadd.f32 %v498, %v534
      %v567 = vadd.f32 %v499, %v535
      %v568 = vadd.f32 %v500, %v536
      %v569 = vadd.f32 %v501, %v537
      %v570 = vadd.f32 %v502, %v538
      %v571 = vadd.f32 %v503, %v539
      %v572 = vadd.f32 %v504, %v540
      %v573 = vadd.f32 %v505, %v541
      %v574 = vadd.f32 %v506, %v542
      %v575 = vadd.f32 %v507, %v543
      %v576 = vadd.f32 %v508, %v544
      %v577 = vadd.f32 %v509, %v545
      %v578 = vadd.f32 %v510, %v546
      %v579 = vadd.f32 %v511, %v547
      %v580 = vadd.f32 %v512, %v548
      %v581 = vadd.f32 %v513, %v549
      %v582 = vadd.f32 %v514, %v550
      %v583 = vadd.f32 %v515, %v551
      %v584 = vadd.f32 %v516, %v552
      %v585 = vadd.f32 %v517, %v553
      %v586 = vadd.f32 %v518, %v554
      %v587 = vadd.f32 %v519, %v555
      %v588 = vadd.f32 %v520, %v556
      %v589 = vadd.f32 %v521, %v557
      %v590 = vadd.f32 %v522, %v558
      %v591 = vadd.f32 %v523, %v559
      %v592 = vadd.f32 %v524, %v560
      %v593 = vadd.f32 %v525, %v561
      %v594 = vadd.f32 %v526, %v562
      %v595 = vadd.f32 %v527, %v563
      %v596 = vadd.f32 %v528, %v564
      %v597 = vlaneseq
      %v598 = vshrl.u32 %v597, 7
      %v599 = vsub.s32 0, %v598
      %v600 = vrot.slane %v460, %v599
      %v601 = vmul.f32 %v410, %v600
      %v602 = vmul.f32 %v411, %v600
      %v603 = vmul.f32 %v413, %v600
      %v604 = vmul.f32 %v414, %v600
      %v605 = vmul.f32 %v416, %v600
      %v606 = vmul.f32 %v417, %v600
      %v607 = vmul.f32 %v419, %v600
      %v608 = vmul.f32 %v420, %v600
      %v609 = vmul.f32 %v422, %v600
      %v610 = vmul.f32 %v423, %v600
      %v611 = vmul.f32 %v425, %v600
      %v612 = vmul.f32 %v426, %v600
      %v613 = vmul.f32 %v428, %v600
      %v614 = vmul.f32 %v429, %v600
      %v615 = vmul.f32 %v431, %v600
      %v616 = vmul.f32 %v432, %v600
      %v617 = vmul.f32 %v434, %v600
      %v618 = vmul.f32 %v435, %v600
      %v619 = vmul.f32 %v437, %v600
      %v620 = vmul.f32 %v438, %v600
      %v621 = vmul.f32 %v440, %v600
      %v622 = vmul.f32 %v441, %v600
      %v623 = vmul.f32 %v443, %v600
      %v624 = vmul.f32 %v444, %v600
      %v625 = vmul.f32 %v446, %v600
      %v626 = vmul.f32 %v447, %v600
      %v627 = vmul.f32 %v449, %v600
      %v628 = vmul.f32 %v450, %v600
      %v629 = vmul.f32 %v452, %v600
      %v630 = vmul.f32 %v453, %v600
      %v631 = vmul.f32 %v455, %v600
      %v632 = vmul.f32 %v456, %v600
      %v633 = vadd.f32 %v565, %v601
      %v634 = vadd.f32 %v566, %v602
      %v635 = vadd.f32 %v567, %v603
      %v636 = vadd.f32 %v568, %v604
      %v637 = vadd.f32 %v569, %v605
      %v638 = vadd.f32 %v570, %v606
      %v639 = vadd.f32 %v571, %v607
      %v640 = vadd.f32 %v572, %v608
      %v641 = vadd.f32 %v573, %v609
      %v642 = vadd.f32 %v574, %v610
      %v643 = vadd.f32 %v575, %v611
      %v644 = vadd.f32 %v576, %v612
      %v645 = vadd.f32 %v577, %v613
      %v646 = vadd.f32 %v578, %v614
      %v647 = vadd.f32 %v579, %v615
      %v648 = vadd.f32 %v580, %v616
      %v649 = vadd.f32 %v581, %v617
      %v650 = vadd.f32 %v582, %v618
      %v651 = vadd.f32 %v583, %v619
      %v652 = vadd.f32 %v584, %v620
      %v653 = vadd.f32 %v585, %v621
      %v654 = vadd.f32 %v586, %v622
      %v655 = vadd.f32 %v587, %v623
      %v656 = vadd.f32 %v588, %v624
      %v657 = vadd.f32 %v589, %v625
      %v658 = vadd.f32 %v590, %v626
      %v659 = vadd.f32 %v591, %v627
      %v660 = vadd.f32 %v592, %v628
      %v661 = vadd.f32 %v593, %v629
      %v662 = vadd.f32 %v594, %v630
      %v663 = vadd.f32 %v595, %v631
      %v664 = vadd.f32 %v596, %v632
      %v665 = vlaneseq
      %v666 = vshrl.u32 %v665, 7
      %v667 = vsub.s32 1, %v666
      %v668 = vrot.slane %v458, %v667
      %v669 = vmul.f32 %v404, %v668
      %v670 = vmul.f32 %v405, %v668
      %v671 = vmul.f32 %v406, %v668
      %v672 = vmul.f32 %v407, %v668
      %v673 = vmul.f32 %v408, %v668
      %v674 = vmul.f32 %v409, %v668
      %v675 = vmul.f32 %v410, %v668
      %v676 = vmul.f32 %v411, %v668
      %v677 = vmul.f32 %v412, %v668
      %v678 = vmul.f32 %v413, %v668
      %v679 = vmul.f32 %v414, %v668
      %v680 = vmul.f32 %v415, %v668
      %v681 = vmul.f32 %v416, %v668
      %v682 = vmul.f32 %v417, %v668
      %v683 = vmul.f32 %v418, %v668
      %v684 = vmul.f32 %v419, %v668
      %v685 = vmul.f32 %v420, %v668
      %v686 = vmul.f32 %v421, %v668
      %v687 = vmul.f32 %v422, %v668
      %v688 = vmul.f32 %v423, %v668
      %v689 = vmul.f32 %v424, %v668
      %v690 = vmul.f32 %v425, %v668
      %v691 = vmul.f32 %v426, %v668
      %v692 = vmul.f32 %v427, %v668
      %v693 = vmul.f32 %v428, %v668
      %v694 = vmul.f32 %v429, %v668
      %v695 = vmul.f32 %v430, %v668
      %v696 = vmul.f32 %v431, %v668
      %v697 = vmul.f32 %v432, %v668
      %v698 = vmul.f32 %v433, %v668
      %v699 = vmul.f32 %v434, %v668
      %v700 = vmul.f32 %v435, %v668
      %v701 = vmul.f32 %v436, %v668
      %v702 = vmul.f32 %v437, %v668
      %v703 = vmul.f32 %v438, %v668
      %v704 = vmul.f32 %v439, %v668
      %v705 = vmul.f32 %v440, %v668
      %v706 = vmul.f32 %v441, %v668
      %v707 = vmul.f32 %v442, %v668
      %v708 = vmul.f32 %v443, %v668
      %v709 = vmul.f32 %v444, %v668
      %v710 = vmul.f32 %v445, %v668
      %v711 = vmul.f32 %v446, %v668
      %v712 = vmul.f32 %v447, %v668
      %v713 = vmul.f32 %v448, %v668
      %v714 = vmul.f32 %v449, %v668
      %v715 = vmul.f32 %v450, %v668
      %v716 = vmul.f32 %v451, %v668
      %vm765 = vcmask 1046528
      %v766 = vrot.slane %v669, 1
      %v767 = vrot.slane %v670, 1
      %v768 = vsel %vm765, %v766, %v767
      %v769 = vrot.slane %v671, 1
      %v770 = vsel %vm765, %v767, %v769
      %v771 = vrot.slane %v672, 1
      %v772 = vrot.slane %v673, 1
      %v773 = vsel %vm765, %v771, %v772
      %v774 = vrot.slane %v674, 1
      %v775 = vsel %vm765, %v772, %v774
      %v776 = vrot.slane %v675, 1
      %v777 = vrot.slane %v676, 1
      %v778 = vsel %vm765, %v776, %v777
      %v779 = vrot.slane %v677, 1
      %v780 = vsel %vm765, %v777, %v779
      %v781 = vrot.slane %v678, 1
      %v782 = vrot.slane %v679, 1
      %v783 = vsel %vm765, %v781, %v782
      %v784 = vrot.slane %v680, 1
      %v785 = vsel %vm765, %v782, %v784
      %v786 = vrot.slane %v681, 1
      %v787 = vrot.slane %v682, 1
      %v788 = vsel %vm765, %v786, %v787
      %v789 = vrot.slane %v683, 1
      %v790 = vsel %vm765, %v787, %v789
      %v791 = vrot.slane %v684, 1
      %v792 = vrot.slane %v685, 1
      %v793 = vsel %vm765, %v791, %v792
      %v794 = vrot.slane %v686, 1
      %v795 = vsel %vm765, %v792, %v794
      %v796 = vrot.slane %v687, 1
      %v797 = vrot.slane %v688, 1
      %v798 = vsel %vm765, %v796, %v797
      %v799 = vrot.slane %v689, 1
      %v800 = vsel %vm765, %v797, %v799
      %v801 = vrot.slane %v690, 1
      %v802 = vrot.slane %v691, 1
      %v803 = vsel %vm765, %v801, %v802
      %v804 = vrot.slane %v692, 1
      %v805 = vsel %vm765, %v802, %v804
      %v806 = vrot.slane %v693, 1
      %v807 = vrot.slane %v694, 1
      %v808 = vsel %vm765, %v806, %v807
      %v809 = vrot.slane %v695, 1
      %v810 = vsel %vm765, %v807, %v809
      %v811 = vrot.slane %v696, 1
      %v812 = vrot.slane %v697, 1
      %v813 = vsel %vm765, %v811, %v812
      %v814 = vrot.slane %v698, 1
      %v815 = vsel %vm765, %v812, %v814
      %v816 = vrot.slane %v699, 1
      %v817 = vrot.slane %v700, 1
      %v818 = vsel %vm765, %v816, %v817
      %v819 = vrot.slane %v701, 1
      %v820 = vsel %vm765, %v817, %v819
      %v821 = vrot.slane %v702, 1
      %v822 = vrot.slane %v703, 1
      %v823 = vsel %vm765, %v821, %v822
      %v824 = vrot.slane %v704, 1
      %v825 = vsel %vm765, %v822, %v824
      %v826 = vrot.slane %v705, 1
      %v827 = vrot.slane %v706, 1
      %v828 = vsel %vm765, %v826, %v827
      %v829 = vrot.slane %v707, 1
      %v830 = vsel %vm765, %v827, %v829
      %v831 = vrot.slane %v708, 1
      %v832 = vrot.slane %v709, 1
      %v833 = vsel %vm765, %v831, %v832
      %v834 = vrot.slane %v710, 1
      %v835 = vsel %vm765, %v832, %v834
      %v836 = vrot.slane %v711, 1
      %v837 = vrot.slane %v712, 1
      %v838 = vsel %vm765, %v836, %v837
      %v839 = vrot.slane %v713, 1
      %v840 = vsel %vm765, %v837, %v839
      %v841 = vrot.slane %v714, 1
      %v842 = vrot.slane %v715, 1
      %v843 = vsel %vm765, %v841, %v842
      %v844 = vrot.slane %v716, 1
      %v845 = vsel %vm765, %v842, %v844
      %v878 = vadd.f32 %v633, %v768
      %v879 = vadd.f32 %v634, %v770
      %v880 = vadd.f32 %v635, %v773
      %v881 = vadd.f32 %v636, %v775
      %v882 = vadd.f32 %v637, %v778
      %v883 = vadd.f32 %v638, %v780
      %v884 = vadd.f32 %v639, %v783
      %v885 = vadd.f32 %v640, %v785
      %v886 = vadd.f32 %v641, %v788
      %v887 = vadd.f32 %v642, %v790
      %v888 = vadd.f32 %v643, %v793
      %v889 = vadd.f32 %v644, %v795
      %v890 = vadd.f32 %v645, %v798
      %v891 = vadd.f32 %v646, %v800
      %v892 = vadd.f32 %v647, %v803
      %v893 = vadd.f32 %v648, %v805
      %v894 = vadd.f32 %v649, %v808
      %v895 = vadd.f32 %v650, %v810
      %v896 = vadd.f32 %v651, %v813
      %v897 = vadd.f32 %v652, %v815
      %v898 = vadd.f32 %v653, %v818
      %v899 = vadd.f32 %v654, %v820
      %v900 = vadd.f32 %v655, %v823
      %v901 = vadd.f32 %v656, %v825
      %v902 = vadd.f32 %v657, %v828
      %v903 = vadd.f32 %v658, %v830
      %v904 = vadd.f32 %v659, %v833
      %v905 = vadd.f32 %v660, %v835
      %v906 = vadd.f32 %v661, %v838
      %v907 = vadd.f32 %v662, %v840
      %v908 = vadd.f32 %v663, %v843
      %v909 = vadd.f32 %v664, %v845
      %v910 = vlaneseq
      %v911 = vshrl.u32 %v910, 7
      %v912 = vsub.s32 1, %v911
      %v913 = vrot.slane %v459, %v912
      %v914 = vmul.f32 %v407, %v913
      %v915 = vmul.f32 %v408, %v913
      %v916 = vmul.f32 %v409, %v913
      %v917 = vmul.f32 %v410, %v913
      %v918 = vmul.f32 %v411, %v913
      %v919 = vmul.f32 %v412, %v913
      %v920 = vmul.f32 %v413, %v913
      %v921 = vmul.f32 %v414, %v913
      %v922 = vmul.f32 %v415, %v913
      %v923 = vmul.f32 %v416, %v913
      %v924 = vmul.f32 %v417, %v913
      %v925 = vmul.f32 %v418, %v913
      %v926 = vmul.f32 %v419, %v913
      %v927 = vmul.f32 %v420, %v913
      %v928 = vmul.f32 %v421, %v913
      %v929 = vmul.f32 %v422, %v913
      %v930 = vmul.f32 %v423, %v913
      %v931 = vmul.f32 %v424, %v913
      %v932 = vmul.f32 %v425, %v913
      %v933 = vmul.f32 %v426, %v913
      %v934 = vmul.f32 %v427, %v913
      %v935 = vmul.f32 %v428, %v913
      %v936 = vmul.f32 %v429, %v913
      %v937 = vmul.f32 %v430, %v913
      %v938 = vmul.f32 %v431, %v913
      %v939 = vmul.f32 %v432, %v913
      %v940 = vmul.f32 %v433, %v913
      %v941 = vmul.f32 %v434, %v913
      %v942 = vmul.f32 %v435, %v913
      %v943 = vmul.f32 %v436, %v913
      %v944 = vmul.f32 %v437, %v913
      %v945 = vmul.f32 %v438, %v913
      %v946 = vmul.f32 %v439, %v913
      %v947 = vmul.f32 %v440, %v913
      %v948 = vmul.f32 %v441, %v913
      %v949 = vmul.f32 %v442, %v913
      %v950 = vmul.f32 %v443, %v913
      %v951 = vmul.f32 %v444, %v913
      %v952 = vmul.f32 %v445, %v913
      %v953 = vmul.f32 %v446, %v913
      %v954 = vmul.f32 %v447, %v913
      %v955 = vmul.f32 %v448, %v913
      %v956 = vmul.f32 %v449, %v913
      %v957 = vmul.f32 %v450, %v913
      %v958 = vmul.f32 %v451, %v913
      %v959 = vmul.f32 %v452, %v913
      %v960 = vmul.f32 %v453, %v913
      %v961 = vmul.f32 %v454, %v913
      %v1010 = vrot.slane %v914, 1
      %v1011 = vrot.slane %v915, 1
      %v1012 = vsel %vm765, %v1010, %v1011
      %v1013 = vrot.slane %v916, 1
      %v1014 = vsel %vm765, %v1011, %v1013
      %v1015 = vrot.slane %v917, 1
      %v1016 = vrot.slane %v918, 1
      %v1017 = vsel %vm765, %v1015, %v1016
      %v1018 = vrot.slane %v919, 1
      %v1019 = vsel %vm765, %v1016, %v1018
      %v1020 = vrot.slane %v920, 1
      %v1021 = vrot.slane %v921, 1
      %v1022 = vsel %vm765, %v1020, %v1021
      %v1023 = vrot.slane %v922, 1
      %v1024 = vsel %vm765, %v1021, %v1023
      %v1025 = vrot.slane %v923, 1
      %v1026 = vrot.slane %v924, 1
      %v1027 = vsel %vm765, %v1025, %v1026
      %v1028 = vrot.slane %v925, 1
      %v1029 = vsel %vm765, %v1026, %v1028
      %v1030 = vrot.slane %v926, 1
      %v1031 = vrot.slane %v927, 1
      %v1032 = vsel %vm765, %v1030, %v1031
      %v1033 = vrot.slane %v928, 1
      %v1034 = vsel %vm765, %v1031, %v1033
      %v1035 = vrot.slane %v929, 1
      %v1036 = vrot.slane %v930, 1
      %v1037 = vsel %vm765, %v1035, %v1036
      %v1038 = vrot.slane %v931, 1
      %v1039 = vsel %vm765, %v1036, %v1038
      %v1040 = vrot.slane %v932, 1
      %v1041 = vrot.slane %v933, 1
      %v1042 = vsel %vm765, %v1040, %v1041
      %v1043 = vrot.slane %v934, 1
      %v1044 = vsel %vm765, %v1041, %v1043
      %v1045 = vrot.slane %v935, 1
      %v1046 = vrot.slane %v936, 1
      %v1047 = vsel %vm765, %v1045, %v1046
      %v1048 = vrot.slane %v937, 1
      %v1049 = vsel %vm765, %v1046, %v1048
      %v1050 = vrot.slane %v938, 1
      %v1051 = vrot.slane %v939, 1
      %v1052 = vsel %vm765, %v1050, %v1051
      %v1053 = vrot.slane %v940, 1
      %v1054 = vsel %vm765, %v1051, %v1053
      %v1055 = vrot.slane %v941, 1
      %v1056 = vrot.slane %v942, 1
      %v1057 = vsel %vm765, %v1055, %v1056
      %v1058 = vrot.slane %v943, 1
      %v1059 = vsel %vm765, %v1056, %v1058
      %v1060 = vrot.slane %v944, 1
      %v1061 = vrot.slane %v945, 1
      %v1062 = vsel %vm765, %v1060, %v1061
      %v1063 = vrot.slane %v946, 1
      %v1064 = vsel %vm765, %v1061, %v1063
      %v1065 = vrot.slane %v947, 1
      %v1066 = vrot.slane %v948, 1
      %v1067 = vsel %vm765, %v1065, %v1066
      %v1068 = vrot.slane %v949, 1
      %v1069 = vsel %vm765, %v1066, %v1068
      %v1070 = vrot.slane %v950, 1
      %v1071 = vrot.slane %v951, 1
      %v1072 = vsel %vm765, %v1070, %v1071
      %v1073 = vrot.slane %v952, 1
      %v1074 = vsel %vm765, %v1071, %v1073
      %v1075 = vrot.slane %v953, 1
      %v1076 = vrot.slane %v954, 1
      %v1077 = vsel %vm765, %v1075, %v1076
      %v1078 = vrot.slane %v955, 1
      %v1079 = vsel %vm765, %v1076, %v1078
      %v1080 = vrot.slane %v956, 1
      %v1081 = vrot.slane %v957, 1
      %v1082 = vsel %vm765, %v1080, %v1081
      %v1083 = vrot.slane %v958, 1
      %v1084 = vsel %vm765, %v1081, %v1083
      %v1085 = vrot.slane %v959, 1
      %v1086 = vrot.slane %v960, 1
      %v1087 = vsel %vm765, %v1085, %v1086
      %v1088 = vrot.slane %v961, 1
      %v1089 = vsel %vm765, %v1086, %v1088
      %v1122 = vadd.f32 %v878, %v1012
      %v1123 = vadd.f32 %v879, %v1014
      %v1124 = vadd.f32 %v880, %v1017
      %v1125 = vadd.f32 %v881, %v1019
      %v1126 = vadd.f32 %v882, %v1022
      %v1127 = vadd.f32 %v883, %v1024
      %v1128 = vadd.f32 %v884, %v1027
      %v1129 = vadd.f32 %v885, %v1029
      %v1130 = vadd.f32 %v886, %v1032
      %v1131 = vadd.f32 %v887, %v1034
      %v1132 = vadd.f32 %v888, %v1037
      %v1133 = vadd.f32 %v889, %v1039
      %v1134 = vadd.f32 %v890, %v1042
      %v1135 = vadd.f32 %v891, %v1044
      %v1136 = vadd.f32 %v892, %v1047
      %v1137 = vadd.f32 %v893, %v1049
      %v1138 = vadd.f32 %v894, %v1052
      %v1139 = vadd.f32 %v895, %v1054
      %v1140 = vadd.f32 %v896, %v1057
      %v1141 = vadd.f32 %v897, %v1059
      %v1142 = vadd.f32 %v898, %v1062
      %v1143 = vadd.f32 %v899, %v1064
      %v1144 = vadd.f32 %v900, %v1067
      %v1145 = vadd.f32 %v901, %v1069
      %v1146 = vadd.f32 %v902, %v1072
      %v1147 = vadd.f32 %v903, %v1074
      %v1148 = vadd.f32 %v904, %v1077
      %v1149 = vadd.f32 %v905, %v1079
      %v1150 = vadd.f32 %v906, %v1082
      %v1151 = vadd.f32 %v907, %v1084
      %v1152 = vadd.f32 %v908, %v1087
      %v1153 = vadd.f32 %v909, %v1089
      %v1154 = vlaneseq
      %v1155 = vshrl.u32 %v1154, 7
      %v1156 = vsub.s32 1, %v1155
      %v1157 = vrot.slane %v460, %v1156
      %v1158 = vmul.f32 %v410, %v1157
      %v1159 = vmul.f32 %v411, %v1157
      %v1160 = vmul.f32 %v412, %v1157
      %v1161 = vmul.f32 %v413, %v1157
      %v1162 = vmul.f32 %v414, %v1157
      %v1163 = vmul.f32 %v415, %v1157
      %v1164 = vmul.f32 %v416, %v1157
      %v1165 = vmul.f32 %v417, %v1157
      %v1166 = vmul.f32 %v418, %v1157
      %v1167 = vmul.f32 %v419, %v1157
      %v1168 = vmul.f32 %v420, %v1157
      %v1169 = vmul.f32 %v421, %v1157
      %v1170 = vmul.f32 %v422, %v1157
      %v1171 = vmul.f32 %v423, %v1157
      %v1172 = vmul.f32 %v424, %v1157
      %v1173 = vmul.f32 %v425, %v1157
      %v1174 = vmul.f32 %v426, %v1157
      %v1175 = vmul.f32 %v427, %v1157
      %v1176 = vmul.f32 %v428, %v1157
      %v1177 = vmul.f32 %v429, %v1157
      %v1178 = vmul.f32 %v430, %v1157
      %v1179 = vmul.f32 %v431, %v1157
      %v1180 = vmul.f32 %v432, %v1157
      %v1181 = vmul.f32 %v433, %v1157
      %v1182 = vmul.f32 %v434, %v1157
      %v1183 = vmul.f32 %v435, %v1157
      %v1184 = vmul.f32 %v436, %v1157
      %v1185 = vmul.f32 %v437, %v1157
      %v1186 = vmul.f32 %v438, %v1157
      %v1187 = vmul.f32 %v439, %v1157
      %v1188 = vmul.f32 %v440, %v1157
      %v1189 = vmul.f32 %v441, %v1157
      %v1190 = vmul.f32 %v442, %v1157
      %v1191 = vmul.f32 %v443, %v1157
      %v1192 = vmul.f32 %v444, %v1157
      %v1193 = vmul.f32 %v445, %v1157
      %v1194 = vmul.f32 %v446, %v1157
      %v1195 = vmul.f32 %v447, %v1157
      %v1196 = vmul.f32 %v448, %v1157
      %v1197 = vmul.f32 %v449, %v1157
      %v1198 = vmul.f32 %v450, %v1157
      %v1199 = vmul.f32 %v451, %v1157
      %v1200 = vmul.f32 %v452, %v1157
      %v1201 = vmul.f32 %v453, %v1157
      %v1202 = vmul.f32 %v454, %v1157
      %v1203 = vmul.f32 %v455, %v1157
      %v1204 = vmul.f32 %v456, %v1157
      %v1205 = vmul.f32 %v457, %v1157
      %v1254 = vrot.slane %v1158, 1
      %v1255 = vrot.slane %v1159, 1
      %v1256 = vsel %vm765, %v1254, %v1255
      %v1257 = vrot.slane %v1160, 1
      %v1258 = vsel %vm765, %v1255, %v1257
      %v1259 = vrot.slane %v1161, 1
      %v1260 = vrot.slane %v1162, 1
      %v1261 = vsel %vm765, %v1259, %v1260
      %v1262 = vrot.slane %v1163, 1
      %v1263 = vsel %vm765, %v1260, %v1262
      %v1264 = vrot.slane %v1164, 1
      %v1265 = vrot.slane %v1165, 1
      %v1266 = vsel %vm765, %v1264, %v1265
      %v1267 = vrot.slane %v1166, 1
      %v1268 = vsel %vm765, %v1265, %v1267
      %v1269 = vrot.slane %v1167, 1
      %v1270 = vrot.slane %v1168, 1
      %v1271 = vsel %vm765, %v1269, %v1270
      %v1272 = vrot.slane %v1169, 1
      %v1273 = vsel %vm765, %v1270, %v1272
      %v1274 = vrot.slane %v1170, 1
      %v1275 = vrot.slane %v1171, 1
      %v1276 = vsel %vm765, %v1274, %v1275
      %v1277 = vrot.slane %v1172, 1
      %v1278 = vsel %vm765, %v1275, %v1277
      %v1279 = vrot.slane %v1173, 1
      %v1280 = vrot.slane %v1174, 1
      %v1281 = vsel %vm765, %v1279, %v1280
      %v1282 = vrot.slane %v1175, 1
      %v1283 = vsel %vm765, %v1280, %v1282
      %v1284 = vrot.slane %v1176, 1
      %v1285 = vrot.slane %v1177, 1
      %v1286 = vsel %vm765, %v1284, %v1285
      %v1287 = vrot.slane %v1178, 1
      %v1288 = vsel %vm765, %v1285, %v1287
      %v1289 = vrot.slane %v1179, 1
      %v1290 = vrot.slane %v1180, 1
      %v1291 = vsel %vm765, %v1289, %v1290
      %v1292 = vrot.slane %v1181, 1
      %v1293 = vsel %vm765, %v1290, %v1292
      %v1294 = vrot.slane %v1182, 1
      %v1295 = vrot.slane %v1183, 1
      %v1296 = vsel %vm765, %v1294, %v1295
      %v1297 = vrot.slane %v1184, 1
      %v1298 = vsel %vm765, %v1295, %v1297
      %v1299 = vrot.slane %v1185, 1
      %v1300 = vrot.slane %v1186, 1
      %v1301 = vsel %vm765, %v1299, %v1300
      %v1302 = vrot.slane %v1187, 1
      %v1303 = vsel %vm765, %v1300, %v1302
      %v1304 = vrot.slane %v1188, 1
      %v1305 = vrot.slane %v1189, 1
      %v1306 = vsel %vm765, %v1304, %v1305
      %v1307 = vrot.slane %v1190, 1
      %v1308 = vsel %vm765, %v1305, %v1307
      %v1309 = vrot.slane %v1191, 1
      %v1310 = vrot.slane %v1192, 1
      %v1311 = vsel %vm765, %v1309, %v1310
      %v1312 = vrot.slane %v1193, 1
      %v1313 = vsel %vm765, %v1310, %v1312
      %v1314 = vrot.slane %v1194, 1
      %v1315 = vrot.slane %v1195, 1
      %v1316 = vsel %vm765, %v1314, %v1315
      %v1317 = vrot.slane %v1196, 1
      %v1318 = vsel %vm765, %v1315, %v1317
      %v1319 = vrot.slane %v1197, 1
      %v1320 = vrot.slane %v1198, 1
      %v1321 = vsel %vm765, %v1319, %v1320
      %v1322 = vrot.slane %v1199, 1
      %v1323 = vsel %vm765, %v1320, %v1322
      %v1324 = vrot.slane %v1200, 1
      %v1325 = vrot.slane %v1201, 1
      %v1326 = vsel %vm765, %v1324, %v1325
      %v1327 = vrot.slane %v1202, 1
      %v1328 = vsel %vm765, %v1325, %v1327
      %v1329 = vrot.slane %v1203, 1
      %v1330 = vrot.slane %v1204, 1
      %v1331 = vsel %vm765, %v1329, %v1330
      %v1332 = vrot.slane %v1205, 1
      %v1333 = vsel %vm765, %v1330, %v1332
      %v1366 = vadd.f32 %v1122, %v1256
      %v1367 = vadd.f32 %v1123, %v1258
      %v1368 = vadd.f32 %v1124, %v1261
      %v1369 = vadd.f32 %v1125, %v1263
      %v1370 = vadd.f32 %v1126, %v1266
      %v1371 = vadd.f32 %v1127, %v1268
      %v1372 = vadd.f32 %v1128, %v1271
      %v1373 = vadd.f32 %v1129, %v1273
      %v1374 = vadd.f32 %v1130, %v1276
      %v1375 = vadd.f32 %v1131, %v1278
      %v1376 = vadd.f32 %v1132, %v1281
      %v1377 = vadd.f32 %v1133, %v1283
      %v1378 = vadd.f32 %v1134, %v1286
      %v1379 = vadd.f32 %v1135, %v1288
      %v1380 = vadd.f32 %v1136, %v1291
      %v1381 = vadd.f32 %v1137, %v1293
      %v1382 = vadd.f32 %v1138, %v1296
      %v1383 = vadd.f32 %v1139, %v1298
      %v1384 = vadd.f32 %v1140, %v1301
      %v1385 = vadd.f32 %v1141, %v1303
      %v1386 = vadd.f32 %v1142, %v1306
      %v1387 = vadd.f32 %v1143, %v1308
      %v1388 = vadd.f32 %v1144, %v1311
      %v1389 = vadd.f32 %v1145, %v1313
      %v1390 = vadd.f32 %v1146, %v1316
      %v1391 = vadd.f32 %v1147, %v1318
      %v1392 = vadd.f32 %v1148, %v1321
      %v1393 = vadd.f32 %v1149, %v1323
      %v1394 = vadd.f32 %v1150, %v1326
      %v1395 = vadd.f32 %v1151, %v1328
      %v1396 = vadd.f32 %v1152, %v1331
      %v1397 = vadd.f32 %v1153, %v1333
      %v1398 = vlaneseq
      %v1399 = vshrl.u32 %v1398, 7
      %v1400 = vsub.s32 2, %v1399
      %v1401 = vrot.slane %v458, %v1400
      %v1402 = vmul.f32 %v404, %v1401
      %v1403 = vmul.f32 %v405, %v1401
      %v1404 = vmul.f32 %v406, %v1401
      %v1405 = vmul.f32 %v407, %v1401
      %v1406 = vmul.f32 %v408, %v1401
      %v1407 = vmul.f32 %v409, %v1401
      %v1408 = vmul.f32 %v410, %v1401
      %v1409 = vmul.f32 %v411, %v1401
      %v1410 = vmul.f32 %v412, %v1401
      %v1411 = vmul.f32 %v413, %v1401
      %v1412 = vmul.f32 %v414, %v1401
      %v1413 = vmul.f32 %v415, %v1401
      %v1414 = vmul.f32 %v416, %v1401
      %v1415 = vmul.f32 %v417, %v1401
      %v1416 = vmul.f32 %v418, %v1401
      %v1417 = vmul.f32 %v419, %v1401
      %v1418 = vmul.f32 %v420, %v1401
      %v1419 = vmul.f32 %v421, %v1401
      %v1420 = vmul.f32 %v422, %v1401
      %v1421 = vmul.f32 %v423, %v1401
      %v1422 = vmul.f32 %v424, %v1401
      %v1423 = vmul.f32 %v425, %v1401
      %v1424 = vmul.f32 %v426, %v1401
      %v1425 = vmul.f32 %v427, %v1401
      %v1426 = vmul.f32 %v428, %v1401
      %v1427 = vmul.f32 %v429, %v1401
      %v1428 = vmul.f32 %v430, %v1401
      %v1429 = vmul.f32 %v431, %v1401
      %v1430 = vmul.f32 %v432, %v1401
      %v1431 = vmul.f32 %v433, %v1401
      %v1432 = vmul.f32 %v434, %v1401
      %v1433 = vmul.f32 %v435, %v1401
      %v1434 = vmul.f32 %v436, %v1401
      %v1435 = vmul.f32 %v437, %v1401
      %v1436 = vmul.f32 %v438, %v1401
      %v1437 = vmul.f32 %v439, %v1401
      %v1438 = vmul.f32 %v440, %v1401
      %v1439 = vmul.f32 %v441, %v1401
      %v1440 = vmul.f32 %v442, %v1401
      %v1441 = vmul.f32 %v443, %v1401
      %v1442 = vmul.f32 %v444, %v1401
      %v1443 = vmul.f32 %v445, %v1401
      %v1444 = vmul.f32 %v446, %v1401
      %v1445 = vmul.f32 %v447, %v1401
      %v1446 = vmul.f32 %v448, %v1401
      %v1447 = vmul.f32 %v449, %v1401
      %v1448 = vmul.f32 %v450, %v1401
      %v1449 = vmul.f32 %v451, %v1401
      %vm1498 = vcmask 1045504
      %v1499 = vrot.slane %v1402, 2
      %v1500 = vrot.slane %v1403, 2
      %v1501 = vsel %vm1498, %v1499, %v1500
      %v1502 = vrot.slane %v1404, 2
      %v1503 = vsel %vm1498, %v1500, %v1502
      %v1504 = vrot.slane %v1405, 2
      %v1505 = vrot.slane %v1406, 2
      %v1506 = vsel %vm1498, %v1504, %v1505
      %v1507 = vrot.slane %v1407, 2
      %v1508 = vsel %vm1498, %v1505, %v1507
      %v1509 = vrot.slane %v1408, 2
      %v1510 = vrot.slane %v1409, 2
      %v1511 = vsel %vm1498, %v1509, %v1510
      %v1512 = vrot.slane %v1410, 2
      %v1513 = vsel %vm1498, %v1510, %v1512
      %v1514 = vrot.slane %v1411, 2
      %v1515 = vrot.slane %v1412, 2
      %v1516 = vsel %vm1498, %v1514, %v1515
      %v1517 = vrot.slane %v1413, 2
      %v1518 = vsel %vm1498, %v1515, %v1517
      %v1519 = vrot.slane %v1414, 2
      %v1520 = vrot.slane %v1415, 2
      %v1521 = vsel %vm1498, %v1519, %v1520
      %v1522 = vrot.slane %v1416, 2
      %v1523 = vsel %vm1498, %v1520, %v1522
      %v1524 = vrot.slane %v1417, 2
      %v1525 = vrot.slane %v1418, 2
      %v1526 = vsel %vm1498, %v1524, %v1525
      %v1527 = vrot.slane %v1419, 2
      %v1528 = vsel %vm1498, %v1525, %v1527
      %v1529 = vrot.slane %v1420, 2
      %v1530 = vrot.slane %v1421, 2
      %v1531 = vsel %vm1498, %v1529, %v1530
      %v1532 = vrot.slane %v1422, 2
      %v1533 = vsel %vm1498, %v1530, %v1532
      %v1534 = vrot.slane %v1423, 2
      %v1535 = vrot.slane %v1424, 2
      %v1536 = vsel %vm1498, %v1534, %v1535
      %v1537 = vrot.slane %v1425, 2
      %v1538 = vsel %vm1498, %v1535, %v1537
      %v1539 = vrot.slane %v1426, 2
      %v1540 = vrot.slane %v1427, 2
      %v1541 = vsel %vm1498, %v1539, %v1540
      %v1542 = vrot.slane %v1428, 2
      %v1543 = vsel %vm1498, %v1540, %v1542
      %v1544 = vrot.slane %v1429, 2
      %v1545 = vrot.slane %v1430, 2
      %v1546 = vsel %vm1498, %v1544, %v1545
      %v1547 = vrot.slane %v1431, 2
      %v1548 = vsel %vm1498, %v1545, %v1547
      %v1549 = vrot.slane %v1432, 2
      %v1550 = vrot.slane %v1433, 2
      %v1551 = vsel %vm1498, %v1549, %v1550
      %v1552 = vrot.slane %v1434, 2
      %v1553 = vsel %vm1498, %v1550, %v1552
      %v1554 = vrot.slane %v1435, 2
      %v1555 = vrot.slane %v1436, 2
      %v1556 = vsel %vm1498, %v1554, %v1555
      %v1557 = vrot.slane %v1437, 2
      %v1558 = vsel %vm1498, %v1555, %v1557
      %v1559 = vrot.slane %v1438, 2
      %v1560 = vrot.slane %v1439, 2
      %v1561 = vsel %vm1498, %v1559, %v1560
      %v1562 = vrot.slane %v1440, 2
      %v1563 = vsel %vm1498, %v1560, %v1562
      %v1564 = vrot.slane %v1441, 2
      %v1565 = vrot.slane %v1442, 2
      %v1566 = vsel %vm1498, %v1564, %v1565
      %v1567 = vrot.slane %v1443, 2
      %v1568 = vsel %vm1498, %v1565, %v1567
      %v1569 = vrot.slane %v1444, 2
      %v1570 = vrot.slane %v1445, 2
      %v1571 = vsel %vm1498, %v1569, %v1570
      %v1572 = vrot.slane %v1446, 2
      %v1573 = vsel %vm1498, %v1570, %v1572
      %v1574 = vrot.slane %v1447, 2
      %v1575 = vrot.slane %v1448, 2
      %v1576 = vsel %vm1498, %v1574, %v1575
      %v1577 = vrot.slane %v1449, 2
      %v1578 = vsel %vm1498, %v1575, %v1577
      %v1611 = vadd.f32 %v1366, %v1501
      %v1612 = vadd.f32 %v1367, %v1503
      %v1613 = vadd.f32 %v1368, %v1506
      %v1614 = vadd.f32 %v1369, %v1508
      %v1615 = vadd.f32 %v1370, %v1511
      %v1616 = vadd.f32 %v1371, %v1513
      %v1617 = vadd.f32 %v1372, %v1516
      %v1618 = vadd.f32 %v1373, %v1518
      %v1619 = vadd.f32 %v1374, %v1521
      %v1620 = vadd.f32 %v1375, %v1523
      %v1621 = vadd.f32 %v1376, %v1526
      %v1622 = vadd.f32 %v1377, %v1528
      %v1623 = vadd.f32 %v1378, %v1531
      %v1624 = vadd.f32 %v1379, %v1533
      %v1625 = vadd.f32 %v1380, %v1536
      %v1626 = vadd.f32 %v1381, %v1538
      %v1627 = vadd.f32 %v1382, %v1541
      %v1628 = vadd.f32 %v1383, %v1543
      %v1629 = vadd.f32 %v1384, %v1546
      %v1630 = vadd.f32 %v1385, %v1548
      %v1631 = vadd.f32 %v1386, %v1551
      %v1632 = vadd.f32 %v1387, %v1553
      %v1633 = vadd.f32 %v1388, %v1556
      %v1634 = vadd.f32 %v1389, %v1558
      %v1635 = vadd.f32 %v1390, %v1561
      %v1636 = vadd.f32 %v1391, %v1563
      %v1637 = vadd.f32 %v1392, %v1566
      %v1638 = vadd.f32 %v1393, %v1568
      %v1639 = vadd.f32 %v1394, %v1571
      %v1640 = vadd.f32 %v1395, %v1573
      %v1641 = vadd.f32 %v1396, %v1576
      %v1642 = vadd.f32 %v1397, %v1578
      %v1643 = vlaneseq
      %v1644 = vshrl.u32 %v1643, 7
      %v1645 = vsub.s32 2, %v1644
      %v1646 = vrot.slane %v459, %v1645
      %v1647 = vmul.f32 %v407, %v1646
      %v1648 = vmul.f32 %v408, %v1646
      %v1649 = vmul.f32 %v409, %v1646
      %v1650 = vmul.f32 %v410, %v1646
      %v1651 = vmul.f32 %v411, %v1646
      %v1652 = vmul.f32 %v412, %v1646
      %v1653 = vmul.f32 %v413, %v1646
      %v1654 = vmul.f32 %v414, %v1646
      %v1655 = vmul.f32 %v415, %v1646
      %v1656 = vmul.f32 %v416, %v1646
      %v1657 = vmul.f32 %v417, %v1646
      %v1658 = vmul.f32 %v418, %v1646
      %v1659 = vmul.f32 %v419, %v1646
      %v1660 = vmul.f32 %v420, %v1646
      %v1661 = vmul.f32 %v421, %v1646
      %v1662 = vmul.f32 %v422, %v1646
      %v1663 = vmul.f32 %v423, %v1646
      %v1664 = vmul.f32 %v424, %v1646
      %v1665 = vmul.f32 %v425, %v1646
      %v1666 = vmul.f32 %v426, %v1646
      %v1667 = vmul.f32 %v427, %v1646
      %v1668 = vmul.f32 %v428, %v1646
      %v1669 = vmul.f32 %v429, %v1646
      %v1670 = vmul.f32 %v430, %v1646
      %v1671 = vmul.f32 %v431, %v1646
      %v1672 = vmul.f32 %v432, %v1646
      %v1673 = vmul.f32 %v433, %v1646
      %v1674 = vmul.f32 %v434, %v1646
      %v1675 = vmul.f32 %v435, %v1646
      %v1676 = vmul.f32 %v436, %v1646
      %v1677 = vmul.f32 %v437, %v1646
      %v1678 = vmul.f32 %v438, %v1646
      %v1679 = vmul.f32 %v439, %v1646
      %v1680 = vmul.f32 %v440, %v1646
      %v1681 = vmul.f32 %v441, %v1646
      %v1682 = vmul.f32 %v442, %v1646
      %v1683 = vmul.f32 %v443, %v1646
      %v1684 = vmul.f32 %v444, %v1646
      %v1685 = vmul.f32 %v445, %v1646
      %v1686 = vmul.f32 %v446, %v1646
      %v1687 = vmul.f32 %v447, %v1646
      %v1688 = vmul.f32 %v448, %v1646
      %v1689 = vmul.f32 %v449, %v1646
      %v1690 = vmul.f32 %v450, %v1646
      %v1691 = vmul.f32 %v451, %v1646
      %v1692 = vmul.f32 %v452, %v1646
      %v1693 = vmul.f32 %v453, %v1646
      %v1694 = vmul.f32 %v454, %v1646
      %v1743 = vrot.slane %v1647, 2
      %v1744 = vrot.slane %v1648, 2
      %v1745 = vsel %vm1498, %v1743, %v1744
      %v1746 = vrot.slane %v1649, 2
      %v1747 = vsel %vm1498, %v1744, %v1746
      %v1748 = vrot.slane %v1650, 2
      %v1749 = vrot.slane %v1651, 2
      %v1750 = vsel %vm1498, %v1748, %v1749
      %v1751 = vrot.slane %v1652, 2
      %v1752 = vsel %vm1498, %v1749, %v1751
      %v1753 = vrot.slane %v1653, 2
      %v1754 = vrot.slane %v1654, 2
      %v1755 = vsel %vm1498, %v1753, %v1754
      %v1756 = vrot.slane %v1655, 2
      %v1757 = vsel %vm1498, %v1754, %v1756
      %v1758 = vrot.slane %v1656, 2
      %v1759 = vrot.slane %v1657, 2
      %v1760 = vsel %vm1498, %v1758, %v1759
      %v1761 = vrot.slane %v1658, 2
      %v1762 = vsel %vm1498, %v1759, %v1761
      %v1763 = vrot.slane %v1659, 2
      %v1764 = vrot.slane %v1660, 2
      %v1765 = vsel %vm1498, %v1763, %v1764
      %v1766 = vrot.slane %v1661, 2
      %v1767 = vsel %vm1498, %v1764, %v1766
      %v1768 = vrot.slane %v1662, 2
      %v1769 = vrot.slane %v1663, 2
      %v1770 = vsel %vm1498, %v1768, %v1769
      %v1771 = vrot.slane %v1664, 2
      %v1772 = vsel %vm1498, %v1769, %v1771
      %v1773 = vrot.slane %v1665, 2
      %v1774 = vrot.slane %v1666, 2
      %v1775 = vsel %vm1498, %v1773, %v1774
      %v1776 = vrot.slane %v1667, 2
      %v1777 = vsel %vm1498, %v1774, %v1776
      %v1778 = vrot.slane %v1668, 2
      %v1779 = vrot.slane %v1669, 2
      %v1780 = vsel %vm1498, %v1778, %v1779
      %v1781 = vrot.slane %v1670, 2
      %v1782 = vsel %vm1498, %v1779, %v1781
      %v1783 = vrot.slane %v1671, 2
      %v1784 = vrot.slane %v1672, 2
      %v1785 = vsel %vm1498, %v1783, %v1784
      %v1786 = vrot.slane %v1673, 2
      %v1787 = vsel %vm1498, %v1784, %v1786
      %v1788 = vrot.slane %v1674, 2
      %v1789 = vrot.slane %v1675, 2
      %v1790 = vsel %vm1498, %v1788, %v1789
      %v1791 = vrot.slane %v1676, 2
      %v1792 = vsel %vm1498, %v1789, %v1791
      %v1793 = vrot.slane %v1677, 2
      %v1794 = vrot.slane %v1678, 2
      %v1795 = vsel %vm1498, %v1793, %v1794
      %v1796 = vrot.slane %v1679, 2
      %v1797 = vsel %vm1498, %v1794, %v1796
      %v1798 = vrot.slane %v1680, 2
      %v1799 = vrot.slane %v1681, 2
      %v1800 = vsel %vm1498, %v1798, %v1799
      %v1801 = vrot.slane %v1682, 2
      %v1802 = vsel %vm1498, %v1799, %v1801
      %v1803 = vrot.slane %v1683, 2
      %v1804 = vrot.slane %v1684, 2
      %v1805 = vsel %vm1498, %v1803, %v1804
      %v1806 = vrot.slane %v1685, 2
      %v1807 = vsel %vm1498, %v1804, %v1806
      %v1808 = vrot.slane %v1686, 2
      %v1809 = vrot.slane %v1687, 2
      %v1810 = vsel %vm1498, %v1808, %v1809
      %v1811 = vrot.slane %v1688, 2
      %v1812 = vsel %vm1498, %v1809, %v1811
      %v1813 = vrot.slane %v1689, 2
      %v1814 = vrot.slane %v1690, 2
      %v1815 = vsel %vm1498, %v1813, %v1814
      %v1816 = vrot.slane %v1691, 2
      %v1817 = vsel %vm1498, %v1814, %v1816
      %v1818 = vrot.slane %v1692, 2
      %v1819 = vrot.slane %v1693, 2
      %v1820 = vsel %vm1498, %v1818, %v1819
      %v1821 = vrot.slane %v1694, 2
      %v1822 = vsel %vm1498, %v1819, %v1821
      %v1855 = vadd.f32 %v1611, %v1745
      %v1856 = vadd.f32 %v1612, %v1747
      %v1857 = vadd.f32 %v1613, %v1750
      %v1858 = vadd.f32 %v1614, %v1752
      %v1859 = vadd.f32 %v1615, %v1755
      %v1860 = vadd.f32 %v1616, %v1757
      %v1861 = vadd.f32 %v1617, %v1760
      %v1862 = vadd.f32 %v1618, %v1762
      %v1863 = vadd.f32 %v1619, %v1765
      %v1864 = vadd.f32 %v1620, %v1767
      %v1865 = vadd.f32 %v1621, %v1770
      %v1866 = vadd.f32 %v1622, %v1772
      %v1867 = vadd.f32 %v1623, %v1775
      %v1868 = vadd.f32 %v1624, %v1777
      %v1869 = vadd.f32 %v1625, %v1780
      %v1870 = vadd.f32 %v1626, %v1782
      %v1871 = vadd.f32 %v1627, %v1785
      %v1872 = vadd.f32 %v1628, %v1787
      %v1873 = vadd.f32 %v1629, %v1790
      %v1874 = vadd.f32 %v1630, %v1792
      %v1875 = vadd.f32 %v1631, %v1795
      %v1876 = vadd.f32 %v1632, %v1797
      %v1877 = vadd.f32 %v1633, %v1800
      %v1878 = vadd.f32 %v1634, %v1802
      %v1879 = vadd.f32 %v1635, %v1805
      %v1880 = vadd.f32 %v1636, %v1807
      %v1881 = vadd.f32 %v1637, %v1810
      %v1882 = vadd.f32 %v1638, %v1812
      %v1883 = vadd.f32 %v1639, %v1815
      %v1884 = vadd.f32 %v1640, %v1817
      %v1885 = vadd.f32 %v1641, %v1820
      %v1886 = vadd.f32 %v1642, %v1822
      %v1887 = vlaneseq
      %v1888 = vshrl.u32 %v1887, 7
      %v1889 = vsub.s32 2, %v1888
      %v1890 = vrot.slane %v460, %v1889
      %v1891 = vmul.f32 %v410, %v1890
      %v1892 = vmul.f32 %v411, %v1890
      %v1893 = vmul.f32 %v412, %v1890
      %v1894 = vmul.f32 %v413, %v1890
      %v1895 = vmul.f32 %v414, %v1890
      %v1896 = vmul.f32 %v415, %v1890
      %v1897 = vmul.f32 %v416, %v1890
      %v1898 = vmul.f32 %v417, %v1890
      %v1899 = vmul.f32 %v418, %v1890
      %v1900 = vmul.f32 %v419, %v1890
      %v1901 = vmul.f32 %v420, %v1890
      %v1902 = vmul.f32 %v421, %v1890
      %v1903 = vmul.f32 %v422, %v1890
      %v1904 = vmul.f32 %v423, %v1890
      %v1905 = vmul.f32 %v424, %v1890
      %v1906 = vmul.f32 %v425, %v1890
      %v1907 = vmul.f32 %v426, %v1890
      %v1908 = vmul.f32 %v427, %v1890
      %v1909 = vmul.f32 %v428, %v1890
      %v1910 = vmul.f32 %v429, %v1890
      %v1911 = vmul.f32 %v430, %v1890
      %v1912 = vmul.f32 %v431, %v1890
      %v1913 = vmul.f32 %v432, %v1890
      %v1914 = vmul.f32 %v433, %v1890
      %v1915 = vmul.f32 %v434, %v1890
      %v1916 = vmul.f32 %v435, %v1890
      %v1917 = vmul.f32 %v436, %v1890
      %v1918 = vmul.f32 %v437, %v1890
      %v1919 = vmul.f32 %v438, %v1890
      %v1920 = vmul.f32 %v439, %v1890
      %v1921 = vmul.f32 %v440, %v1890
      %v1922 = vmul.f32 %v441, %v1890
      %v1923 = vmul.f32 %v442, %v1890
      %v1924 = vmul.f32 %v443, %v1890
      %v1925 = vmul.f32 %v444, %v1890
      %v1926 = vmul.f32 %v445, %v1890
      %v1927 = vmul.f32 %v446, %v1890
      %v1928 = vmul.f32 %v447, %v1890
      %v1929 = vmul.f32 %v448, %v1890
      %v1930 = vmul.f32 %v449, %v1890
      %v1931 = vmul.f32 %v450, %v1890
      %v1932 = vmul.f32 %v451, %v1890
      %v1933 = vmul.f32 %v452, %v1890
      %v1934 = vmul.f32 %v453, %v1890
      %v1935 = vmul.f32 %v454, %v1890
      %v1936 = vmul.f32 %v455, %v1890
      %v1937 = vmul.f32 %v456, %v1890
      %v1938 = vmul.f32 %v457, %v1890
      %v1987 = vrot.slane %v1891, 2
      %v1988 = vrot.slane %v1892, 2
      %v1989 = vsel %vm1498, %v1987, %v1988
      %v1990 = vrot.slane %v1893, 2
      %v1991 = vsel %vm1498, %v1988, %v1990
      %v1992 = vrot.slane %v1894, 2
      %v1993 = vrot.slane %v1895, 2
      %v1994 = vsel %vm1498, %v1992, %v1993
      %v1995 = vrot.slane %v1896, 2
      %v1996 = vsel %vm1498, %v1993, %v1995
      %v1997 = vrot.slane %v1897, 2
      %v1998 = vrot.slane %v1898, 2
      %v1999 = vsel %vm1498, %v1997, %v1998
      %v2000 = vrot.slane %v1899, 2
      %v2001 = vsel %vm1498, %v1998, %v2000
      %v2002 = vrot.slane %v1900, 2
      %v2003 = vrot.slane %v1901, 2
      %v2004 = vsel %vm1498, %v2002, %v2003
      %v2005 = vrot.slane %v1902, 2
      %v2006 = vsel %vm1498, %v2003, %v2005
      %v2007 = vrot.slane %v1903, 2
      %v2008 = vrot.slane %v1904, 2
      %v2009 = vsel %vm1498, %v2007, %v2008
      %v2010 = vrot.slane %v1905, 2
      %v2011 = vsel %vm1498, %v2008, %v2010
      %v2012 = vrot.slane %v1906, 2
      %v2013 = vrot.slane %v1907, 2
      %v2014 = vsel %vm1498, %v2012, %v2013
      %v2015 = vrot.slane %v1908, 2
      %v2016 = vsel %vm1498, %v2013, %v2015
      %v2017 = vrot.slane %v1909, 2
      %v2018 = vrot.slane %v1910, 2
      %v2019 = vsel %vm1498, %v2017, %v2018
      %v2020 = vrot.slane %v1911, 2
      %v2021 = vsel %vm1498, %v2018, %v2020
      %v2022 = vrot.slane %v1912, 2
      %v2023 = vrot.slane %v1913, 2
      %v2024 = vsel %vm1498, %v2022, %v2023
      %v2025 = vrot.slane %v1914, 2
      %v2026 = vsel %vm1498, %v2023, %v2025
      %v2027 = vrot.slane %v1915, 2
      %v2028 = vrot.slane %v1916, 2
      %v2029 = vsel %vm1498, %v2027, %v2028
      %v2030 = vrot.slane %v1917, 2
      %v2031 = vsel %vm1498, %v2028, %v2030
      %v2032 = vrot.slane %v1918, 2
      %v2033 = vrot.slane %v1919, 2
      %v2034 = vsel %vm1498, %v2032, %v2033
      %v2035 = vrot.slane %v1920, 2
      %v2036 = vsel %vm1498, %v2033, %v2035
      %v2037 = vrot.slane %v1921, 2
      %v2038 = vrot.slane %v1922, 2
      %v2039 = vsel %vm1498, %v2037, %v2038
      %v2040 = vrot.slane %v1923, 2
      %v2041 = vsel %vm1498, %v2038, %v2040
      %v2042 = vrot.slane %v1924, 2
      %v2043 = vrot.slane %v1925, 2
      %v2044 = vsel %vm1498, %v2042, %v2043
      %v2045 = vrot.slane %v1926, 2
      %v2046 = vsel %vm1498, %v2043, %v2045
      %v2047 = vrot.slane %v1927, 2
      %v2048 = vrot.slane %v1928, 2
      %v2049 = vsel %vm1498, %v2047, %v2048
      %v2050 = vrot.slane %v1929, 2
      %v2051 = vsel %vm1498, %v2048, %v2050
      %v2052 = vrot.slane %v1930, 2
      %v2053 = vrot.slane %v1931, 2
      %v2054 = vsel %vm1498, %v2052, %v2053
      %v2055 = vrot.slane %v1932, 2
      %v2056 = vsel %vm1498, %v2053, %v2055
      %v2057 = vrot.slane %v1933, 2
      %v2058 = vrot.slane %v1934, 2
      %v2059 = vsel %vm1498, %v2057, %v2058
      %v2060 = vrot.slane %v1935, 2
      %v2061 = vsel %vm1498, %v2058, %v2060
      %v2062 = vrot.slane %v1936, 2
      %v2063 = vrot.slane %v1937, 2
      %v2064 = vsel %vm1498, %v2062, %v2063
      %v2065 = vrot.slane %v1938, 2
      %v2066 = vsel %vm1498, %v2063, %v2065
      %v2099 = vadd.f32 %v1855, %v1989
      %v2100 = vadd.f32 %v1856, %v1991
      %v2101 = vadd.f32 %v1857, %v1994
      %v2102 = vadd.f32 %v1858, %v1996
      %v2103 = vadd.f32 %v1859, %v1999
      %v2104 = vadd.f32 %v1860, %v2001
      %v2105 = vadd.f32 %v1861, %v2004
      %v2106 = vadd.f32 %v1862, %v2006
      %v2107 = vadd.f32 %v1863, %v2009
      %v2108 = vadd.f32 %v1864, %v2011
      %v2109 = vadd.f32 %v1865, %v2014
      %v2110 = vadd.f32 %v1866, %v2016
      %v2111 = vadd.f32 %v1867, %v2019
      %v2112 = vadd.f32 %v1868, %v2021
      %v2113 = vadd.f32 %v1869, %v2024
      %v2114 = vadd.f32 %v1870, %v2026
      %v2115 = vadd.f32 %v1871, %v2029
      %v2116 = vadd.f32 %v1872, %v2031
      %v2117 = vadd.f32 %v1873, %v2034
      %v2118 = vadd.f32 %v1874, %v2036
      %v2119 = vadd.f32 %v1875, %v2039
      %v2120 = vadd.f32 %v1876, %v2041
      %v2121 = vadd.f32 %v1877, %v2044
      %v2122 = vadd.f32 %v1878, %v2046
      %v2123 = vadd.f32 %v1879, %v2049
      %v2124 = vadd.f32 %v1880, %v2051
      %v2125 = vadd.f32 %v1881, %v2054
      %v2126 = vadd.f32 %v1882, %v2056
      %v2127 = vadd.f32 %v1883, %v2059
      %v2128 = vadd.f32 %v1884, %v2061
      %v2129 = vadd.f32 %v1885, %v2064
      %v2130 = vadd.f32 %v1886, %v2066
      %v2131 = vpack.c.bf16 %v2100, %v2099
      %v2132 = vpack.c.bf16 %v2102, %v2101
      %v2133 = vpack.c.bf16 %v2104, %v2103
      %v2134 = vpack.c.bf16 %v2106, %v2105
      %v2135 = vpack.c.bf16 %v2108, %v2107
      %v2136 = vpack.c.bf16 %v2110, %v2109
      %v2137 = vpack.c.bf16 %v2112, %v2111
      %v2138 = vpack.c.bf16 %v2114, %v2113
      %v2139 = vpack.c.bf16 %v2116, %v2115
      %v2140 = vpack.c.bf16 %v2118, %v2117
      %v2141 = vpack.c.bf16 %v2120, %v2119
      %v2142 = vpack.c.bf16 %v2122, %v2121
      %v2143 = vpack.c.bf16 %v2124, %v2123
      %v2144 = vpack.c.bf16 %v2126, %v2125
      %v2145 = vpack.c.bf16 %v2128, %v2127
      %v2146 = vpack.c.bf16 %v2130, %v2129
      %v2147 = vld [vmem:[%s2] sm:$0xf]
      %v2148 = vld [vmem:[%s2 + $0x4] sm:$0xf]
      %v2149 = vld [vmem:[%s2 + $0x8] sm:$0xf]
      %v2150 = vld [vmem:[%s2 + $0xc] sm:$0xf]
      %v2151 = vld [vmem:[%s2 + $0x10] sm:$0xf]
      %v2152 = vld [vmem:[%s2 + $0x14] sm:$0xf]
      %v2153 = vld [vmem:[%s2 + $0x18] sm:$0xf]
      %v2154 = vld [vmem:[%s2 + $0x1c] sm:$0xf]
      %v2155 = vld [vmem:[%s2 + $0x20] sm:$0xf]
      %v2156 = vld [vmem:[%s2 + $0x24] sm:$0xf]
      %v2157 = vld [vmem:[%s2 + $0x28] sm:$0xf]
      %v2158 = vld [vmem:[%s2 + $0x2c] sm:$0xf]
      %v2159 = vld [vmem:[%s2 + $0x30] sm:$0xf]
      %v2160 = vld [vmem:[%s2 + $0x34] sm:$0xf]
      %v2161 = vld [vmem:[%s2 + $0x38] sm:$0xf]
      %v2162 = vld [vmem:[%s2 + $0x3c] sm:$0xf]
      %v2163 = vld [vmem:[%s3] sm:$0x1]
      %v2165 = vlaneseq
      %v2166 = vshrl.u32 %v2165, 7
      %v2167 = vsub.s32 0, %v2166
      %v2168 = vrot.slane %v2163, %v2167
      %v2186 = vunpack.c.l.b16 %v2147
      %v2187 = vunpack.c.l.b16 %v2148
      %v2188 = vunpack.c.l.b16 %v2149
      %v2189 = vunpack.c.l.b16 %v2150
      %v2190 = vunpack.c.l.b16 %v2151
      %v2191 = vunpack.c.l.b16 %v2152
      %v2192 = vunpack.c.l.b16 %v2153
      %v2193 = vunpack.c.l.b16 %v2154
      %v2194 = vunpack.c.l.b16 %v2155
      %v2195 = vunpack.c.l.b16 %v2156
      %v2196 = vunpack.c.l.b16 %v2157
      %v2197 = vunpack.c.l.b16 %v2158
      %v2198 = vunpack.c.l.b16 %v2159
      %v2199 = vunpack.c.l.b16 %v2160
      %v2200 = vunpack.c.l.b16 %v2161
      %v2201 = vunpack.c.l.b16 %v2162
      %v2202 = vpack.c.b16 %v2187, %v2186
      %v2203 = vpack.c.b16 %v2189, %v2188
      %v2204 = vpack.c.b16 %v2191, %v2190
      %v2205 = vpack.c.b16 %v2193, %v2192
      %v2206 = vpack.c.b16 %v2195, %v2194
      %v2207 = vpack.c.b16 %v2197, %v2196
      %v2208 = vpack.c.b16 %v2199, %v2198
      %v2209 = vpack.c.b16 %v2201, %v2200
      %2218 = vmatprep.subr.bf16.mxu0 0
      %2219 = vmatpush1.bf16.msra.mxu0 %v2202
      %2220 = vmatprep.subr.bf16.mxu0 0
      %2221 = vmatpush1.bf16.msra.mxu0 %v2203
      %2222 = vmatprep.subr.bf16.mxu0 0
      %2223 = vmatpush1.bf16.msra.mxu0 %v2204
      %2224 = vmatprep.subr.bf16.mxu0 0
      %2225 = vmatpush1.bf16.msra.mxu0 %v2205
      %2226 = vmatprep.subr.bf16.mxu0 0
      %2227 = vmatpush1.bf16.msra.mxu0 %v2206
      %2228 = vmatprep.subr.bf16.mxu0 0
      %2229 = vmatpush1.bf16.msra.mxu0 %v2207
      %2230 = vmatprep.subr.bf16.mxu0 0
      %2231 = vmatpush1.bf16.msra.mxu0 %v2208
      %2232 = vmatprep.subr.bf16.mxu0 0
      %2233 = vmatpush1.bf16.msra.mxu0 %v2209
      %2234 = vmatprep.subr.bf16.mxu0 0
      %2235 = vmatpush1.bf16.msra.mxu0 0
      %2236 = vmatprep.subr.bf16.mxu0 0
      %2237 = vmatpush1.bf16.msra.mxu0 0
      %2238 = vmatprep.subr.bf16.mxu0 0
      %2239 = vmatpush1.bf16.msra.mxu0 0
      %2240 = vmatprep.subr.bf16.mxu0 0
      %2241 = vmatpush1.bf16.msra.mxu0 0
      %2242 = vmatprep.subr.bf16.mxu0 0
      %2243 = vmatpush1.bf16.msra.mxu0 0
      %2244 = vmatprep.subr.bf16.mxu0 0
      %2245 = vmatpush1.bf16.msra.mxu0 0
      %2246 = vmatprep.subr.bf16.mxu0 0
      %2247 = vmatpush1.bf16.msra.mxu0 0
      %2248 = vmatprep.subr.bf16.mxu0 0
      %2249 = vmatpush1.bf16.msra.mxu0 0
      %2250 = vmatprep.mubr.bf16.mxu0 0
      %2251 = vmatmul.mubr.bf16.gmra.mrb[0].mxu0 %v2131
      %v2252 = vpop.f32.mrb[0].mxu0
      %v2253 = vadd.f32 %v2168, %v2252
      %v2254 = vpop.f32.mrb[0].mxu0
      %v2255 = vpop.f32.mrb[0].mxu0
      %v2256 = vadd.f32 %v2168, %v2255
      %v2257 = vpop.f32.mrb[0].mxu0
      %2258 = vmatprep.mubr.bf16.mxu0 0
      %2259 = vmatmul.mubr.bf16.gmra.mrb[0].mxu0 %v2132
      %v2260 = vpop.f32.mrb[0].mxu0
      %v2261 = vadd.f32 %v2168, %v2260
      %v2262 = vpop.f32.mrb[0].mxu0
      %v2263 = vpop.f32.mrb[0].mxu0
      %v2264 = vadd.f32 %v2168, %v2263
      %v2265 = vpop.f32.mrb[0].mxu0
      %2266 = vmatprep.mubr.bf16.mxu0 0
      %2267 = vmatmul.mubr.bf16.gmra.mrb[0].mxu0 %v2133
      %v2268 = vpop.f32.mrb[0].mxu0
      %v2269 = vadd.f32 %v2168, %v2268
      %v2270 = vpop.f32.mrb[0].mxu0
      %v2271 = vpop.f32.mrb[0].mxu0
      %v2272 = vadd.f32 %v2168, %v2271
      %v2273 = vpop.f32.mrb[0].mxu0
      %2274 = vmatprep.mubr.bf16.mxu0 0
      %2275 = vmatmul.mubr.bf16.gmra.mrb[0].mxu0 %v2134
      %v2276 = vpop.f32.mrb[0].mxu0
      %v2277 = vadd.f32 %v2168, %v2276
      %v2278 = vpop.f32.mrb[0].mxu0
      %v2279 = vpop.f32.mrb[0].mxu0
      %v2280 = vadd.f32 %v2168, %v2279
      %v2281 = vpop.f32.mrb[0].mxu0
      %2282 = vmatprep.mubr.bf16.mxu0 0
      %2283 = vmatmul.mubr.bf16.gmra.mrb[0].mxu0 %v2135
      %v2284 = vpop.f32.mrb[0].mxu0
      %v2285 = vadd.f32 %v2168, %v2284
      %v2286 = vpop.f32.mrb[0].mxu0
      %v2287 = vpop.f32.mrb[0].mxu0
      %v2288 = vadd.f32 %v2168, %v2287
      %v2289 = vpop.f32.mrb[0].mxu0
      %2290 = vmatprep.mubr.bf16.mxu0 0
      %2291 = vmatmul.mubr.bf16.gmra.mrb[0].mxu0 %v2136
      %v2292 = vpop.f32.mrb[0].mxu0
      %v2293 = vadd.f32 %v2168, %v2292
      %v2294 = vpop.f32.mrb[0].mxu0
      %v2295 = vpop.f32.mrb[0].mxu0
      %v2296 = vadd.f32 %v2168, %v2295
      %v2297 = vpop.f32.mrb[0].mxu0
      %2298 = vmatprep.mubr.bf16.mxu0 0
      %2299 = vmatmul.mubr.bf16.gmra.mrb[0].mxu0 %v2137
      %v2300 = vpop.f32.mrb[0].mxu0
      %v2301 = vadd.f32 %v2168, %v2300
      %v2302 = vpop.f32.mrb[0].mxu0
      %v2303 = vpop.f32.mrb[0].mxu0
      %v2304 = vadd.f32 %v2168, %v2303
      %v2305 = vpop.f32.mrb[0].mxu0
      %2306 = vmatprep.mubr.bf16.mxu0 0
      %2307 = vmatmul.mubr.bf16.gmra.mrb[0].mxu0 %v2138
      %v2308 = vpop.f32.mrb[0].mxu0
      %v2309 = vadd.f32 %v2168, %v2308
      %v2310 = vpop.f32.mrb[0].mxu0
      %v2311 = vpop.f32.mrb[0].mxu0
      %v2312 = vadd.f32 %v2168, %v2311
      %v2313 = vpop.f32.mrb[0].mxu0
      %2314 = vmatprep.mubr.bf16.mxu0 0
      %2315 = vmatmul.mubr.bf16.gmra.mrb[0].mxu0 %v2139
      %v2316 = vpop.f32.mrb[0].mxu0
      %v2317 = vadd.f32 %v2168, %v2316
      %v2318 = vpop.f32.mrb[0].mxu0
      %v2319 = vpop.f32.mrb[0].mxu0
      %v2320 = vadd.f32 %v2168, %v2319
      %v2321 = vpop.f32.mrb[0].mxu0
      %2322 = vmatprep.mubr.bf16.mxu0 0
      %2323 = vmatmul.mubr.bf16.gmra.mrb[0].mxu0 %v2140
      %v2324 = vpop.f32.mrb[0].mxu0
      %v2325 = vadd.f32 %v2168, %v2324
      %v2326 = vpop.f32.mrb[0].mxu0
      %v2327 = vpop.f32.mrb[0].mxu0
      %v2328 = vadd.f32 %v2168, %v2327
      %v2329 = vpop.f32.mrb[0].mxu0
      %2330 = vmatprep.mubr.bf16.mxu0 0
      %2331 = vmatmul.mubr.bf16.gmra.mrb[0].mxu0 %v2141
      %v2332 = vpop.f32.mrb[0].mxu0
      %v2333 = vadd.f32 %v2168, %v2332
      %v2334 = vpop.f32.mrb[0].mxu0
      %v2335 = vpop.f32.mrb[0].mxu0
      %v2336 = vadd.f32 %v2168, %v2335
      %v2337 = vpop.f32.mrb[0].mxu0
      %2338 = vmatprep.mubr.bf16.mxu0 0
      %2339 = vmatmul.mubr.bf16.gmra.mrb[0].mxu0 %v2142
      %v2340 = vpop.f32.mrb[0].mxu0
      %v2341 = vadd.f32 %v2168, %v2340
      %v2342 = vpop.f32.mrb[0].mxu0
      %v2343 = vpop.f32.mrb[0].mxu0
      %v2344 = vadd.f32 %v2168, %v2343
      %v2345 = vpop.f32.mrb[0].mxu0
      %2346 = vmatprep.mubr.bf16.mxu0 0
      %2347 = vmatmul.mubr.bf16.gmra.mrb[0].mxu0 %v2143
      %v2348 = vpop.f32.mrb[0].mxu0
      %v2349 = vadd.f32 %v2168, %v2348
      %v2350 = vpop.f32.mrb[0].mxu0
      %v2351 = vpop.f32.mrb[0].mxu0
      %v2352 = vadd.f32 %v2168, %v2351
      %v2353 = vpop.f32.mrb[0].mxu0
      %2354 = vmatprep.mubr.bf16.mxu0 0
      %2355 = vmatmul.mubr.bf16.gmra.mrb[0].mxu0 %v2144
      %v2356 = vpop.f32.mrb[0].mxu0
      %v2357 = vadd.f32 %v2168, %v2356
      %v2358 = vpop.f32.mrb[0].mxu0
      %v2359 = vpop.f32.mrb[0].mxu0
      %v2360 = vadd.f32 %v2168, %v2359
      %v2361 = vpop.f32.mrb[0].mxu0
      %2362 = vmatprep.mubr.bf16.mxu0 0
      %2363 = vmatmul.mubr.bf16.gmra.mrb[0].mxu0 %v2145
      %v2364 = vpop.f32.mrb[0].mxu0
      %v2365 = vadd.f32 %v2168, %v2364
      %v2366 = vpop.f32.mrb[0].mxu0
      %v2367 = vpop.f32.mrb[0].mxu0
      %v2368 = vadd.f32 %v2168, %v2367
      %v2369 = vpop.f32.mrb[0].mxu0
      %2370 = vmatprep.mubr.bf16.mxu0 0
      %2371 = vmatmul.mubr.bf16.gmra.mrb[0].mxu0 %v2146
      %v2372 = vpop.f32.mrb[0].mxu0
      %v2373 = vadd.f32 %v2168, %v2372
      %v2374 = vpop.f32.mrb[0].mxu0
      %v2375 = vpop.f32.mrb[0].mxu0
      %v2376 = vadd.f32 %v2168, %v2375
      %v2377 = vpop.f32.mrb[0].mxu0
      %2378 = vdwg.mxu0
      %v2379 = vmax.f32 %v2253, 0.0
      %v2380 = vmax.f32 %v2256, 0.0
      %v2381 = vmax.f32 %v2261, 0.0
      %v2382 = vmax.f32 %v2264, 0.0
      %v2383 = vmax.f32 %v2269, 0.0
      %v2384 = vmax.f32 %v2272, 0.0
      %v2385 = vmax.f32 %v2277, 0.0
      %v2386 = vmax.f32 %v2280, 0.0
      %v2387 = vmax.f32 %v2285, 0.0
      %v2388 = vmax.f32 %v2288, 0.0
      %v2389 = vmax.f32 %v2293, 0.0
      %v2390 = vmax.f32 %v2296, 0.0
      %v2391 = vmax.f32 %v2301, 0.0
      %v2392 = vmax.f32 %v2304, 0.0
      %v2393 = vmax.f32 %v2309, 0.0
      %v2394 = vmax.f32 %v2312, 0.0
      %v2395 = vmax.f32 %v2317, 0.0
      %v2396 = vmax.f32 %v2320, 0.0
      %v2397 = vmax.f32 %v2325, 0.0
      %v2398 = vmax.f32 %v2328, 0.0
      %v2399 = vmax.f32 %v2333, 0.0
      %v2400 = vmax.f32 %v2336, 0.0
      %v2401 = vmax.f32 %v2341, 0.0
      %v2402 = vmax.f32 %v2344, 0.0
      %v2403 = vmax.f32 %v2349, 0.0
      %v2404 = vmax.f32 %v2352, 0.0
      %v2405 = vmax.f32 %v2357, 0.0
      %v2406 = vmax.f32 %v2360, 0.0
      %v2407 = vmax.f32 %v2365, 0.0
      %v2408 = vmax.f32 %v2368, 0.0
      %v2409 = vmax.f32 %v2373, 0.0
      %v2410 = vmax.f32 %v2376, 0.0
      %2411 = vst [vmem:[%s371 + $0x1] sm:$0xff] %v2379
      %2412 = vst [vmem:[%s371 + $0x9] sm:$0xff] %v2380
      %2413 = vst [vmem:[%s371 + $0x19] sm:$0xff] %v2381
      %2414 = vst [vmem:[%s371 + $0x21] sm:$0xff] %v2382
      %2415 = vst [vmem:[%s371 + $0x31] sm:$0xff] %v2383
      %2416 = vst [vmem:[%s371 + $0x39] sm:$0xff] %v2384
      %2417 = vst [vmem:[%s371 + $0x49] sm:$0xff] %v2385
      %2418 = vst [vmem:[%s371 + $0x51] sm:$0xff] %v2386
      %2419 = vst [vmem:[%s371 + $0x61] sm:$0xff] %v2387
      %2420 = vst [vmem:[%s371 + $0x69] sm:$0xff] %v2388
      %2421 = vst [vmem:[%s371 + $0x79] sm:$0xff] %v2389
      %2422 = vst [vmem:[%s371 + $0x81] sm:$0xff] %v2390
      %2423 = vst [vmem:[%s371 + $0x91] sm:$0xff] %v2391
      %2424 = vst [vmem:[%s371 + $0x99] sm:$0xff] %v2392
      %2425 = vst [vmem:[%s371 + $0xa9] sm:$0xff] %v2393
      %2426 = vst [vmem:[%s371 + $0xb1] sm:$0xff] %v2394
      %2427 = vst [vmem:[%s371 + $0xc1] sm:$0xff] %v2395
      %2428 = vst [vmem:[%s371 + $0xc9] sm:$0xff] %v2396
      %2429 = vst [vmem:[%s371 + $0xd9] sm:$0xff] %v2397
      %2430 = vst [vmem:[%s371 + $0xe1] sm:$0xff] %v2398
      %2431 = vst [vmem:[%s371 + $0xf1] sm:$0xff] %v2399
      %2432 = vst [vmem:[%s371 + $0xf9] sm:$0xff] %v2400
      %2433 = vst [vmem:[%s371 + $0x109] sm:$0xff] %v2401
      %2434 = vst [vmem:[%s371 + $0x111] sm:$0xff] %v2402
      %2435 = vst [vmem:[%s371 + $0x121] sm:$0xff] %v2403
      %2436 = vst [vmem:[%s371 + $0x129] sm:$0xff] %v2404
      %2437 = vst [vmem:[%s371 + $0x139] sm:$0xff] %v2405
      %2438 = vst [vmem:[%s371 + $0x141] sm:$0xff] %v2406
      %2439 = vst [vmem:[%s371 + $0x151] sm:$0xff] %v2407
      %2440 = vst [vmem:[%s371 + $0x159] sm:$0xff] %v2408
      %2441 = vst [vmem:[%s371 + $0x169] sm:$0xff] %v2409
      %2442 = vst [vmem:[%s371 + $0x171] sm:$0xff] %v2410
      %v2443 = vld [vmem:[#allocation2] sm:$0xff]
      %v2444 = vld [vmem:[#allocation2 + $0x8] sm:$0xff]
      %v2445 = vld [vmem:[#allocation2 + $0x10] sm:$0x3]
      %v2446 = vld [vmem:[#allocation2 + $0x18] sm:$0xff]
      %v2447 = vld [vmem:[#allocation2 + $0x20] sm:$0xff]
      %v2448 = vld [vmem:[#allocation2 + $0x28] sm:$0x3]
      %v2449 = vld [vmem:[#allocation2 + $0x30] sm:$0xff]
      %v2450 = vld [vmem:[#allocation2 + $0x38] sm:$0xff]
      %v2451 = vld [vmem:[#allocation2 + $0x40] sm:$0x3]
      %v2452 = vld [vmem:[#allocation2 + $0x48] sm:$0xff]
      %v2453 = vld [vmem:[#allocation2 + $0x50] sm:$0xff]
      %v2454 = vld [vmem:[#allocation2 + $0x58] sm:$0x3]
      %v2455 = vld [vmem:[#allocation2 + $0x60] sm:$0xff]
      %v2456 = vld [vmem:[#allocation2 + $0x68] sm:$0xff]
      %v2457 = vld [vmem:[#allocation2 + $0x70] sm:$0x3]
      %v2458 = vld [vmem:[#allocation2 + $0x78] sm:$0xff]
      %v2459 = vld [vmem:[#allocation2 + $0x80] sm:$0xff]
      %v2460 = vld [vmem:[#allocation2 + $0x88] sm:$0x3]
      %v2461 = vld [vmem:[#allocation2 + $0x90] sm:$0xff]
      %v2462 = vld [vmem:[#allocation2 + $0x98] sm:$0xff]
      %v2463 = vld [vmem:[#allocation2 + $0xa0] sm:$0x3]
      %v2464 = vld [vmem:[#allocation2 + $0xa8] sm:$0xff]
      %v2465 = vld [vmem:[#allocation2 + $0xb0] sm:$0xff]
      %v2466 = vld [vmem:[#allocation2 + $0xb8] sm:$0x3]
      %v2467 = vld [vmem:[#allocation2 + $0xc0] sm:$0xff]
      %v2468 = vld [vmem:[#allocation2 + $0xc8] sm:$0xff]
      %v2469 = vld [vmem:[#allocation2 + $0xd0] sm:$0x3]
      %v2470 = vld [vmem:[#allocation2 + $0xd8] sm:$0xff]
      %v2471 = vld [vmem:[#allocation2 + $0xe0] sm:$0xff]
      %v2472 = vld [vmem:[#allocation2 + $0xe8] sm:$0x3]
      %v2473 = vld [vmem:[#allocation2 + $0xf0] sm:$0xff]
      %v2474 = vld [vmem:[#allocation2 + $0xf8] sm:$0xff]
      %v2475 = vld [vmem:[#allocation2 + $0x100] sm:$0x3]
      %v2476 = vld [vmem:[#allocation2 + $0x108] sm:$0xff]
      %v2477 = vld [vmem:[#allocation2 + $0x110] sm:$0xff]
      %v2478 = vld [vmem:[#allocation2 + $0x118] sm:$0x3]
      %v2479 = vld [vmem:[#allocation2 + $0x120] sm:$0xff]
      %v2480 = vld [vmem:[#allocation2 + $0x128] sm:$0xff]
      %v2481 = vld [vmem:[#allocation2 + $0x130] sm:$0x3]
      %v2482 = vld [vmem:[#allocation2 + $0x138] sm:$0xff]
      %v2483 = vld [vmem:[#allocation2 + $0x140] sm:$0xff]
      %v2484 = vld [vmem:[#allocation2 + $0x148] sm:$0x3]
      %v2485 = vld [vmem:[#allocation2 + $0x150] sm:$0xff]
      %v2486 = vld [vmem:[#allocation2 + $0x158] sm:$0xff]
      %v2487 = vld [vmem:[#allocation2 + $0x160] sm:$0x3]
      %v2488 = vld [vmem:[#allocation2 + $0x168] sm:$0xff]
      %v2489 = vld [vmem:[#allocation2 + $0x170] sm:$0xff]
      %v2490 = vld [vmem:[#allocation2 + $0x178] sm:$0x3]
      %v2491 = vld [vmem:[#allocation2 + $0x180] sm:$0xff]
      %v2492 = vld [vmem:[#allocation2 + $0x188] sm:$0xff]
      %v2493 = vld [vmem:[#allocation2 + $0x190] sm:$0x3]
      %v2494 = vld [vmem:[#allocation2 + $0x198] sm:$0xff]
      %v2495 = vld [vmem:[#allocation2 + $0x1a0] sm:$0xff]
      %v2496 = vld [vmem:[#allocation2 + $0x1a8] sm:$0x3]
      %s2497 = scalar_lea.vmem %s1, 12
      %v2498 = vld [vmem:[%s2497] sm:$0x7]
      %v2499 = vld [vmem:[%s2497 + $0x4] sm:$0x7]
      %v2500 = vld [vmem:[%s2497 + $0x8] sm:$0x7]
      %v2501 = vlaneseq
      %v2502 = vshrl.u32 %v2501, 7
      %v2503 = vsub.s32 0, %v2502
      %v2504 = vrot.slane %v2498, %v2503
      %v2505 = vmul.f32 %v2443, %v2504
      %v2506 = vmul.f32 %v2444, %v2504
      %v2507 = vmul.f32 %v2446, %v2504
      %v2508 = vmul.f32 %v2447, %v2504
      %v2509 = vmul.f32 %v2449, %v2504
      %v2510 = vmul.f32 %v2450, %v2504
      %v2511 = vmul.f32 %v2452, %v2504
      %v2512 = vmul.f32 %v2453, %v2504
      %v2513 = vmul.f32 %v2455, %v2504
      %v2514 = vmul.f32 %v2456, %v2504
      %v2515 = vmul.f32 %v2458, %v2504
      %v2516 = vmul.f32 %v2459, %v2504
      %v2517 = vmul.f32 %v2461, %v2504
      %v2518 = vmul.f32 %v2462, %v2504
      %v2519 = vmul.f32 %v2464, %v2504
      %v2520 = vmul.f32 %v2465, %v2504
      %v2521 = vmul.f32 %v2467, %v2504
      %v2522 = vmul.f32 %v2468, %v2504
      %v2523 = vmul.f32 %v2470, %v2504
      %v2524 = vmul.f32 %v2471, %v2504
      %v2525 = vmul.f32 %v2473, %v2504
      %v2526 = vmul.f32 %v2474, %v2504
      %v2527 = vmul.f32 %v2476, %v2504
      %v2528 = vmul.f32 %v2477, %v2504
      %v2529 = vmul.f32 %v2479, %v2504
      %v2530 = vmul.f32 %v2480, %v2504
      %v2531 = vmul.f32 %v2482, %v2504
      %v2532 = vmul.f32 %v2483, %v2504
      %v2533 = vmul.f32 %v2485, %v2504
      %v2534 = vmul.f32 %v2486, %v2504
      %v2535 = vmul.f32 %v2488, %v2504
      %v2536 = vmul.f32 %v2489, %v2504
      %v2537 = vadd.f32 %v2505, 0.0
      %v2538 = vadd.f32 %v2506, 0.0
      %v2539 = vadd.f32 %v2507, 0.0
      %v2540 = vadd.f32 %v2508, 0.0
      %v2541 = vadd.f32 %v2509, 0.0
      %v2542 = vadd.f32 %v2510, 0.0
      %v2543 = vadd.f32 %v2511, 0.0
      %v2544 = vadd.f32 %v2512, 0.0
      %v2545 = vadd.f32 %v2513, 0.0
      %v2546 = vadd.f32 %v2514, 0.0
      %v2547 = vadd.f32 %v2515, 0.0
      %v2548 = vadd.f32 %v2516, 0.0
      %v2549 = vadd.f32 %v2517, 0.0
      %v2550 = vadd.f32 %v2518, 0.0
      %v2551 = vadd.f32 %v2519, 0.0
      %v2552 = vadd.f32 %v2520, 0.0
      %v2553 = vadd.f32 %v2521, 0.0
      %v2554 = vadd.f32 %v2522, 0.0
      %v2555 = vadd.f32 %v2523, 0.0
      %v2556 = vadd.f32 %v2524, 0.0
      %v2557 = vadd.f32 %v2525, 0.0
      %v2558 = vadd.f32 %v2526, 0.0
      %v2559 = vadd.f32 %v2527, 0.0
      %v2560 = vadd.f32 %v2528, 0.0
      %v2561 = vadd.f32 %v2529, 0.0
      %v2562 = vadd.f32 %v2530, 0.0
      %v2563 = vadd.f32 %v2531, 0.0
      %v2564 = vadd.f32 %v2532, 0.0
      %v2565 = vadd.f32 %v2533, 0.0
      %v2566 = vadd.f32 %v2534, 0.0
      %v2567 = vadd.f32 %v2535, 0.0
      %v2568 = vadd.f32 %v2536, 0.0
      %v2569 = vlaneseq
      %v2570 = vshrl.u32 %v2569, 7
      %v2571 = vsub.s32 0, %v2570
      %v2572 = vrot.slane %v2499, %v2571
      %v2573 = vmul.f32 %v2446, %v2572
      %v2574 = vmul.f32 %v2447, %v2572
      %v2575 = vmul.f32 %v2449, %v2572
      %v2576 = vmul.f32 %v2450, %v2572
      %v2577 = vmul.f32 %v2452, %v2572
      %v2578 = vmul.f32 %v2453, %v2572
      %v2579 = vmul.f32 %v2455, %v2572
      %v2580 = vmul.f32 %v2456, %v2572
      %v2581 = vmul.f32 %v2458, %v2572
      %v2582 = vmul.f32 %v2459, %v2572
      %v2583 = vmul.f32 %v2461, %v2572
      %v2584 = vmul.f32 %v2462, %v2572
      %v2585 = vmul.f32 %v2464, %v2572
      %v2586 = vmul.f32 %v2465, %v2572
      %v2587 = vmul.f32 %v2467, %v2572
      %v2588 = vmul.f32 %v2468, %v2572
      %v2589 = vmul.f32 %v2470, %v2572
      %v2590 = vmul.f32 %v2471, %v2572
      %v2591 = vmul.f32 %v2473, %v2572
      %v2592 = vmul.f32 %v2474, %v2572
      %v2593 = vmul.f32 %v2476, %v2572
      %v2594 = vmul.f32 %v2477, %v2572
      %v2595 = vmul.f32 %v2479, %v2572
      %v2596 = vmul.f32 %v2480, %v2572
      %v2597 = vmul.f32 %v2482, %v2572
      %v2598 = vmul.f32 %v2483, %v2572
      %v2599 = vmul.f32 %v2485, %v2572
      %v2600 = vmul.f32 %v2486, %v2572
      %v2601 = vmul.f32 %v2488, %v2572
      %v2602 = vmul.f32 %v2489, %v2572
      %v2603 = vmul.f32 %v2491, %v2572
      %v2604 = vmul.f32 %v2492, %v2572
      %v2605 = vadd.f32 %v2537, %v2573
      %v2606 = vadd.f32 %v2538, %v2574
      %v2607 = vadd.f32 %v2539, %v2575
      %v2608 = vadd.f32 %v2540, %v2576
      %v2609 = vadd.f32 %v2541, %v2577
      %v2610 = vadd.f32 %v2542, %v2578
      %v2611 = vadd.f32 %v2543, %v2579
      %v2612 = vadd.f32 %v2544, %v2580
      %v2613 = vadd.f32 %v2545, %v2581
      %v2614 = vadd.f32 %v2546, %v2582
      %v2615 = vadd.f32 %v2547, %v2583
      %v2616 = vadd.f32 %v2548, %v2584
      %v2617 = vadd.f32 %v2549, %v2585
      %v2618 = vadd.f32 %v2550, %v2586
      %v2619 = vadd.f32 %v2551, %v2587
      %v2620 = vadd.f32 %v2552, %v2588
      %v2621 = vadd.f32 %v2553, %v2589
      %v2622 = vadd.f32 %v2554, %v2590
      %v2623 = vadd.f32 %v2555, %v2591
      %v2624 = vadd.f32 %v2556, %v2592
      %v2625 = vadd.f32 %v2557, %v2593
      %v2626 = vadd.f32 %v2558, %v2594
      %v2627 = vadd.f32 %v2559, %v2595
      %v2628 = vadd.f32 %v2560, %v2596
      %v2629 = vadd.f32 %v2561, %v2597
      %v2630 = vadd.f32 %v2562, %v2598
      %v2631 = vadd.f32 %v2563, %v2599
      %v2632 = vadd.f32 %v2564, %v2600
      %v2633 = vadd.f32 %v2565, %v2601
      %v2634 = vadd.f32 %v2566, %v2602
      %v2635 = vadd.f32 %v2567, %v2603
      %v2636 = vadd.f32 %v2568, %v2604
      %v2637 = vlaneseq
      %v2638 = vshrl.u32 %v2637, 7
      %v2639 = vsub.s32 0, %v2638
      %v2640 = vrot.slane %v2500, %v2639
      %v2641 = vmul.f32 %v2449, %v2640
      %v2642 = vmul.f32 %v2450, %v2640
      %v2643 = vmul.f32 %v2452, %v2640
      %v2644 = vmul.f32 %v2453, %v2640
      %v2645 = vmul.f32 %v2455, %v2640
      %v2646 = vmul.f32 %v2456, %v2640
      %v2647 = vmul.f32 %v2458, %v2640
      %v2648 = vmul.f32 %v2459, %v2640
      %v2649 = vmul.f32 %v2461, %v2640
      %v2650 = vmul.f32 %v2462, %v2640
      %v2651 = vmul.f32 %v2464, %v2640
      %v2652 = vmul.f32 %v2465, %v2640
      %v2653 = vmul.f32 %v2467, %v2640
      %v2654 = vmul.f32 %v2468, %v2640
      %v2655 = vmul.f32 %v2470, %v2640
      %v2656 = vmul.f32 %v2471, %v2640
      %v2657 = vmul.f32 %v2473, %v2640
      %v2658 = vmul.f32 %v2474, %v2640
      %v2659 = vmul.f32 %v2476, %v2640
      %v2660 = vmul.f32 %v2477, %v2640
      %v2661 = vmul.f32 %v2479, %v2640
      %v2662 = vmul.f32 %v2480, %v2640
      %v2663 = vmul.f32 %v2482, %v2640
      %v2664 = vmul.f32 %v2483, %v2640
      %v2665 = vmul.f32 %v2485, %v2640
      %v2666 = vmul.f32 %v2486, %v2640
      %v2667 = vmul.f32 %v2488, %v2640
      %v2668 = vmul.f32 %v2489, %v2640
      %v2669 = vmul.f32 %v2491, %v2640
      %v2670 = vmul.f32 %v2492, %v2640
      %v2671 = vmul.f32 %v2494, %v2640
      %v2672 = vmul.f32 %v2495, %v2640
      %v2673 = vadd.f32 %v2605, %v2641
      %v2674 = vadd.f32 %v2606, %v2642
      %v2675 = vadd.f32 %v2607, %v2643
      %v2676 = vadd.f32 %v2608, %v2644
      %v2677 = vadd.f32 %v2609, %v2645
      %v2678 = vadd.f32 %v2610, %v2646
      %v2679 = vadd.f32 %v2611, %v2647
      %v2680 = vadd.f32 %v2612, %v2648
      %v2681 = vadd.f32 %v2613, %v2649
      %v2682 = vadd.f32 %v2614, %v2650
      %v2683 = vadd.f32 %v2615, %v2651
      %v2684 = vadd.f32 %v2616, %v2652
      %v2685 = vadd.f32 %v2617, %v2653
      %v2686 = vadd.f32 %v2618, %v2654
      %v2687 = vadd.f32 %v2619, %v2655
      %v2688 = vadd.f32 %v2620, %v2656
      %v2689 = vadd.f32 %v2621, %v2657
      %v2690 = vadd.f32 %v2622, %v2658
      %v2691 = vadd.f32 %v2623, %v2659
      %v2692 = vadd.f32 %v2624, %v2660
      %v2693 = vadd.f32 %v2625, %v2661
      %v2694 = vadd.f32 %v2626, %v2662
      %v2695 = vadd.f32 %v2627, %v2663
      %v2696 = vadd.f32 %v2628, %v2664
      %v2697 = vadd.f32 %v2629, %v2665
      %v2698 = vadd.f32 %v2630, %v2666
      %v2699 = vadd.f32 %v2631, %v2667
      %v2700 = vadd.f32 %v2632, %v2668
      %v2701 = vadd.f32 %v2633, %v2669
      %v2702 = vadd.f32 %v2634, %v2670
      %v2703 = vadd.f32 %v2635, %v2671
      %v2704 = vadd.f32 %v2636, %v2672
      %v2705 = vlaneseq
      %v2706 = vshrl.u32 %v2705, 7
      %v2707 = vsub.s32 1, %v2706
      %v2708 = vrot.slane %v2498, %v2707
      %v2709 = vmul.f32 %v2443, %v2708
      %v2710 = vmul.f32 %v2444, %v2708
      %v2711 = vmul.f32 %v2445, %v2708
      %v2712 = vmul.f32 %v2446, %v2708
      %v2713 = vmul.f32 %v2447, %v2708
      %v2714 = vmul.f32 %v2448, %v2708
      %v2715 = vmul.f32 %v2449, %v2708
      %v2716 = vmul.f32 %v2450, %v2708
      %v2717 = vmul.f32 %v2451, %v2708
      %v2718 = vmul.f32 %v2452, %v2708
      %v2719 = vmul.f32 %v2453, %v2708
      %v2720 = vmul.f32 %v2454, %v2708
      %v2721 = vmul.f32 %v2455, %v2708
      %v2722 = vmul.f32 %v2456, %v2708
      %v2723 = vmul.f32 %v2457, %v2708
      %v2724 = vmul.f32 %v2458, %v2708
      %v2725 = vmul.f32 %v2459, %v2708
      %v2726 = vmul.f32 %v2460, %v2708
      %v2727 = vmul.f32 %v2461, %v2708
      %v2728 = vmul.f32 %v2462, %v2708
      %v2729 = vmul.f32 %v2463, %v2708
      %v2730 = vmul.f32 %v2464, %v2708
      %v2731 = vmul.f32 %v2465, %v2708
      %v2732 = vmul.f32 %v2466, %v2708
      %v2733 = vmul.f32 %v2467, %v2708
      %v2734 = vmul.f32 %v2468, %v2708
      %v2735 = vmul.f32 %v2469, %v2708
      %v2736 = vmul.f32 %v2470, %v2708
      %v2737 = vmul.f32 %v2471, %v2708
      %v2738 = vmul.f32 %v2472, %v2708
      %v2739 = vmul.f32 %v2473, %v2708
      %v2740 = vmul.f32 %v2474, %v2708
      %v2741 = vmul.f32 %v2475, %v2708
      %v2742 = vmul.f32 %v2476, %v2708
      %v2743 = vmul.f32 %v2477, %v2708
      %v2744 = vmul.f32 %v2478, %v2708
      %v2745 = vmul.f32 %v2479, %v2708
      %v2746 = vmul.f32 %v2480, %v2708
      %v2747 = vmul.f32 %v2481, %v2708
      %v2748 = vmul.f32 %v2482, %v2708
      %v2749 = vmul.f32 %v2483, %v2708
      %v2750 = vmul.f32 %v2484, %v2708
      %v2751 = vmul.f32 %v2485, %v2708
      %v2752 = vmul.f32 %v2486, %v2708
      %v2753 = vmul.f32 %v2487, %v2708
      %v2754 = vmul.f32 %v2488, %v2708
      %v2755 = vmul.f32 %v2489, %v2708
      %v2756 = vmul.f32 %v2490, %v2708
      %v2805 = vrot.slane %v2709, 1
      %v2806 = vrot.slane %v2710, 1
      %v2807 = vsel %vm765, %v2805, %v2806
      %v2808 = vrot.slane %v2711, 1
      %v2809 = vsel %vm765, %v2806, %v2808
      %v2810 = vrot.slane %v2712, 1
      %v2811 = vrot.slane %v2713, 1
      %v2812 = vsel %vm765, %v2810, %v2811
      %v2813 = vrot.slane %v2714, 1
      %v2814 = vsel %vm765, %v2811, %v2813
      %v2815 = vrot.slane %v2715, 1
      %v2816 = vrot.slane %v2716, 1
      %v2817 = vsel %vm765, %v2815, %v2816
      %v2818 = vrot.slane %v2717, 1
      %v2819 = vsel %vm765, %v2816, %v2818
      %v2820 = vrot.slane %v2718, 1
      %v2821 = vrot.slane %v2719, 1
      %v2822 = vsel %vm765, %v2820, %v2821
      %v2823 = vrot.slane %v2720, 1
      %v2824 = vsel %vm765, %v2821, %v2823
      %v2825 = vrot.slane %v2721, 1
      %v2826 = vrot.slane %v2722, 1
      %v2827 = vsel %vm765, %v2825, %v2826
      %v2828 = vrot.slane %v2723, 1
      %v2829 = vsel %vm765, %v2826, %v2828
      %v2830 = vrot.slane %v2724, 1
      %v2831 = vrot.slane %v2725, 1
      %v2832 = vsel %vm765, %v2830, %v2831
      %v2833 = vrot.slane %v2726, 1
      %v2834 = vsel %vm765, %v2831, %v2833
      %v2835 = vrot.slane %v2727, 1
      %v2836 = vrot.slane %v2728, 1
      %v2837 = vsel %vm765, %v2835, %v2836
      %v2838 = vrot.slane %v2729, 1
      %v2839 = vsel %vm765, %v2836, %v2838
      %v2840 = vrot.slane %v2730, 1
      %v2841 = vrot.slane %v2731, 1
      %v2842 = vsel %vm765, %v2840, %v2841
      %v2843 = vrot.slane %v2732, 1
      %v2844 = vsel %vm765, %v2841, %v2843
      %v2845 = vrot.slane %v2733, 1
      %v2846 = vrot.slane %v2734, 1
      %v2847 = vsel %vm765, %v2845, %v2846
      %v2848 = vrot.slane %v2735, 1
      %v2849 = vsel %vm765, %v2846, %v2848
      %v2850 = vrot.slane %v2736, 1
      %v2851 = vrot.slane %v2737, 1
      %v2852 = vsel %vm765, %v2850, %v2851
      %v2853 = vrot.slane %v2738, 1
      %v2854 = vsel %vm765, %v2851, %v2853
      %v2855 = vrot.slane %v2739, 1
      %v2856 = vrot.slane %v2740, 1
      %v2857 = vsel %vm765, %v2855, %v2856
      %v2858 = vrot.slane %v2741, 1
      %v2859 = vsel %vm765, %v2856, %v2858
      %v2860 = vrot.slane %v2742, 1
      %v2861 = vrot.slane %v2743, 1
      %v2862 = vsel %vm765, %v2860, %v2861
      %v2863 = vrot.slane %v2744, 1
      %v2864 = vsel %vm765, %v2861, %v2863
      %v2865 = vrot.slane %v2745, 1
      %v2866 = vrot.slane %v2746, 1
      %v2867 = vsel %vm765, %v2865, %v2866
      %v2868 = vrot.slane %v2747, 1
      %v2869 = vsel %vm765, %v2866, %v2868
      %v2870 = vrot.slane %v2748, 1
      %v2871 = vrot.slane %v2749, 1
      %v2872 = vsel %vm765, %v2870, %v2871
      %v2873 = vrot.slane %v2750, 1
      %v2874 = vsel %vm765, %v2871, %v2873
      %v2875 = vrot.slane %v2751, 1
      %v2876 = vrot.slane %v2752, 1
      %v2877 = vsel %vm765, %v2875, %v2876
      %v2878 = vrot.slane %v2753, 1
      %v2879 = vsel %vm765, %v2876, %v2878
      %v2880 = vrot.slane %v2754, 1
      %v2881 = vrot.slane %v2755, 1
      %v2882 = vsel %vm765, %v2880, %v2881
      %v2883 = vrot.slane %v2756, 1
      %v2884 = vsel %vm765, %v2881, %v2883
      %v2917 = vadd.f32 %v2673, %v2807
      %v2918 = vadd.f32 %v2674, %v2809
      %v2919 = vadd.f32 %v2675, %v2812
      %v2920 = vadd.f32 %v2676, %v2814
      %v2921 = vadd.f32 %v2677, %v2817
      %v2922 = vadd.f32 %v2678, %v2819
      %v2923 = vadd.f32 %v2679, %v2822
      %v2924 = vadd.f32 %v2680, %v2824
      %v2925 = vadd.f32 %v2681, %v2827
      %v2926 = vadd.f32 %v2682, %v2829
      %v2927 = vadd.f32 %v2683, %v2832
      %v2928 = vadd.f32 %v2684, %v2834
      %v2929 = vadd.f32 %v2685, %v2837
      %v2930 = vadd.f32 %v2686, %v2839
      %v2931 = vadd.f32 %v2687, %v2842
      %v2932 = vadd.f32 %v2688, %v2844
      %v2933 = vadd.f32 %v2689, %v2847
      %v2934 = vadd.f32 %v2690, %v2849
      %v2935 = vadd.f32 %v2691, %v2852
      %v2936 = vadd.f32 %v2692, %v2854
      %v2937 = vadd.f32 %v2693, %v2857
      %v2938 = vadd.f32 %v2694, %v2859
      %v2939 = vadd.f32 %v2695, %v2862
      %v2940 = vadd.f32 %v2696, %v2864
      %v2941 = vadd.f32 %v2697, %v2867
      %v2942 = vadd.f32 %v2698, %v2869
      %v2943 = vadd.f32 %v2699, %v2872
      %v2944 = vadd.f32 %v2700, %v2874
      %v2945 = vadd.f32 %v2701, %v2877
      %v2946 = vadd.f32 %v2702, %v2879
      %v2947 = vadd.f32 %v2703, %v2882
      %v2948 = vadd.f32 %v2704, %v2884
      %v2949 = vlaneseq
      %v2950 = vshrl.u32 %v2949, 7
      %v2951 = vsub.s32 1, %v2950
      %v2952 = vrot.slane %v2499, %v2951
      %v2953 = vmul.f32 %v2446, %v2952
      %v2954 = vmul.f32 %v2447, %v2952
      %v2955 = vmul.f32 %v2448, %v2952
      %v2956 = vmul.f32 %v2449, %v2952
      %v2957 = vmul.f32 %v2450, %v2952
      %v2958 = vmul.f32 %v2451, %v2952
      %v2959 = vmul.f32 %v2452, %v2952
      %v2960 = vmul.f32 %v2453, %v2952
      %v2961 = vmul.f32 %v2454, %v2952
      %v2962 = vmul.f32 %v2455, %v2952
      %v2963 = vmul.f32 %v2456, %v2952
      %v2964 = vmul.f32 %v2457, %v2952
      %v2965 = vmul.f32 %v2458, %v2952
      %v2966 = vmul.f32 %v2459, %v2952
      %v2967 = vmul.f32 %v2460, %v2952
      %v2968 = vmul.f32 %v2461, %v2952
      %v2969 = vmul.f32 %v2462, %v2952
      %v2970 = vmul.f32 %v2463, %v2952
      %v2971 = vmul.f32 %v2464, %v2952
      %v2972 = vmul.f32 %v2465, %v2952
      %v2973 = vmul.f32 %v2466, %v2952
      %v2974 = vmul.f32 %v2467, %v2952
      %v2975 = vmul.f32 %v2468, %v2952
      %v2976 = vmul.f32 %v2469, %v2952
      %v2977 = vmul.f32 %v2470, %v2952
      %v2978 = vmul.f32 %v2471, %v2952
      %v2979 = vmul.f32 %v2472, %v2952
      %v2980 = vmul.f32 %v2473, %v2952
      %v2981 = vmul.f32 %v2474, %v2952
      %v2982 = vmul.f32 %v2475, %v2952
      %v2983 = vmul.f32 %v2476, %v2952
      %v2984 = vmul.f32 %v2477, %v2952
      %v2985 = vmul.f32 %v2478, %v2952
      %v2986 = vmul.f32 %v2479, %v2952
      %v2987 = vmul.f32 %v2480, %v2952
      %v2988 = vmul.f32 %v2481, %v2952
      %v2989 = vmul.f32 %v2482, %v2952
      %v2990 = vmul.f32 %v2483, %v2952
      %v2991 = vmul.f32 %v2484, %v2952
      %v2992 = vmul.f32 %v2485, %v2952
      %v2993 = vmul.f32 %v2486, %v2952
      %v2994 = vmul.f32 %v2487, %v2952
      %v2995 = vmul.f32 %v2488, %v2952
      %v2996 = vmul.f32 %v2489, %v2952
      %v2997 = vmul.f32 %v2490, %v2952
      %v2998 = vmul.f32 %v2491, %v2952
      %v2999 = vmul.f32 %v2492, %v2952
      %v3000 = vmul.f32 %v2493, %v2952
      %v3049 = vrot.slane %v2953, 1
      %v3050 = vrot.slane %v2954, 1
      %v3051 = vsel %vm765, %v3049, %v3050
      %v3052 = vrot.slane %v2955, 1
      %v3053 = vsel %vm765, %v3050, %v3052
      %v3054 = vrot.slane %v2956, 1
      %v3055 = vrot.slane %v2957, 1
      %v3056 = vsel %vm765, %v3054, %v3055
      %v3057 = vrot.slane %v2958, 1
      %v3058 = vsel %vm765, %v3055, %v3057
      %v3059 = vrot.slane %v2959, 1
      %v3060 = vrot.slane %v2960, 1
      %v3061 = vsel %vm765, %v3059, %v3060
      %v3062 = vrot.slane %v2961, 1
      %v3063 = vsel %vm765, %v3060, %v3062
      %v3064 = vrot.slane %v2962, 1
      %v3065 = vrot.slane %v2963, 1
      %v3066 = vsel %vm765, %v3064, %v3065
      %v3067 = vrot.slane %v2964, 1
      %v3068 = vsel %vm765, %v3065, %v3067
      %v3069 = vrot.slane %v2965, 1
      %v3070 = vrot.slane %v2966, 1
      %v3071 = vsel %vm765, %v3069, %v3070
      %v3072 = vrot.slane %v2967, 1
      %v3073 = vsel %vm765, %v3070, %v3072
      %v3074 = vrot.slane %v2968, 1
      %v3075 = vrot.slane %v2969, 1
      %v3076 = vsel %vm765, %v3074, %v3075
      %v3077 = vrot.slane %v2970, 1
      %v3078 = vsel %vm765, %v3075, %v3077
      %v3079 = vrot.slane %v2971, 1
      %v3080 = vrot.slane %v2972, 1
      %v3081 = vsel %vm765, %v3079, %v3080
      %v3082 = vrot.slane %v2973, 1
      %v3083 = vsel %vm765, %v3080, %v3082
      %v3084 = vrot.slane %v2974, 1
      %v3085 = vrot.slane %v2975, 1
      %v3086 = vsel %vm765, %v3084, %v3085
      %v3087 = vrot.slane %v2976, 1
      %v3088 = vsel %vm765, %v3085, %v3087
      %v3089 = vrot.slane %v2977, 1
      %v3090 = vrot.slane %v2978, 1
      %v3091 = vsel %vm765, %v3089, %v3090
      %v3092 = vrot.slane %v2979, 1
      %v3093 = vsel %vm765, %v3090, %v3092
      %v3094 = vrot.slane %v2980, 1
      %v3095 = vrot.slane %v2981, 1
      %v3096 = vsel %vm765, %v3094, %v3095
      %v3097 = vrot.slane %v2982, 1
      %v3098 = vsel %vm765, %v3095, %v3097
      %v3099 = vrot.slane %v2983, 1
      %v3100 = vrot.slane %v2984, 1
      %v3101 = vsel %vm765, %v3099, %v3100
      %v3102 = vrot.slane %v2985, 1
      %v3103 = vsel %vm765, %v3100, %v3102
      %v3104 = vrot.slane %v2986, 1
      %v3105 = vrot.slane %v2987, 1
      %v3106 = vsel %vm765, %v3104, %v3105
      %v3107 = vrot.slane %v2988, 1
      %v3108 = vsel %vm765, %v3105, %v3107
      %v3109 = vrot.slane %v2989, 1
      %v3110 = vrot.slane %v2990, 1
      %v3111 = vsel %vm765, %v3109, %v3110
      %v3112 = vrot.slane %v2991, 1
      %v3113 = vsel %vm765, %v3110, %v3112
      %v3114 = vrot.slane %v2992, 1
      %v3115 = vrot.slane %v2993, 1
      %v3116 = vsel %vm765, %v3114, %v3115
      %v3117 = vrot.slane %v2994, 1
      %v3118 = vsel %vm765, %v3115, %v3117
      %v3119 = vrot.slane %v2995, 1
      %v3120 = vrot.slane %v2996, 1
      %v3121 = vsel %vm765, %v3119, %v3120
      %v3122 = vrot.slane %v2997, 1
      %v3123 = vsel %vm765, %v3120, %v3122
      %v3124 = vrot.slane %v2998, 1
      %v3125 = vrot.slane %v2999, 1
      %v3126 = vsel %vm765, %v3124, %v3125
      %v3127 = vrot.slane %v3000, 1
      %v3128 = vsel %vm765, %v3125, %v3127
      %v3161 = vadd.f32 %v2917, %v3051
      %v3162 = vadd.f32 %v2918, %v3053
      %v3163 = vadd.f32 %v2919, %v3056
      %v3164 = vadd.f32 %v2920, %v3058
      %v3165 = vadd.f32 %v2921, %v3061
      %v3166 = vadd.f32 %v2922, %v3063
      %v3167 = vadd.f32 %v2923, %v3066
      %v3168 = vadd.f32 %v2924, %v3068
      %v3169 = vadd.f32 %v2925, %v3071
      %v3170 = vadd.f32 %v2926, %v3073
      %v3171 = vadd.f32 %v2927, %v3076
      %v3172 = vadd.f32 %v2928, %v3078
      %v3173 = vadd.f32 %v2929, %v3081
      %v3174 = vadd.f32 %v2930, %v3083
      %v3175 = vadd.f32 %v2931, %v3086
      %v3176 = vadd.f32 %v2932, %v3088
      %v3177 = vadd.f32 %v2933, %v3091
      %v3178 = vadd.f32 %v2934, %v3093
      %v3179 = vadd.f32 %v2935, %v3096
      %v3180 = vadd.f32 %v2936, %v3098
      %v3181 = vadd.f32 %v2937, %v3101
      %v3182 = vadd.f32 %v2938, %v3103
      %v3183 = vadd.f32 %v2939, %v3106
      %v3184 = vadd.f32 %v2940, %v3108
      %v3185 = vadd.f32 %v2941, %v3111
      %v3186 = vadd.f32 %v2942, %v3113
      %v3187 = vadd.f32 %v2943, %v3116
      %v3188 = vadd.f32 %v2944, %v3118
      %v3189 = vadd.f32 %v2945, %v3121
      %v3190 = vadd.f32 %v2946, %v3123
      %v3191 = vadd.f32 %v2947, %v3126
      %v3192 = vadd.f32 %v2948, %v3128
      %v3193 = vlaneseq
      %v3194 = vshrl.u32 %v3193, 7
      %v3195 = vsub.s32 1, %v3194
      %v3196 = vrot.slane %v2500, %v3195
      %v3197 = vmul.f32 %v2449, %v3196
      %v3198 = vmul.f32 %v2450, %v3196
      %v3199 = vmul.f32 %v2451, %v3196
      %v3200 = vmul.f32 %v2452, %v3196
      %v3201 = vmul.f32 %v2453, %v3196
      %v3202 = vmul.f32 %v2454, %v3196
      %v3203 = vmul.f32 %v2455, %v3196
      %v3204 = vmul.f32 %v2456, %v3196
      %v3205 = vmul.f32 %v2457, %v3196
      %v3206 = vmul.f32 %v2458, %v3196
      %v3207 = vmul.f32 %v2459, %v3196
      %v3208 = vmul.f32 %v2460, %v3196
      %v3209 = vmul.f32 %v2461, %v3196
      %v3210 = vmul.f32 %v2462, %v3196
      %v3211 = vmul.f32 %v2463, %v3196
      %v3212 = vmul.f32 %v2464, %v3196
      %v3213 = vmul.f32 %v2465, %v3196
      %v3214 = vmul.f32 %v2466, %v3196
      %v3215 = vmul.f32 %v2467, %v3196
      %v3216 = vmul.f32 %v2468, %v3196
      %v3217 = vmul.f32 %v2469, %v3196
      %v3218 = vmul.f32 %v2470, %v3196
      %v3219 = vmul.f32 %v2471, %v3196
      %v3220 = vmul.f32 %v2472, %v3196
      %v3221 = vmul.f32 %v2473, %v3196
      %v3222 = vmul.f32 %v2474, %v3196
      %v3223 = vmul.f32 %v2475, %v3196
      %v3224 = vmul.f32 %v2476, %v3196
      %v3225 = vmul.f32 %v2477, %v3196
      %v3226 = vmul.f32 %v2478, %v3196
      %v3227 = vmul.f32 %v2479, %v3196
      %v3228 = vmul.f32 %v2480, %v3196
      %v3229 = vmul.f32 %v2481, %v3196
      %v3230 = vmul.f32 %v2482, %v3196
      %v3231 = vmul.f32 %v2483, %v3196
      %v3232 = vmul.f32 %v2484, %v3196
      %v3233 = vmul.f32 %v2485, %v3196
      %v3234 = vmul.f32 %v2486, %v3196
      %v3235 = vmul.f32 %v2487, %v3196
      %v3236 = vmul.f32 %v2488, %v3196
      %v3237 = vmul.f32 %v2489, %v3196
      %v3238 = vmul.f32 %v2490, %v3196
      %v3239 = vmul.f32 %v2491, %v3196
      %v3240 = vmul.f32 %v2492, %v3196
      %v3241 = vmul.f32 %v2493, %v3196
      %v3242 = vmul.f32 %v2494, %v3196
      %v3243 = vmul.f32 %v2495, %v3196
      %v3244 = vmul.f32 %v2496, %v3196
      %v3293 = vrot.slane %v3197, 1
      %v3294 = vrot.slane %v3198, 1
      %v3295 = vsel %vm765, %v3293, %v3294
      %v3296 = vrot.slane %v3199, 1
      %v3297 = vsel %vm765, %v3294, %v3296
      %v3298 = vrot.slane %v3200, 1
      %v3299 = vrot.slane %v3201, 1
      %v3300 = vsel %vm765, %v3298, %v3299
      %v3301 = vrot.slane %v3202, 1
      %v3302 = vsel %vm765, %v3299, %v3301
      %v3303 = vrot.slane %v3203, 1
      %v3304 = vrot.slane %v3204, 1
      %v3305 = vsel %vm765, %v3303, %v3304
      %v3306 = vrot.slane %v3205, 1
      %v3307 = vsel %vm765, %v3304, %v3306
      %v3308 = vrot.slane %v3206, 1
      %v3309 = vrot.slane %v3207, 1
      %v3310 = vsel %vm765, %v3308, %v3309
      %v3311 = vrot.slane %v3208, 1
      %v3312 = vsel %vm765, %v3309, %v3311
      %v3313 = vrot.slane %v3209, 1
      %v3314 = vrot.slane %v3210, 1
      %v3315 = vsel %vm765, %v3313, %v3314
      %v3316 = vrot.slane %v3211, 1
      %v3317 = vsel %vm765, %v3314, %v3316
      %v3318 = vrot.slane %v3212, 1
      %v3319 = vrot.slane %v3213, 1
      %v3320 = vsel %vm765, %v3318, %v3319
      %v3321 = vrot.slane %v3214, 1
      %v3322 = vsel %vm765, %v3319, %v3321
      %v3323 = vrot.slane %v3215, 1
      %v3324 = vrot.slane %v3216, 1
      %v3325 = vsel %vm765, %v3323, %v3324
      %v3326 = vrot.slane %v3217, 1
      %v3327 = vsel %vm765, %v3324, %v3326
      %v3328 = vrot.slane %v3218, 1
      %v3329 = vrot.slane %v3219, 1
      %v3330 = vsel %vm765, %v3328, %v3329
      %v3331 = vrot.slane %v3220, 1
      %v3332 = vsel %vm765, %v3329, %v3331
      %v3333 = vrot.slane %v3221, 1
      %v3334 = vrot.slane %v3222, 1
      %v3335 = vsel %vm765, %v3333, %v3334
      %v3336 = vrot.slane %v3223, 1
      %v3337 = vsel %vm765, %v3334, %v3336
      %v3338 = vrot.slane %v3224, 1
      %v3339 = vrot.slane %v3225, 1
      %v3340 = vsel %vm765, %v3338, %v3339
      %v3341 = vrot.slane %v3226, 1
      %v3342 = vsel %vm765, %v3339, %v3341
      %v3343 = vrot.slane %v3227, 1
      %v3344 = vrot.slane %v3228, 1
      %v3345 = vsel %vm765, %v3343, %v3344
      %v3346 = vrot.slane %v3229, 1
      %v3347 = vsel %vm765, %v3344, %v3346
      %v3348 = vrot.slane %v3230, 1
      %v3349 = vrot.slane %v3231, 1
      %v3350 = vsel %vm765, %v3348, %v3349
      %v3351 = vrot.slane %v3232, 1
      %v3352 = vsel %vm765, %v3349, %v3351
      %v3353 = vrot.slane %v3233, 1
      %v3354 = vrot.slane %v3234, 1
      %v3355 = vsel %vm765, %v3353, %v3354
      %v3356 = vrot.slane %v3235, 1
      %v3357 = vsel %vm765, %v3354, %v3356
      %v3358 = vrot.slane %v3236, 1
      %v3359 = vrot.slane %v3237, 1
      %v3360 = vsel %vm765, %v3358, %v3359
      %v3361 = vrot.slane %v3238, 1
      %v3362 = vsel %vm765, %v3359, %v3361
      %v3363 = vrot.slane %v3239, 1
      %v3364 = vrot.slane %v3240, 1
      %v3365 = vsel %vm765, %v3363, %v3364
      %v3366 = vrot.slane %v3241, 1
      %v3367 = vsel %vm765, %v3364, %v3366
      %v3368 = vrot.slane %v3242, 1
      %v3369 = vrot.slane %v3243, 1
      %v3370 = vsel %vm765, %v3368, %v3369
      %v3371 = vrot.slane %v3244, 1
      %v3372 = vsel %vm765, %v3369, %v3371
      %v3405 = vadd.f32 %v3161, %v3295
      %v3406 = vadd.f32 %v3162, %v3297
      %v3407 = vadd.f32 %v3163, %v3300
      %v3408 = vadd.f32 %v3164, %v3302
      %v3409 = vadd.f32 %v3165, %v3305
      %v3410 = vadd.f32 %v3166, %v3307
      %v3411 = vadd.f32 %v3167, %v3310
      %v3412 = vadd.f32 %v3168, %v3312
      %v3413 = vadd.f32 %v3169, %v3315
      %v3414 = vadd.f32 %v3170, %v3317
      %v3415 = vadd.f32 %v3171, %v3320
      %v3416 = vadd.f32 %v3172, %v3322
      %v3417 = vadd.f32 %v3173, %v3325
      %v3418 = vadd.f32 %v3174, %v3327
      %v3419 = vadd.f32 %v3175, %v3330
      %v3420 = vadd.f32 %v3176, %v3332
      %v3421 = vadd.f32 %v3177, %v3335
      %v3422 = vadd.f32 %v3178, %v3337
      %v3423 = vadd.f32 %v3179, %v3340
      %v3424 = vadd.f32 %v3180, %v3342
      %v3425 = vadd.f32 %v3181, %v3345
      %v3426 = vadd.f32 %v3182, %v3347
      %v3427 = vadd.f32 %v3183, %v3350
      %v3428 = vadd.f32 %v3184, %v3352
      %v3429 = vadd.f32 %v3185, %v3355
      %v3430 = vadd.f32 %v3186, %v3357
      %v3431 = vadd.f32 %v3187, %v3360
      %v3432 = vadd.f32 %v3188, %v3362
      %v3433 = vadd.f32 %v3189, %v3365
      %v3434 = vadd.f32 %v3190, %v3367
      %v3435 = vadd.f32 %v3191, %v3370
      %v3436 = vadd.f32 %v3192, %v3372
      %v3437 = vlaneseq
      %v3438 = vshrl.u32 %v3437, 7
      %v3439 = vsub.s32 2, %v3438
      %v3440 = vrot.slane %v2498, %v3439
      %v3441 = vmul.f32 %v2443, %v3440
      %v3442 = vmul.f32 %v2444, %v3440
      %v3443 = vmul.f32 %v2445, %v3440
      %v3444 = vmul.f32 %v2446, %v3440
      %v3445 = vmul.f32 %v2447, %v3440
      %v3446 = vmul.f32 %v2448, %v3440
      %v3447 = vmul.f32 %v2449, %v3440
      %v3448 = vmul.f32 %v2450, %v3440
      %v3449 = vmul.f32 %v2451, %v3440
      %v3450 = vmul.f32 %v2452, %v3440
      %v3451 = vmul.f32 %v2453, %v3440
      %v3452 = vmul.f32 %v2454, %v3440
      %v3453 = vmul.f32 %v2455, %v3440
      %v3454 = vmul.f32 %v2456, %v3440
      %v3455 = vmul.f32 %v2457, %v3440
      %v3456 = vmul.f32 %v2458, %v3440
      %v3457 = vmul.f32 %v2459, %v3440
      %v3458 = vmul.f32 %v2460, %v3440
      %v3459 = vmul.f32 %v2461, %v3440
      %v3460 = vmul.f32 %v2462, %v3440
      %v3461 = vmul.f32 %v2463, %v3440
      %v3462 = vmul.f32 %v2464, %v3440
      %v3463 = vmul.f32 %v2465, %v3440
      %v3464 = vmul.f32 %v2466, %v3440
      %v3465 = vmul.f32 %v2467, %v3440
      %v3466 = vmul.f32 %v2468, %v3440
      %v3467 = vmul.f32 %v2469, %v3440
      %v3468 = vmul.f32 %v2470, %v3440
      %v3469 = vmul.f32 %v2471, %v3440
      %v3470 = vmul.f32 %v2472, %v3440
      %v3471 = vmul.f32 %v2473, %v3440
      %v3472 = vmul.f32 %v2474, %v3440
      %v3473 = vmul.f32 %v2475, %v3440
      %v3474 = vmul.f32 %v2476, %v3440
      %v3475 = vmul.f32 %v2477, %v3440
      %v3476 = vmul.f32 %v2478, %v3440
      %v3477 = vmul.f32 %v2479, %v3440
      %v3478 = vmul.f32 %v2480, %v3440
      %v3479 = vmul.f32 %v2481, %v3440
      %v3480 = vmul.f32 %v2482, %v3440
      %v3481 = vmul.f32 %v2483, %v3440
      %v3482 = vmul.f32 %v2484, %v3440
      %v3483 = vmul.f32 %v2485, %v3440
      %v3484 = vmul.f32 %v2486, %v3440
      %v3485 = vmul.f32 %v2487, %v3440
      %v3486 = vmul.f32 %v2488, %v3440
      %v3487 = vmul.f32 %v2489, %v3440
      %v3488 = vmul.f32 %v2490, %v3440
      %v3537 = vrot.slane %v3441, 2
      %v3538 = vrot.slane %v3442, 2
      %v3539 = vsel %vm1498, %v3537, %v3538
      %v3540 = vrot.slane %v3443, 2
      %v3541 = vsel %vm1498, %v3538, %v3540
      %v3542 = vrot.slane %v3444, 2
      %v3543 = vrot.slane %v3445, 2
      %v3544 = vsel %vm1498, %v3542, %v3543
      %v3545 = vrot.slane %v3446, 2
      %v3546 = vsel %vm1498, %v3543, %v3545
      %v3547 = vrot.slane %v3447, 2
      %v3548 = vrot.slane %v3448, 2
      %v3549 = vsel %vm1498, %v3547, %v3548
      %v3550 = vrot.slane %v3449, 2
      %v3551 = vsel %vm1498, %v3548, %v3550
      %v3552 = vrot.slane %v3450, 2
      %v3553 = vrot.slane %v3451, 2
      %v3554 = vsel %vm1498, %v3552, %v3553
      %v3555 = vrot.slane %v3452, 2
      %v3556 = vsel %vm1498, %v3553, %v3555
      %v3557 = vrot.slane %v3453, 2
      %v3558 = vrot.slane %v3454, 2
      %v3559 = vsel %vm1498, %v3557, %v3558
      %v3560 = vrot.slane %v3455, 2
      %v3561 = vsel %vm1498, %v3558, %v3560
      %v3562 = vrot.slane %v3456, 2
      %v3563 = vrot.slane %v3457, 2
      %v3564 = vsel %vm1498, %v3562, %v3563
      %v3565 = vrot.slane %v3458, 2
      %v3566 = vsel %vm1498, %v3563, %v3565
      %v3567 = vrot.slane %v3459, 2
      %v3568 = vrot.slane %v3460, 2
      %v3569 = vsel %vm1498, %v3567, %v3568
      %v3570 = vrot.slane %v3461, 2
      %v3571 = vsel %vm1498, %v3568, %v3570
      %v3572 = vrot.slane %v3462, 2
      %v3573 = vrot.slane %v3463, 2
      %v3574 = vsel %vm1498, %v3572, %v3573
      %v3575 = vrot.slane %v3464, 2
      %v3576 = vsel %vm1498, %v3573, %v3575
      %v3577 = vrot.slane %v3465, 2
      %v3578 = vrot.slane %v3466, 2
      %v3579 = vsel %vm1498, %v3577, %v3578
      %v3580 = vrot.slane %v3467, 2
      %v3581 = vsel %vm1498, %v3578, %v3580
      %v3582 = vrot.slane %v3468, 2
      %v3583 = vrot.slane %v3469, 2
      %v3584 = vsel %vm1498, %v3582, %v3583
      %v3585 = vrot.slane %v3470, 2
      %v3586 = vsel %vm1498, %v3583, %v3585
      %v3587 = vrot.slane %v3471, 2
      %v3588 = vrot.slane %v3472, 2
      %v3589 = vsel %vm1498, %v3587, %v3588
      %v3590 = vrot.slane %v3473, 2
      %v3591 = vsel %vm1498, %v3588, %v3590
      %v3592 = vrot.slane %v3474, 2
      %v3593 = vrot.slane %v3475, 2
      %v3594 = vsel %vm1498, %v3592, %v3593
      %v3595 = vrot.slane %v3476, 2
      %v3596 = vsel %vm1498, %v3593, %v3595
      %v3597 = vrot.slane %v3477, 2
      %v3598 = vrot.slane %v3478, 2
      %v3599 = vsel %vm1498, %v3597, %v3598
      %v3600 = vrot.slane %v3479, 2
      %v3601 = vsel %vm1498, %v3598, %v3600
      %v3602 = vrot.slane %v3480, 2
      %v3603 = vrot.slane %v3481, 2
      %v3604 = vsel %vm1498, %v3602, %v3603
      %v3605 = vrot.slane %v3482, 2
      %v3606 = vsel %vm1498, %v3603, %v3605
      %v3607 = vrot.slane %v3483, 2
      %v3608 = vrot.slane %v3484, 2
      %v3609 = vsel %vm1498, %v3607, %v3608
      %v3610 = vrot.slane %v3485, 2
      %v3611 = vsel %vm1498, %v3608, %v3610
      %v3612 = vrot.slane %v3486, 2
      %v3613 = vrot.slane %v3487, 2
      %v3614 = vsel %vm1498, %v3612, %v3613
      %v3615 = vrot.slane %v3488, 2
      %v3616 = vsel %vm1498, %v3613, %v3615
      %v3649 = vadd.f32 %v3405, %v3539
      %v3650 = vadd.f32 %v3406, %v3541
      %v3651 = vadd.f32 %v3407, %v3544
      %v3652 = vadd.f32 %v3408, %v3546
      %v3653 = vadd.f32 %v3409, %v3549
      %v3654 = vadd.f32 %v3410, %v3551
      %v3655 = vadd.f32 %v3411, %v3554
      %v3656 = vadd.f32 %v3412, %v3556
      %v3657 = vadd.f32 %v3413, %v3559
      %v3658 = vadd.f32 %v3414, %v3561
      %v3659 = vadd.f32 %v3415, %v3564
      %v3660 = vadd.f32 %v3416, %v3566
      %v3661 = vadd.f32 %v3417, %v3569
      %v3662 = vadd.f32 %v3418, %v3571
      %v3663 = vadd.f32 %v3419, %v3574
      %v3664 = vadd.f32 %v3420, %v3576
      %v3665 = vadd.f32 %v3421, %v3579
      %v3666 = vadd.f32 %v3422, %v3581
      %v3667 = vadd.f32 %v3423, %v3584
      %v3668 = vadd.f32 %v3424, %v3586
      %v3669 = vadd.f32 %v3425, %v3589
      %v3670 = vadd.f32 %v3426, %v3591
      %v3671 = vadd.f32 %v3427, %v3594
      %v3672 = vadd.f32 %v3428, %v3596
      %v3673 = vadd.f32 %v3429, %v3599
      %v3674 = vadd.f32 %v3430, %v3601
      %v3675 = vadd.f32 %v3431, %v3604
      %v3676 = vadd.f32 %v3432, %v3606
      %v3677 = vadd.f32 %v3433, %v3609
      %v3678 = vadd.f32 %v3434, %v3611
      %v3679 = vadd.f32 %v3435, %v3614
      %v3680 = vadd.f32 %v3436, %v3616
      %v3681 = vlaneseq
      %v3682 = vshrl.u32 %v3681, 7
      %v3683 = vsub.s32 2, %v3682
      %v3684 = vrot.slane %v2499, %v3683
      %v3685 = vmul.f32 %v2446, %v3684
      %v3686 = vmul.f32 %v2447, %v3684
      %v3687 = vmul.f32 %v2448, %v3684
      %v3688 = vmul.f32 %v2449, %v3684
      %v3689 = vmul.f32 %v2450, %v3684
      %v3690 = vmul.f32 %v2451, %v3684
      %v3691 = vmul.f32 %v2452, %v3684
      %v3692 = vmul.f32 %v2453, %v3684
      %v3693 = vmul.f32 %v2454, %v3684
      %v3694 = vmul.f32 %v2455, %v3684
      %v3695 = vmul.f32 %v2456, %v3684
      %v3696 = vmul.f32 %v2457, %v3684
      %v3697 = vmul.f32 %v2458, %v3684
      %v3698 = vmul.f32 %v2459, %v3684
      %v3699 = vmul.f32 %v2460, %v3684
      %v3700 = vmul.f32 %v2461, %v3684
      %v3701 = vmul.f32 %v2462, %v3684
      %v3702 = vmul.f32 %v2463, %v3684
      %v3703 = vmul.f32 %v2464, %v3684
      %v3704 = vmul.f32 %v2465, %v3684
      %v3705 = vmul.f32 %v2466, %v3684
      %v3706 = vmul.f32 %v2467, %v3684
      %v3707 = vmul.f32 %v2468, %v3684
      %v3708 = vmul.f32 %v2469, %v3684
      %v3709 = vmul.f32 %v2470, %v3684
      %v3710 = vmul.f32 %v2471, %v3684
      %v3711 = vmul.f32 %v2472, %v3684
      %v3712 = vmul.f32 %v2473, %v3684
      %v3713 = vmul.f32 %v2474, %v3684
      %v3714 = vmul.f32 %v2475, %v3684
      %v3715 = vmul.f32 %v2476, %v3684
      %v3716 = vmul.f32 %v2477, %v3684
      %v3717 = vmul.f32 %v2478, %v3684
      %v3718 = vmul.f32 %v2479, %v3684
      %v3719 = vmul.f32 %v2480, %v3684
      %v3720 = vmul.f32 %v2481, %v3684
      %v3721 = vmul.f32 %v2482, %v3684
      %v3722 = vmul.f32 %v2483, %v3684
      %v3723 = vmul.f32 %v2484, %v3684
      %v3724 = vmul.f32 %v2485, %v3684
      %v3725 = vmul.f32 %v2486, %v3684
      %v3726 = vmul.f32 %v2487, %v3684
      %v3727 = vmul.f32 %v2488, %v3684
      %v3728 = vmul.f32 %v2489, %v3684
      %v3729 = vmul.f32 %v2490, %v3684
      %v3730 = vmul.f32 %v2491, %v3684
      %v3731 = vmul.f32 %v2492, %v3684
      %v3732 = vmul.f32 %v2493, %v3684
      %v3781 = vrot.slane %v3685, 2
      %v3782 = vrot.slane %v3686, 2
      %v3783 = vsel %vm1498, %v3781, %v3782
      %v3784 = vrot.slane %v3687, 2
      %v3785 = vsel %vm1498, %v3782, %v3784
      %v3786 = vrot.slane %v3688, 2
      %v3787 = vrot.slane %v3689, 2
      %v3788 = vsel %vm1498, %v3786, %v3787
      %v3789 = vrot.slane %v3690, 2
      %v3790 = vsel %vm1498, %v3787, %v3789
      %v3791 = vrot.slane %v3691, 2
      %v3792 = vrot.slane %v3692, 2
      %v3793 = vsel %vm1498, %v3791, %v3792
      %v3794 = vrot.slane %v3693, 2
      %v3795 = vsel %vm1498, %v3792, %v3794
      %v3796 = vrot.slane %v3694, 2
      %v3797 = vrot.slane %v3695, 2
      %v3798 = vsel %vm1498, %v3796, %v3797
      %v3799 = vrot.slane %v3696, 2
      %v3800 = vsel %vm1498, %v3797, %v3799
      %v3801 = vrot.slane %v3697, 2
      %v3802 = vrot.slane %v3698, 2
      %v3803 = vsel %vm1498, %v3801, %v3802
      %v3804 = vrot.slane %v3699, 2
      %v3805 = vsel %vm1498, %v3802, %v3804
      %v3806 = vrot.slane %v3700, 2
      %v3807 = vrot.slane %v3701, 2
      %v3808 = vsel %vm1498, %v3806, %v3807
      %v3809 = vrot.slane %v3702, 2
      %v3810 = vsel %vm1498, %v3807, %v3809
      %v3811 = vrot.slane %v3703, 2
      %v3812 = vrot.slane %v3704, 2
      %v3813 = vsel %vm1498, %v3811, %v3812
      %v3814 = vrot.slane %v3705, 2
      %v3815 = vsel %vm1498, %v3812, %v3814
      %v3816 = vrot.slane %v3706, 2
      %v3817 = vrot.slane %v3707, 2
      %v3818 = vsel %vm1498, %v3816, %v3817
      %v3819 = vrot.slane %v3708, 2
      %v3820 = vsel %vm1498, %v3817, %v3819
      %v3821 = vrot.slane %v3709, 2
      %v3822 = vrot.slane %v3710, 2
      %v3823 = vsel %vm1498, %v3821, %v3822
      %v3824 = vrot.slane %v3711, 2
      %v3825 = vsel %vm1498, %v3822, %v3824
      %v3826 = vrot.slane %v3712, 2
      %v3827 = vrot.slane %v3713, 2
      %v3828 = vsel %vm1498, %v3826, %v3827
      %v3829 = vrot.slane %v3714, 2
      %v3830 = vsel %vm1498, %v3827, %v3829
      %v3831 = vrot.slane %v3715, 2
      %v3832 = vrot.slane %v3716, 2
      %v3833 = vsel %vm1498, %v3831, %v3832
      %v3834 = vrot.slane %v3717, 2
      %v3835 = vsel %vm1498, %v3832, %v3834
      %v3836 = vrot.slane %v3718, 2
      %v3837 = vrot.slane %v3719, 2
      %v3838 = vsel %vm1498, %v3836, %v3837
      %v3839 = vrot.slane %v3720, 2
      %v3840 = vsel %vm1498, %v3837, %v3839
      %v3841 = vrot.slane %v3721, 2
      %v3842 = vrot.slane %v3722, 2
      %v3843 = vsel %vm1498, %v3841, %v3842
      %v3844 = vrot.slane %v3723, 2
      %v3845 = vsel %vm1498, %v3842, %v3844
      %v3846 = vrot.slane %v3724, 2
      %v3847 = vrot.slane %v3725, 2
      %v3848 = vsel %vm1498, %v3846, %v3847
      %v3849 = vrot.slane %v3726, 2
      %v3850 = vsel %vm1498, %v3847, %v3849
      %v3851 = vrot.slane %v3727, 2
      %v3852 = vrot.slane %v3728, 2
      %v3853 = vsel %vm1498, %v3851, %v3852
      %v3854 = vrot.slane %v3729, 2
      %v3855 = vsel %vm1498, %v3852, %v3854
      %v3856 = vrot.slane %v3730, 2
      %v3857 = vrot.slane %v3731, 2
      %v3858 = vsel %vm1498, %v3856, %v3857
      %v3859 = vrot.slane %v3732, 2
      %v3860 = vsel %vm1498, %v3857, %v3859
      %v3893 = vadd.f32 %v3649, %v3783
      %v3894 = vadd.f32 %v3650, %v3785
      %v3895 = vadd.f32 %v3651, %v3788
      %v3896 = vadd.f32 %v3652, %v3790
      %v3897 = vadd.f32 %v3653, %v3793
      %v3898 = vadd.f32 %v3654, %v3795
      %v3899 = vadd.f32 %v3655, %v3798
      %v3900 = vadd.f32 %v3656, %v3800
      %v3901 = vadd.f32 %v3657, %v3803
      %v3902 = vadd.f32 %v3658, %v3805
      %v3903 = vadd.f32 %v3659, %v3808
      %v3904 = vadd.f32 %v3660, %v3810
      %v3905 = vadd.f32 %v3661, %v3813
      %v3906 = vadd.f32 %v3662, %v3815
      %v3907 = vadd.f32 %v3663, %v3818
      %v3908 = vadd.f32 %v3664, %v3820
      %v3909 = vadd.f32 %v3665, %v3823
      %v3910 = vadd.f32 %v3666, %v3825
      %v3911 = vadd.f32 %v3667, %v3828
      %v3912 = vadd.f32 %v3668, %v3830
      %v3913 = vadd.f32 %v3669, %v3833
      %v3914 = vadd.f32 %v3670, %v3835
      %v3915 = vadd.f32 %v3671, %v3838
      %v3916 = vadd.f32 %v3672, %v3840
      %v3917 = vadd.f32 %v3673, %v3843
      %v3918 = vadd.f32 %v3674, %v3845
      %v3919 = vadd.f32 %v3675, %v3848
      %v3920 = vadd.f32 %v3676, %v3850
      %v3921 = vadd.f32 %v3677, %v3853
      %v3922 = vadd.f32 %v3678, %v3855
      %v3923 = vadd.f32 %v3679, %v3858
      %v3924 = vadd.f32 %v3680, %v3860
      %v3925 = vlaneseq
      %v3926 = vshrl.u32 %v3925, 7
      %v3927 = vsub.s32 2, %v3926
      %v3928 = vrot.slane %v2500, %v3927
      %v3929 = vmul.f32 %v2449, %v3928
      %v3930 = vmul.f32 %v2450, %v3928
      %v3931 = vmul.f32 %v2451, %v3928
      %v3932 = vmul.f32 %v2452, %v3928
      %v3933 = vmul.f32 %v2453, %v3928
      %v3934 = vmul.f32 %v2454, %v3928
      %v3935 = vmul.f32 %v2455, %v3928
      %v3936 = vmul.f32 %v2456, %v3928
      %v3937 = vmul.f32 %v2457, %v3928
      %v3938 = vmul.f32 %v2458, %v3928
      %v3939 = vmul.f32 %v2459, %v3928
      %v3940 = vmul.f32 %v2460, %v3928
      %v3941 = vmul.f32 %v2461, %v3928
      %v3942 = vmul.f32 %v2462, %v3928
      %v3943 = vmul.f32 %v2463, %v3928
      %v3944 = vmul.f32 %v2464, %v3928
      %v3945 = vmul.f32 %v2465, %v3928
      %v3946 = vmul.f32 %v2466, %v3928
      %v3947 = vmul.f32 %v2467, %v3928
      %v3948 = vmul.f32 %v2468, %v3928
      %v3949 = vmul.f32 %v2469, %v3928
      %v3950 = vmul.f32 %v2470, %v3928
      %v3951 = vmul.f32 %v2471, %v3928
      %v3952 = vmul.f32 %v2472, %v3928
      %v3953 = vmul.f32 %v2473, %v3928
      %v3954 = vmul.f32 %v2474, %v3928
      %v3955 = vmul.f32 %v2475, %v3928
      %v3956 = vmul.f32 %v2476, %v3928
      %v3957 = vmul.f32 %v2477, %v3928
      %v3958 = vmul.f32 %v2478, %v3928
      %v3959 = vmul.f32 %v2479, %v3928
      %v3960 = vmul.f32 %v2480, %v3928
      %v3961 = vmul.f32 %v2481, %v3928
      %v3962 = vmul.f32 %v2482, %v3928
      %v3963 = vmul.f32 %v2483, %v3928
      %v3964 = vmul.f32 %v2484, %v3928
      %v3965 = vmul.f32 %v2485, %v3928
      %v3966 = vmul.f32 %v2486, %v3928
      %v3967 = vmul.f32 %v2487, %v3928
      %v3968 = vmul.f32 %v2488, %v3928
      %v3969 = vmul.f32 %v2489, %v3928
      %v3970 = vmul.f32 %v2490, %v3928
      %v3971 = vmul.f32 %v2491, %v3928
      %v3972 = vmul.f32 %v2492, %v3928
      %v3973 = vmul.f32 %v2493, %v3928
      %v3974 = vmul.f32 %v2494, %v3928
      %v3975 = vmul.f32 %v2495, %v3928
      %v3976 = vmul.f32 %v2496, %v3928
      %v4025 = vrot.slane %v3929, 2
      %v4026 = vrot.slane %v3930, 2
      %v4027 = vsel %vm1498, %v4025, %v4026
      %v4028 = vrot.slane %v3931, 2
      %v4029 = vsel %vm1498, %v4026, %v4028
      %v4030 = vrot.slane %v3932, 2
      %v4031 = vrot.slane %v3933, 2
      %v4032 = vsel %vm1498, %v4030, %v4031
      %v4033 = vrot.slane %v3934, 2
      %v4034 = vsel %vm1498, %v4031, %v4033
      %v4035 = vrot.slane %v3935, 2
      %v4036 = vrot.slane %v3936, 2
      %v4037 = vsel %vm1498, %v4035, %v4036
      %v4038 = vrot.slane %v3937, 2
      %v4039 = vsel %vm1498, %v4036, %v4038
      %v4040 = vrot.slane %v3938, 2
      %v4041 = vrot.slane %v3939, 2
      %v4042 = vsel %vm1498, %v4040, %v4041
      %v4043 = vrot.slane %v3940, 2
      %v4044 = vsel %vm1498, %v4041, %v4043
      %v4045 = vrot.slane %v3941, 2
      %v4046 = vrot.slane %v3942, 2
      %v4047 = vsel %vm1498, %v4045, %v4046
      %v4048 = vrot.slane %v3943, 2
      %v4049 = vsel %vm1498, %v4046, %v4048
      %v4050 = vrot.slane %v3944, 2
      %v4051 = vrot.slane %v3945, 2
      %v4052 = vsel %vm1498, %v4050, %v4051
      %v4053 = vrot.slane %v3946, 2
      %v4054 = vsel %vm1498, %v4051, %v4053
      %v4055 = vrot.slane %v3947, 2
      %v4056 = vrot.slane %v3948, 2
      %v4057 = vsel %vm1498, %v4055, %v4056
      %v4058 = vrot.slane %v3949, 2
      %v4059 = vsel %vm1498, %v4056, %v4058
      %v4060 = vrot.slane %v3950, 2
      %v4061 = vrot.slane %v3951, 2
      %v4062 = vsel %vm1498, %v4060, %v4061
      %v4063 = vrot.slane %v3952, 2
      %v4064 = vsel %vm1498, %v4061, %v4063
      %v4065 = vrot.slane %v3953, 2
      %v4066 = vrot.slane %v3954, 2
      %v4067 = vsel %vm1498, %v4065, %v4066
      %v4068 = vrot.slane %v3955, 2
      %v4069 = vsel %vm1498, %v4066, %v4068
      %v4070 = vrot.slane %v3956, 2
      %v4071 = vrot.slane %v3957, 2
      %v4072 = vsel %vm1498, %v4070, %v4071
      %v4073 = vrot.slane %v3958, 2
      %v4074 = vsel %vm1498, %v4071, %v4073
      %v4075 = vrot.slane %v3959, 2
      %v4076 = vrot.slane %v3960, 2
      %v4077 = vsel %vm1498, %v4075, %v4076
      %v4078 = vrot.slane %v3961, 2
      %v4079 = vsel %vm1498, %v4076, %v4078
      %v4080 = vrot.slane %v3962, 2
      %v4081 = vrot.slane %v3963, 2
      %v4082 = vsel %vm1498, %v4080, %v4081
      %v4083 = vrot.slane %v3964, 2
      %v4084 = vsel %vm1498, %v4081, %v4083
      %v4085 = vrot.slane %v3965, 2
      %v4086 = vrot.slane %v3966, 2
      %v4087 = vsel %vm1498, %v4085, %v4086
      %v4088 = vrot.slane %v3967, 2
      %v4089 = vsel %vm1498, %v4086, %v4088
      %v4090 = vrot.slane %v3968, 2
      %v4091 = vrot.slane %v3969, 2
      %v4092 = vsel %vm1498, %v4090, %v4091
      %v4093 = vrot.slane %v3970, 2
      %v4094 = vsel %vm1498, %v4091, %v4093
      %v4095 = vrot.slane %v3971, 2
      %v4096 = vrot.slane %v3972, 2
      %v4097 = vsel %vm1498, %v4095, %v4096
      %v4098 = vrot.slane %v3973, 2
      %v4099 = vsel %vm1498, %v4096, %v4098
      %v4100 = vrot.slane %v3974, 2
      %v4101 = vrot.slane %v3975, 2
      %v4102 = vsel %vm1498, %v4100, %v4101
      %v4103 = vrot.slane %v3976, 2
      %v4104 = vsel %vm1498, %v4101, %v4103
      %v4137 = vadd.f32 %v3893, %v4027
      %v4138 = vadd.f32 %v3894, %v4029
      %v4139 = vadd.f32 %v3895, %v4032
      %v4140 = vadd.f32 %v3896, %v4034
      %v4141 = vadd.f32 %v3897, %v4037
      %v4142 = vadd.f32 %v3898, %v4039
      %v4143 = vadd.f32 %v3899, %v4042
      %v4144 = vadd.f32 %v3900, %v4044
      %v4145 = vadd.f32 %v3901, %v4047
      %v4146 = vadd.f32 %v3902, %v4049
      %v4147 = vadd.f32 %v3903, %v4052
      %v4148 = vadd.f32 %v3904, %v4054
      %v4149 = vadd.f32 %v3905, %v4057
      %v4150 = vadd.f32 %v3906, %v4059
      %v4151 = vadd.f32 %v3907, %v4062
      %v4152 = vadd.f32 %v3908, %v4064
      %v4153 = vadd.f32 %v3909, %v4067
      %v4154 = vadd.f32 %v3910, %v4069
      %v4155 = vadd.f32 %v3911, %v4072
      %v4156 = vadd.f32 %v3912, %v4074
      %v4157 = vadd.f32 %v3913, %v4077
      %v4158 = vadd.f32 %v3914, %v4079
      %v4159 = vadd.f32 %v3915, %v4082
      %v4160 = vadd.f32 %v3916, %v4084
      %v4161 = vadd.f32 %v3917, %v4087
      %v4162 = vadd.f32 %v3918, %v4089
      %v4163 = vadd.f32 %v3919, %v4092
      %v4164 = vadd.f32 %v3920, %v4094
      %v4165 = vadd.f32 %v3921, %v4097
      %v4166 = vadd.f32 %v3922, %v4099
      %v4167 = vadd.f32 %v3923, %v4102
      %v4168 = vadd.f32 %v3924, %v4104
      %v4169 = vpack.c.bf16 %v4138, %v4137
      %v4170 = vpack.c.bf16 %v4140, %v4139
      %v4171 = vpack.c.bf16 %v4142, %v4141
      %v4172 = vpack.c.bf16 %v4144, %v4143
      %v4173 = vpack.c.bf16 %v4146, %v4145
      %v4174 = vpack.c.bf16 %v4148, %v4147
      %v4175 = vpack.c.bf16 %v4150, %v4149
      %v4176 = vpack.c.bf16 %v4152, %v4151
      %v4177 = vpack.c.bf16 %v4154, %v4153
      %v4178 = vpack.c.bf16 %v4156, %v4155
      %v4179 = vpack.c.bf16 %v4158, %v4157
      %v4180 = vpack.c.bf16 %v4160, %v4159
      %v4181 = vpack.c.bf16 %v4162, %v4161
      %v4182 = vpack.c.bf16 %v4164, %v4163
      %v4183 = vpack.c.bf16 %v4166, %v4165
      %v4184 = vpack.c.bf16 %v4168, %v4167
      %s4185 = scalar_lea.vmem %s2, 64
      %v4186 = vld [vmem:[%s4185] sm:$0xf]
      %v4187 = vld [vmem:[%s4185 + $0x4] sm:$0xf]
      %v4188 = vld [vmem:[%s4185 + $0x8] sm:$0xf]
      %v4189 = vld [vmem:[%s4185 + $0xc] sm:$0xf]
      %v4190 = vld [vmem:[%s4185 + $0x10] sm:$0xf]
      %v4191 = vld [vmem:[%s4185 + $0x14] sm:$0xf]
      %v4192 = vld [vmem:[%s4185 + $0x18] sm:$0xf]
      %v4193 = vld [vmem:[%s4185 + $0x1c] sm:$0xf]
      %v4194 = vld [vmem:[%s4185 + $0x20] sm:$0xf]
      %v4195 = vld [vmem:[%s4185 + $0x24] sm:$0xf]
      %v4196 = vld [vmem:[%s4185 + $0x28] sm:$0xf]
      %v4197 = vld [vmem:[%s4185 + $0x2c] sm:$0xf]
      %v4198 = vld [vmem:[%s4185 + $0x30] sm:$0xf]
      %v4199 = vld [vmem:[%s4185 + $0x34] sm:$0xf]
      %v4200 = vld [vmem:[%s4185 + $0x38] sm:$0xf]
      %v4201 = vld [vmem:[%s4185 + $0x3c] sm:$0xf]
      %s4202 = scalar_lea.vmem %s3, 1
      %v4203 = vld [vmem:[%s4202] sm:$0x1]
      %v4205 = vlaneseq
      %v4206 = vshrl.u32 %v4205, 7
      %v4207 = vsub.s32 0, %v4206
      %v4208 = vrot.slane %v4203, %v4207
      %v4226 = vunpack.c.l.b16 %v4186
      %v4227 = vunpack.c.l.b16 %v4187
      %v4228 = vunpack.c.l.b16 %v4188
      %v4229 = vunpack.c.l.b16 %v4189
      %v4230 = vunpack.c.l.b16 %v4190
      %v4231 = vunpack.c.l.b16 %v4191
      %v4232 = vunpack.c.l.b16 %v4192
      %v4233 = vunpack.c.l.b16 %v4193
      %v4234 = vunpack.c.l.b16 %v4194
      %v4235 = vunpack.c.l.b16 %v4195
      %v4236 = vunpack.c.l.b16 %v4196
      %v4237 = vunpack.c.l.b16 %v4197
      %v4238 = vunpack.c.l.b16 %v4198
      %v4239 = vunpack.c.l.b16 %v4199
      %v4240 = vunpack.c.l.b16 %v4200
      %v4241 = vunpack.c.l.b16 %v4201
      %v4242 = vpack.c.b16 %v4227, %v4226
      %v4243 = vpack.c.b16 %v4229, %v4228
      %v4244 = vpack.c.b16 %v4231, %v4230
      %v4245 = vpack.c.b16 %v4233, %v4232
      %v4246 = vpack.c.b16 %v4235, %v4234
      %v4247 = vpack.c.b16 %v4237, %v4236
      %v4248 = vpack.c.b16 %v4239, %v4238
      %v4249 = vpack.c.b16 %v4241, %v4240
      %4258 = vmatprep.subr.bf16.mxu0 0
      %4259 = vmatpush1.bf16.msra.mxu0 %v4242
      %4260 = vmatprep.subr.bf16.mxu0 0
      %4261 = vmatpush1.bf16.msra.mxu0 %v4243
      %4262 = vmatprep.subr.bf16.mxu0 0
      %4263 = vmatpush1.bf16.msra.mxu0 %v4244
      %4264 = vmatprep.subr.bf16.mxu0 0
      %4265 = vmatpush1.bf16.msra.mxu0 %v4245
      %4266 = vmatprep.subr.bf16.mxu0 0
      %4267 = vmatpush1.bf16.msra.mxu0 %v4246
      %4268 = vmatprep.subr.bf16.mxu0 0
      %4269 = vmatpush1.bf16.msra.mxu0 %v4247
      %4270 = vmatprep.subr.bf16.mxu0 0
      %4271 = vmatpush1.bf16.msra.mxu0 %v4248
      %4272 = vmatprep.subr.bf16.mxu0 0
      %4273 = vmatpush1.bf16.msra.mxu0 %v4249
      %4274 = vmatprep.subr.bf16.mxu0 0
      %4275 = vmatpush1.bf16.msra.mxu0 0
      %4276 = vmatprep.subr.bf16.mxu0 0
      %4277 = vmatpush1.bf16.msra.mxu0 0
      %4278 = vmatprep.subr.bf16.mxu0 0
      %4279 = vmatpush1.bf16.msra.mxu0 0
      %4280 = vmatprep.subr.bf16.mxu0 0
      %4281 = vmatpush1.bf16.msra.mxu0 0
      %4282 = vmatprep.subr.bf16.mxu0 0
      %4283 = vmatpush1.bf16.msra.mxu0 0
      %4284 = vmatprep.subr.bf16.mxu0 0
      %4285 = vmatpush1.bf16.msra.mxu0 0
      %4286 = vmatprep.subr.bf16.mxu0 0
      %4287 = vmatpush1.bf16.msra.mxu0 0
      %4288 = vmatprep.subr.bf16.mxu0 0
      %4289 = vmatpush1.bf16.msra.mxu0 0
      %4290 = vmatprep.mubr.bf16.mxu0 0
      %4291 = vmatmul.mubr.bf16.gmra.mrb[0].mxu0 %v4169
      %v4292 = vpop.f32.mrb[0].mxu0
      %v4293 = vadd.f32 %v4208, %v4292
      %v4294 = vpop.f32.mrb[0].mxu0
      %v4295 = vpop.f32.mrb[0].mxu0
      %v4296 = vadd.f32 %v4208, %v4295
      %v4297 = vpop.f32.mrb[0].mxu0
      %4298 = vmatprep.mubr.bf16.mxu0 0
      %4299 = vmatmul.mubr.bf16.gmra.mrb[0].mxu0 %v4170
      %v4300 = vpop.f32.mrb[0].mxu0
      %v4301 = vadd.f32 %v4208, %v4300
      %v4302 = vpop.f32.mrb[0].mxu0
      %v4303 = vpop.f32.mrb[0].mxu0
      %v4304 = vadd.f32 %v4208, %v4303
      %v4305 = vpop.f32.mrb[0].mxu0
      %4306 = vmatprep.mubr.bf16.mxu0 0
      %4307 = vmatmul.mubr.bf16.gmra.mrb[0].mxu0 %v4171
      %v4308 = vpop.f32.mrb[0].mxu0
      %v4309 = vadd.f32 %v4208, %v4308
      %v4310 = vpop.f32.mrb[0].mxu0
      %v4311 = vpop.f32.mrb[0].mxu0
      %v4312 = vadd.f32 %v4208, %v4311
      %v4313 = vpop.f32.mrb[0].mxu0
      %4314 = vmatprep.mubr.bf16.mxu0 0
      %4315 = vmatmul.mubr.bf16.gmra.mrb[0].mxu0 %v4172
      %v4316 = vpop.f32.mrb[0].mxu0
      %v4317 = vadd.f32 %v4208, %v4316
      %v4318 = vpop.f32.mrb[0].mxu0
      %v4319 = vpop.f32.mrb[0].mxu0
      %v4320 = vadd.f32 %v4208, %v4319
      %v4321 = vpop.f32.mrb[0].mxu0
      %4322 = vmatprep.mubr.bf16.mxu0 0
      %4323 = vmatmul.mubr.bf16.gmra.mrb[0].mxu0 %v4173
      %v4324 = vpop.f32.mrb[0].mxu0
      %v4325 = vadd.f32 %v4208, %v4324
      %v4326 = vpop.f32.mrb[0].mxu0
      %v4327 = vpop.f32.mrb[0].mxu0
      %v4328 = vadd.f32 %v4208, %v4327
      %v4329 = vpop.f32.mrb[0].mxu0
      %4330 = vmatprep.mubr.bf16.mxu0 0
      %4331 = vmatmul.mubr.bf16.gmra.mrb[0].mxu0 %v4174
      %v4332 = vpop.f32.mrb[0].mxu0
      %v4333 = vadd.f32 %v4208, %v4332
      %v4334 = vpop.f32.mrb[0].mxu0
      %v4335 = vpop.f32.mrb[0].mxu0
      %v4336 = vadd.f32 %v4208, %v4335
      %v4337 = vpop.f32.mrb[0].mxu0
      %4338 = vmatprep.mubr.bf16.mxu0 0
      %4339 = vmatmul.mubr.bf16.gmra.mrb[0].mxu0 %v4175
      %v4340 = vpop.f32.mrb[0].mxu0
      %v4341 = vadd.f32 %v4208, %v4340
      %v4342 = vpop.f32.mrb[0].mxu0
      %v4343 = vpop.f32.mrb[0].mxu0
      %v4344 = vadd.f32 %v4208, %v4343
      %v4345 = vpop.f32.mrb[0].mxu0
      %4346 = vmatprep.mubr.bf16.mxu0 0
      %4347 = vmatmul.mubr.bf16.gmra.mrb[0].mxu0 %v4176
      %v4348 = vpop.f32.mrb[0].mxu0
      %v4349 = vadd.f32 %v4208, %v4348
      %v4350 = vpop.f32.mrb[0].mxu0
      %v4351 = vpop.f32.mrb[0].mxu0
      %v4352 = vadd.f32 %v4208, %v4351
      %v4353 = vpop.f32.mrb[0].mxu0
      %4354 = vmatprep.mubr.bf16.mxu0 0
      %4355 = vmatmul.mubr.bf16.gmra.mrb[0].mxu0 %v4177
      %v4356 = vpop.f32.mrb[0].mxu0
      %v4357 = vadd.f32 %v4208, %v4356
      %v4358 = vpop.f32.mrb[0].mxu0
      %v4359 = vpop.f32.mrb[0].mxu0
      %v4360 = vadd.f32 %v4208, %v4359
      %v4361 = vpop.f32.mrb[0].mxu0
      %4362 = vmatprep.mubr.bf16.mxu0 0
      %4363 = vmatmul.mubr.bf16.gmra.mrb[0].mxu0 %v4178
      %v4364 = vpop.f32.mrb[0].mxu0
      %v4365 = vadd.f32 %v4208, %v4364
      %v4366 = vpop.f32.mrb[0].mxu0
      %v4367 = vpop.f32.mrb[0].mxu0
      %v4368 = vadd.f32 %v4208, %v4367
      %v4369 = vpop.f32.mrb[0].mxu0
      %4370 = vmatprep.mubr.bf16.mxu0 0
      %4371 = vmatmul.mubr.bf16.gmra.mrb[0].mxu0 %v4179
      %v4372 = vpop.f32.mrb[0].mxu0
      %v4373 = vadd.f32 %v4208, %v4372
      %v4374 = vpop.f32.mrb[0].mxu0
      %v4375 = vpop.f32.mrb[0].mxu0
      %v4376 = vadd.f32 %v4208, %v4375
      %v4377 = vpop.f32.mrb[0].mxu0
      %4378 = vmatprep.mubr.bf16.mxu0 0
      %4379 = vmatmul.mubr.bf16.gmra.mrb[0].mxu0 %v4180
      %v4380 = vpop.f32.mrb[0].mxu0
      %v4381 = vadd.f32 %v4208, %v4380
      %v4382 = vpop.f32.mrb[0].mxu0
      %v4383 = vpop.f32.mrb[0].mxu0
      %v4384 = vadd.f32 %v4208, %v4383
      %v4385 = vpop.f32.mrb[0].mxu0
      %4386 = vmatprep.mubr.bf16.mxu0 0
      %4387 = vmatmul.mubr.bf16.gmra.mrb[0].mxu0 %v4181
      %v4388 = vpop.f32.mrb[0].mxu0
      %v4389 = vadd.f32 %v4208, %v4388
      %v4390 = vpop.f32.mrb[0].mxu0
      %v4391 = vpop.f32.mrb[0].mxu0
      %v4392 = vadd.f32 %v4208, %v4391
      %v4393 = vpop.f32.mrb[0].mxu0
      %4394 = vmatprep.mubr.bf16.mxu0 0
      %4395 = vmatmul.mubr.bf16.gmra.mrb[0].mxu0 %v4182
      %v4396 = vpop.f32.mrb[0].mxu0
      %v4397 = vadd.f32 %v4208, %v4396
      %v4398 = vpop.f32.mrb[0].mxu0
      %v4399 = vpop.f32.mrb[0].mxu0
      %v4400 = vadd.f32 %v4208, %v4399
      %v4401 = vpop.f32.mrb[0].mxu0
      %4402 = vmatprep.mubr.bf16.mxu0 0
      %4403 = vmatmul.mubr.bf16.gmra.mrb[0].mxu0 %v4183
      %v4404 = vpop.f32.mrb[0].mxu0
      %v4405 = vadd.f32 %v4208, %v4404
      %v4406 = vpop.f32.mrb[0].mxu0
      %v4407 = vpop.f32.mrb[0].mxu0
      %v4408 = vadd.f32 %v4208, %v4407
      %v4409 = vpop.f32.mrb[0].mxu0
      %4410 = vmatprep.mubr.bf16.mxu0 0
      %4411 = vmatmul.mubr.bf16.gmra.mrb[0].mxu0 %v4184
      %v4412 = vpop.f32.mrb[0].mxu0
      %v4413 = vadd.f32 %v4208, %v4412
      %v4414 = vpop.f32.mrb[0].mxu0
      %v4415 = vpop.f32.mrb[0].mxu0
      %v4416 = vadd.f32 %v4208, %v4415
      %v4417 = vpop.f32.mrb[0].mxu0
      %4418 = vdwg.mxu0
      %v4419 = vpack.c.bf16 %v308, %v307
      %v4420 = vpack.c.bf16 %v310, %v309
      %v4421 = vpack.c.bf16 %v312, %v311
      %v4422 = vpack.c.bf16 %v314, %v313
      %v4423 = vpack.c.bf16 %v316, %v315
      %v4424 = vpack.c.bf16 %v318, %v317
      %v4425 = vpack.c.bf16 %v320, %v319
      %v4426 = vpack.c.bf16 %v322, %v321
      %v4427 = vpack.c.bf16 %v324, %v323
      %v4428 = vpack.c.bf16 %v326, %v325
      %v4429 = vpack.c.bf16 %v328, %v327
      %v4430 = vpack.c.bf16 %v330, %v329
      %v4431 = vpack.c.bf16 %v332, %v331
      %v4432 = vpack.c.bf16 %v334, %v333
      %v4433 = vpack.c.bf16 %v336, %v335
      %v4434 = vpack.c.bf16 %v338, %v337
      %v4435 = vld [vmem:[%s4] sm:$0xf]
      %v4436 = vld [vmem:[%s4 + $0x4] sm:$0xf]
      %v4437 = vld [vmem:[%s4 + $0x8] sm:$0xf]
      %v4438 = vld [vmem:[%s4 + $0xc] sm:$0xf]
      %v4439 = vld [vmem:[%s4 + $0x10] sm:$0xf]
      %v4440 = vld [vmem:[%s4 + $0x14] sm:$0xf]
      %v4441 = vld [vmem:[%s4 + $0x18] sm:$0xf]
      %v4442 = vld [vmem:[%s4 + $0x1c] sm:$0xf]
      %v4443 = vld [vmem:[%s4 + $0x20] sm:$0xf]
      %v4444 = vld [vmem:[%s4 + $0x24] sm:$0xf]
      %v4445 = vld [vmem:[%s4 + $0x28] sm:$0xf]
      %v4446 = vld [vmem:[%s4 + $0x2c] sm:$0xf]
      %v4447 = vld [vmem:[%s4 + $0x30] sm:$0xf]
      %v4448 = vld [vmem:[%s4 + $0x34] sm:$0xf]
      %v4449 = vld [vmem:[%s4 + $0x38] sm:$0xf]
      %v4450 = vld [vmem:[%s4 + $0x3c] sm:$0xf]
      %v4467 = vunpack.c.l.b16 %v4435
      %v4468 = vunpack.c.l.b16 %v4436
      %v4469 = vunpack.c.l.b16 %v4437
      %v4470 = vunpack.c.l.b16 %v4438
      %v4471 = vunpack.c.l.b16 %v4439
      %v4472 = vunpack.c.l.b16 %v4440
      %v4473 = vunpack.c.l.b16 %v4441
      %v4474 = vunpack.c.l.b16 %v4442
      %v4475 = vunpack.c.l.b16 %v4443
      %v4476 = vunpack.c.l.b16 %v4444
      %v4477 = vunpack.c.l.b16 %v4445
      %v4478 = vunpack.c.l.b16 %v4446
      %v4479 = vunpack.c.l.b16 %v4447
      %v4480 = vunpack.c.l.b16 %v4448
      %v4481 = vunpack.c.l.b16 %v4449
      %v4482 = vunpack.c.l.b16 %v4450
      %v4483 = vpack.c.b16 %v4468, %v4467
      %v4484 = vpack.c.b16 %v4470, %v4469
      %v4485 = vpack.c.b16 %v4472, %v4471
      %v4486 = vpack.c.b16 %v4474, %v4473
      %v4487 = vpack.c.b16 %v4476, %v4475
      %v4488 = vpack.c.b16 %v4478, %v4477
      %v4489 = vpack.c.b16 %v4480, %v4479
      %v4490 = vpack.c.b16 %v4482, %v4481
      %4499 = vmatprep.subr.bf16.mxu0 0
      %4500 = vmatpush1.bf16.msra.mxu0 %v4483
      %4501 = vmatprep.subr.bf16.mxu0 0
      %4502 = vmatpush1.bf16.msra.mxu0 %v4484
      %4503 = vmatprep.subr.bf16.mxu0 0
      %4504 = vmatpush1.bf16.msra.mxu0 %v4485
      %4505 = vmatprep.subr.bf16.mxu0 0
      %4506 = vmatpush1.bf16.msra.mxu0 %v4486
      %4507 = vmatprep.subr.bf16.mxu0 0
      %4508 = vmatpush1.bf16.msra.mxu0 %v4487
      %4509 = vmatprep.subr.bf16.mxu0 0
      %4510 = vmatpush1.bf16.msra.mxu0 %v4488
      %4511 = vmatprep.subr.bf16.mxu0 0
      %4512 = vmatpush1.bf16.msra.mxu0 %v4489
      %4513 = vmatprep.subr.bf16.mxu0 0
      %4514 = vmatpush1.bf16.msra.mxu0 %v4490
      %4515 = vmatprep.subr.bf16.mxu0 0
      %4516 = vmatpush1.bf16.msra.mxu0 0
      %4517 = vmatprep.subr.bf16.mxu0 0
      %4518 = vmatpush1.bf16.msra.mxu0 0
      %4519 = vmatprep.subr.bf16.mxu0 0
      %4520 = vmatpush1.bf16.msra.mxu0 0
      %4521 = vmatprep.subr.bf16.mxu0 0
      %4522 = vmatpush1.bf16.msra.mxu0 0
      %4523 = vmatprep.subr.bf16.mxu0 0
      %4524 = vmatpush1.bf16.msra.mxu0 0
      %4525 = vmatprep.subr.bf16.mxu0 0
      %4526 = vmatpush1.bf16.msra.mxu0 0
      %4527 = vmatprep.subr.bf16.mxu0 0
      %4528 = vmatpush1.bf16.msra.mxu0 0
      %4529 = vmatprep.subr.bf16.mxu0 0
      %4530 = vmatpush1.bf16.msra.mxu0 0
      %4531 = vmatprep.mubr.bf16.mxu0 0
      %4532 = vmatmul.mubr.bf16.gmra.mrb[0].mxu0 %v4419
      %v4533 = vpop.f32.mrb[0].mxu0
      %v4534 = vadd.f32 0.0, %v4533
      %v4535 = vpop.f32.mrb[0].mxu0
      %v4536 = vpop.f32.mrb[0].mxu0
      %v4537 = vadd.f32 0.0, %v4536
      %v4538 = vpop.f32.mrb[0].mxu0
      %4539 = vmatprep.mubr.bf16.mxu0 0
      %4540 = vmatmul.mubr.bf16.gmra.mrb[0].mxu0 %v4420
      %v4541 = vpop.f32.mrb[0].mxu0
      %v4542 = vadd.f32 0.0, %v4541
      %v4543 = vpop.f32.mrb[0].mxu0
      %v4544 = vpop.f32.mrb[0].mxu0
      %v4545 = vadd.f32 0.0, %v4544
      %v4546 = vpop.f32.mrb[0].mxu0
      %4547 = vmatprep.mubr.bf16.mxu0 0
      %4548 = vmatmul.mubr.bf16.gmra.mrb[0].mxu0 %v4421
      %v4549 = vpop.f32.mrb[0].mxu0
      %v4550 = vadd.f32 0.0, %v4549
      %v4551 = vpop.f32.mrb[0].mxu0
      %v4552 = vpop.f32.mrb[0].mxu0
      %v4553 = vadd.f32 0.0, %v4552
      %v4554 = vpop.f32.mrb[0].mxu0
      %4555 = vmatprep.mubr.bf16.mxu0 0
      %4556 = vmatmul.mubr.bf16.gmra.mrb[0].mxu0 %v4422
      %v4557 = vpop.f32.mrb[0].mxu0
      %v4558 = vadd.f32 0.0, %v4557
      %v4559 = vpop.f32.mrb[0].mxu0
      %v4560 = vpop.f32.mrb[0].mxu0
      %v4561 = vadd.f32 0.0, %v4560
      %v4562 = vpop.f32.mrb[0].mxu0
      %4563 = vmatprep.mubr.bf16.mxu0 0
      %4564 = vmatmul.mubr.bf16.gmra.mrb[0].mxu0 %v4423
      %v4565 = vpop.f32.mrb[0].mxu0
      %v4566 = vadd.f32 0.0, %v4565
      %v4567 = vpop.f32.mrb[0].mxu0
      %v4568 = vpop.f32.mrb[0].mxu0
      %v4569 = vadd.f32 0.0, %v4568
      %v4570 = vpop.f32.mrb[0].mxu0
      %4571 = vmatprep.mubr.bf16.mxu0 0
      %4572 = vmatmul.mubr.bf16.gmra.mrb[0].mxu0 %v4424
      %v4573 = vpop.f32.mrb[0].mxu0
      %v4574 = vadd.f32 0.0, %v4573
      %v4575 = vpop.f32.mrb[0].mxu0
      %v4576 = vpop.f32.mrb[0].mxu0
      %v4577 = vadd.f32 0.0, %v4576
      %v4578 = vpop.f32.mrb[0].mxu0
      %4579 = vmatprep.mubr.bf16.mxu0 0
      %4580 = vmatmul.mubr.bf16.gmra.mrb[0].mxu0 %v4425
      %v4581 = vpop.f32.mrb[0].mxu0
      %v4582 = vadd.f32 0.0, %v4581
      %v4583 = vpop.f32.mrb[0].mxu0
      %v4584 = vpop.f32.mrb[0].mxu0
      %v4585 = vadd.f32 0.0, %v4584
      %v4586 = vpop.f32.mrb[0].mxu0
      %4587 = vmatprep.mubr.bf16.mxu0 0
      %4588 = vmatmul.mubr.bf16.gmra.mrb[0].mxu0 %v4426
      %v4589 = vpop.f32.mrb[0].mxu0
      %v4590 = vadd.f32 0.0, %v4589
      %v4591 = vpop.f32.mrb[0].mxu0
      %v4592 = vpop.f32.mrb[0].mxu0
      %v4593 = vadd.f32 0.0, %v4592
      %v4594 = vpop.f32.mrb[0].mxu0
      %4595 = vmatprep.mubr.bf16.mxu0 0
      %4596 = vmatmul.mubr.bf16.gmra.mrb[0].mxu0 %v4427
      %v4597 = vpop.f32.mrb[0].mxu0
      %v4598 = vadd.f32 0.0, %v4597
      %v4599 = vpop.f32.mrb[0].mxu0
      %v4600 = vpop.f32.mrb[0].mxu0
      %v4601 = vadd.f32 0.0, %v4600
      %v4602 = vpop.f32.mrb[0].mxu0
      %4603 = vmatprep.mubr.bf16.mxu0 0
      %4604 = vmatmul.mubr.bf16.gmra.mrb[0].mxu0 %v4428
      %v4605 = vpop.f32.mrb[0].mxu0
      %v4606 = vadd.f32 0.0, %v4605
      %v4607 = vpop.f32.mrb[0].mxu0
      %v4608 = vpop.f32.mrb[0].mxu0
      %v4609 = vadd.f32 0.0, %v4608
      %v4610 = vpop.f32.mrb[0].mxu0
      %4611 = vmatprep.mubr.bf16.mxu0 0
      %4612 = vmatmul.mubr.bf16.gmra.mrb[0].mxu0 %v4429
      %v4613 = vpop.f32.mrb[0].mxu0
      %v4614 = vadd.f32 0.0, %v4613
      %v4615 = vpop.f32.mrb[0].mxu0
      %v4616 = vpop.f32.mrb[0].mxu0
      %v4617 = vadd.f32 0.0, %v4616
      %v4618 = vpop.f32.mrb[0].mxu0
      %4619 = vmatprep.mubr.bf16.mxu0 0
      %4620 = vmatmul.mubr.bf16.gmra.mrb[0].mxu0 %v4430
      %v4621 = vpop.f32.mrb[0].mxu0
      %v4622 = vadd.f32 0.0, %v4621
      %v4623 = vpop.f32.mrb[0].mxu0
      %v4624 = vpop.f32.mrb[0].mxu0
      %v4625 = vadd.f32 0.0, %v4624
      %v4626 = vpop.f32.mrb[0].mxu0
      %4627 = vmatprep.mubr.bf16.mxu0 0
      %4628 = vmatmul.mubr.bf16.gmra.mrb[0].mxu0 %v4431
      %v4629 = vpop.f32.mrb[0].mxu0
      %v4630 = vadd.f32 0.0, %v4629
      %v4631 = vpop.f32.mrb[0].mxu0
      %v4632 = vpop.f32.mrb[0].mxu0
      %v4633 = vadd.f32 0.0, %v4632
      %v4634 = vpop.f32.mrb[0].mxu0
      %4635 = vmatprep.mubr.bf16.mxu0 0
      %4636 = vmatmul.mubr.bf16.gmra.mrb[0].mxu0 %v4432
      %v4637 = vpop.f32.mrb[0].mxu0
      %v4638 = vadd.f32 0.0, %v4637
      %v4639 = vpop.f32.mrb[0].mxu0
      %v4640 = vpop.f32.mrb[0].mxu0
      %v4641 = vadd.f32 0.0, %v4640
      %v4642 = vpop.f32.mrb[0].mxu0
      %4643 = vmatprep.mubr.bf16.mxu0 0
      %4644 = vmatmul.mubr.bf16.gmra.mrb[0].mxu0 %v4433
      %v4645 = vpop.f32.mrb[0].mxu0
      %v4646 = vadd.f32 0.0, %v4645
      %v4647 = vpop.f32.mrb[0].mxu0
      %v4648 = vpop.f32.mrb[0].mxu0
      %v4649 = vadd.f32 0.0, %v4648
      %v4650 = vpop.f32.mrb[0].mxu0
      %4651 = vmatprep.mubr.bf16.mxu0 0
      %4652 = vmatmul.mubr.bf16.gmra.mrb[0].mxu0 %v4434
      %v4653 = vpop.f32.mrb[0].mxu0
      %v4654 = vadd.f32 0.0, %v4653
      %v4655 = vpop.f32.mrb[0].mxu0
      %v4656 = vpop.f32.mrb[0].mxu0
      %v4657 = vadd.f32 0.0, %v4656
      %v4658 = vpop.f32.mrb[0].mxu0
      %4659 = vdwg.mxu0
      %v4660 = vadd.f32 %v4293, %v4534
      %v4661 = vadd.f32 %v4296, %v4537
      %v4662 = vadd.f32 %v4301, %v4542
      %v4663 = vadd.f32 %v4304, %v4545
      %v4664 = vadd.f32 %v4309, %v4550
      %v4665 = vadd.f32 %v4312, %v4553
      %v4666 = vadd.f32 %v4317, %v4558
      %v4667 = vadd.f32 %v4320, %v4561
      %v4668 = vadd.f32 %v4325, %v4566
      %v4669 = vadd.f32 %v4328, %v4569
      %v4670 = vadd.f32 %v4333, %v4574
      %v4671 = vadd.f32 %v4336, %v4577
      %v4672 = vadd.f32 %v4341, %v4582
      %v4673 = vadd.f32 %v4344, %v4585
      %v4674 = vadd.f32 %v4349, %v4590
      %v4675 = vadd.f32 %v4352, %v4593
      %v4676 = vadd.f32 %v4357, %v4598
      %v4677 = vadd.f32 %v4360, %v4601
      %v4678 = vadd.f32 %v4365, %v4606
      %v4679 = vadd.f32 %v4368, %v4609
      %v4680 = vadd.f32 %v4373, %v4614
      %v4681 = vadd.f32 %v4376, %v4617
      %v4682 = vadd.f32 %v4381, %v4622
      %v4683 = vadd.f32 %v4384, %v4625
      %v4684 = vadd.f32 %v4389, %v4630
      %v4685 = vadd.f32 %v4392, %v4633
      %v4686 = vadd.f32 %v4397, %v4638
      %v4687 = vadd.f32 %v4400, %v4641
      %v4688 = vadd.f32 %v4405, %v4646
      %v4689 = vadd.f32 %v4408, %v4649
      %v4690 = vadd.f32 %v4413, %v4654
      %v4691 = vadd.f32 %v4416, %v4657
      %v4692 = vld [vmem:[%s5] sm:$0x1]
      %v4694 = vlaneseq
      %v4695 = vshrl.u32 %v4694, 7
      %v4696 = vsub.s32 0, %v4695
      %v4697 = vrot.slane %v4692, %v4696
      %v4699 = vadd.f32 %v4660, %v4697
      %v4700 = vadd.f32 %v4661, %v4697
      %v4701 = vadd.f32 %v4662, %v4697
      %v4702 = vadd.f32 %v4663, %v4697
      %v4703 = vadd.f32 %v4664, %v4697
      %v4704 = vadd.f32 %v4665, %v4697
      %v4705 = vadd.f32 %v4666, %v4697
      %v4706 = vadd.f32 %v4667, %v4697
      %v4707 = vadd.f32 %v4668, %v4697
      %v4708 = vadd.f32 %v4669, %v4697
      %v4709 = vadd.f32 %v4670, %v4697
      %v4710 = vadd.f32 %v4671, %v4697
      %v4711 = vadd.f32 %v4672, %v4697
      %v4712 = vadd.f32 %v4673, %v4697
      %v4713 = vadd.f32 %v4674, %v4697
      %v4714 = vadd.f32 %v4675, %v4697
      %v4715 = vadd.f32 %v4676, %v4697
      %v4716 = vadd.f32 %v4677, %v4697
      %v4717 = vadd.f32 %v4678, %v4697
      %v4718 = vadd.f32 %v4679, %v4697
      %v4719 = vadd.f32 %v4680, %v4697
      %v4720 = vadd.f32 %v4681, %v4697
      %v4721 = vadd.f32 %v4682, %v4697
      %v4722 = vadd.f32 %v4683, %v4697
      %v4723 = vadd.f32 %v4684, %v4697
      %v4724 = vadd.f32 %v4685, %v4697
      %v4725 = vadd.f32 %v4686, %v4697
      %v4726 = vadd.f32 %v4687, %v4697
      %v4727 = vadd.f32 %v4688, %v4697
      %v4728 = vadd.f32 %v4689, %v4697
      %v4729 = vadd.f32 %v4690, %v4697
      %v4730 = vadd.f32 %v4691, %v4697
      %4731 = vst [vmem:[%s251] sm:$0xff] %v4699
      %4732 = vst [vmem:[%s251 + $0x8] sm:$0xff] %v4700
      %4733 = vst [vmem:[%s251 + $0x10] sm:$0xff] %v4701
      %4734 = vst [vmem:[%s251 + $0x18] sm:$0xff] %v4702
      %4735 = vst [vmem:[%s251 + $0x20] sm:$0xff] %v4703
      %4736 = vst [vmem:[%s251 + $0x28] sm:$0xff] %v4704
      %4737 = vst [vmem:[%s251 + $0x30] sm:$0xff] %v4705
      %4738 = vst [vmem:[%s251 + $0x38] sm:$0xff] %v4706
      %4739 = vst [vmem:[%s251 + $0x40] sm:$0xff] %v4707
      %4740 = vst [vmem:[%s251 + $0x48] sm:$0xff] %v4708
      %4741 = vst [vmem:[%s251 + $0x50] sm:$0xff] %v4709
      %4742 = vst [vmem:[%s251 + $0x58] sm:$0xff] %v4710
      %4743 = vst [vmem:[%s251 + $0x60] sm:$0xff] %v4711
      %4744 = vst [vmem:[%s251 + $0x68] sm:$0xff] %v4712
      %4745 = vst [vmem:[%s251 + $0x70] sm:$0xff] %v4713
      %4746 = vst [vmem:[%s251 + $0x78] sm:$0xff] %v4714
      %4747 = vst [vmem:[%s251 + $0x80] sm:$0xff] %v4715
      %4748 = vst [vmem:[%s251 + $0x88] sm:$0xff] %v4716
      %4749 = vst [vmem:[%s251 + $0x90] sm:$0xff] %v4717
      %4750 = vst [vmem:[%s251 + $0x98] sm:$0xff] %v4718
      %4751 = vst [vmem:[%s251 + $0xa0] sm:$0xff] %v4719
      %4752 = vst [vmem:[%s251 + $0xa8] sm:$0xff] %v4720
      %4753 = vst [vmem:[%s251 + $0xb0] sm:$0xff] %v4721
      %4754 = vst [vmem:[%s251 + $0xb8] sm:$0xff] %v4722
      %4755 = vst [vmem:[%s251 + $0xc0] sm:$0xff] %v4723
      %4756 = vst [vmem:[%s251 + $0xc8] sm:$0xff] %v4724
      %4757 = vst [vmem:[%s251 + $0xd0] sm:$0xff] %v4725
      %4758 = vst [vmem:[%s251 + $0xd8] sm:$0xff] %v4726
      %4759 = vst [vmem:[%s251 + $0xe0] sm:$0xff] %v4727
      %4760 = vst [vmem:[%s251 + $0xe8] sm:$0xff] %v4728
      %4761 = vst [vmem:[%s251 + $0xf0] sm:$0xff] %v4729
      %4762 = vst [vmem:[%s251 + $0xf8] sm:$0xff] %v4730
      %p4763 = scmp.lt.s32.totalorder %s17, 1
      %s4764 = scalar_select %p4763, %s17, 1
      %s4765 = smul.addr %s4764, 32
      %s4766 = smul.addr %s4765, 8
      %s4767 = scalar_lea.vmem %s6, %s4766
      // Predicated region
      $region45: #{block_forward_pallas.1} parent=43 // pred_check
        %p4768 = pneg %p166
      $region46: #{block_forward_pallas.1} parent=43 // pred_check_branch
        %4770 = sbr.rel (%p4768) target = $region48
      $region47: #{block_forward_pallas.1} parent=43 // pred_region
        _
      $region48: #{block_forward_pallas.1} parent=43 // pred_fallthru
        _
    $region44: #{block_forward_pallas.1} parent=5 // pred_fallthru
      _
    %p4771 = scmp.le.s32.totalorder 2, %s12
    // Predicated region
    $region49: #{block_forward_pallas.1} parent=5 // pred_check
      %p4772 = pneg %p4771
    $region50: #{block_forward_pallas.1} parent=5 // pred_check_branch
      %4774 = sbr.rel (%p4772) target = $region52
    $region51: #{block_forward_pallas.1} parent=5 // pred_region
      %s4775 = ssub.s32 %s12, 2
      // Predicated region
      $region53: #{block_forward_pallas.1} parent=51 // pred_check
        %p4776 = pneg %p172
      $region54: #{block_forward_pallas.1} parent=51 // pred_check_branch
        %4778 = sbr.rel (%p4776) target = $region56
      $region55: #{block_forward_pallas.1} parent=51 // pred_region
        %p4779 = scmp.lt.s32.totalorder %s18, 1
        %s4780 = scalar_select %p4779, %s18, 1
        %s4781 = smul.addr %s4780, 32
        %s4782 = smul.addr %s4781, 8
        %s4783 = scalar_lea.vmem %s6, %s4782
      $region56: #{block_forward_pallas.1} parent=51 // pred_fallthru
        _
    $region52: #{block_forward_pallas.1} parent=5 // pred_fallthru
      _
  $region6: #{block_forward_pallas.1} parent=0 // loop_footer
    %s16 = sadd.s32 1, %s12
  $region7: #{block_forward_pallas.1} parent=0 // loop_footer_branch
    %11 = sbr.rel target = $region3
  $region8: #{block_forward_pallas.1} parent=0 // loop_exit
    _

</llo_original>
